<compile_context>
chip_gen: v7x
topology: tpu7x:2x2x1
jax: 0.10.0
libtpu: 0.0.40
codegen_flags: <defaults>
</compile_context>

<pallas_src>
import functools

import jax
import jax.numpy as jnp
from jax import lax
from jax.experimental import pallas as pl
from jax.experimental.pallas import tpu as pltpu

EPS = 1e-5


# ----------------------------------------------------------------------------
# Kernel
# ----------------------------------------------------------------------------
def _make_kernel(Nb, H, W, Cin, GW, OC, OC_pad, stride, has_proj, matmul_dtype,
                 im2col):
    HO = (H - 1) // stride + 1
    WO = (W - 1) // stride + 1
    M_in = Nb * H * W
    M_out = Nb * HO * WO
    pb = stride  # bottom/right zero pad (covers the stride-s reshape trick)

    def kernel(x_ref, w1_ref, s1_ref, b1_ref, w2_ref, s2_ref, b2_ref,
               w3_ref, s3_ref, b3_ref, *rest):
        idx = 0
        if has_proj:
            ws_ref, ss_ref, bs_ref = rest[0], rest[1], rest[2]
            idx = 3
        out_ref = rest[idx]
        pad_ref = None if im2col else rest[idx + 1]

        x = x_ref[...]                                   # (Nb, H, W, Cin) f32
        xf = x.reshape(M_in, Cin)
        xmm = xf.astype(matmul_dtype)

        # ---- conv1 (1x1) + bn1 + relu: one MXU matmul over Nb*H*W rows ------
        h1 = jnp.dot(xmm, w1_ref[...], preferred_element_type=jnp.float32)
        h1 = jnp.maximum(h1 * s1_ref[...] + b1_ref[...], 0.0)   # (M_in, GW) f32
        h1i = h1.reshape(Nb, H, W, GW)

        # ---- grouped 3x3 conv (block-diagonal weights), pad=1, stride=s -----
        if im2col:
            # Zero-pad in registers (no VMEM bounce, nothing re-zeroed/step).
            ztb = jnp.zeros((Nb, 1, W, GW), jnp.float32)
            zbb = jnp.zeros((Nb, pb, W, GW), jnp.float32)
            hp = jnp.concatenate([ztb, h1i, zbb], axis=1)
            Hp = H + 1 + pb
            zl = jnp.zeros((Nb, Hp, 1, GW), jnp.float32)
            zr = jnp.zeros((Nb, Hp, pb, GW), jnp.float32)
            hp = jnp.concatenate([zl, hp, zr], axis=2)          # (Nb,Hp,W+1+pb,GW)

            def tap(ky, kx):
                if stride == 1:
                    t = hp[:, ky:ky + HO, kx:kx + WO, :]
                else:
                    # strided rows on leading H axis (cheap addressing); W
                    # decimation via contiguous window + reshape/select
                    rows = lax.slice_in_dim(hp, ky, ky + stride * (HO - 1) + 1,
                                            stride=stride, axis=1)
                    cols = lax.slice_in_dim(rows, kx, kx + stride * WO,
                                            stride=1, axis=2)
                    t = cols.reshape(Nb, HO, WO, stride, GW)[:, :, :, 0, :]
                return t.reshape(M_out, GW)

            patches = jnp.concatenate(
                [tap(ky, kx) for ky in range(3) for kx in range(3)], axis=-1)
            h2 = jnp.dot(patches.astype(matmul_dtype), w2_ref[...],
                         preferred_element_type=jnp.float32)    # K = 9*GW
        else:
            # Conservative path: padded VMEM scratch + 9 accumulated dots.
            pad_ref[...] = jnp.zeros(pad_ref.shape, jnp.float32)
            pad_ref[:, 1:H + 1, 1:W + 1, :] = h1i
            sl = ((lambda s, n: pl.ds(s, n)) if stride == 1
                  else (lambda s, n: pl.ds(s, n, stride)))
            h2 = jnp.zeros((M_out, GW), jnp.float32)
            for ky in range(3):
                for kx in range(3):
                    t = pad_ref[:, sl(ky, HO), sl(kx, WO), :].reshape(M_out, GW)
                    wk = w2_ref[(ky * 3 + kx) * GW:(ky * 3 + kx + 1) * GW, :]
                    h2 = h2 + jnp.dot(t.astype(matmul_dtype), wk,
                                      preferred_element_type=jnp.float32)
        h2 = jnp.maximum(h2 * s2_ref[...] + b2_ref[...], 0.0)   # (M_out, GW) f32

        # ---- conv3 (1x1) + bn3 (OC padded to OC_pad lanes) ------------------
        h3 = jnp.dot(h2.astype(matmul_dtype), w3_ref[...],
                     preferred_element_type=jnp.float32)
        h3 = h3 * s3_ref[...] + b3_ref[...]                     # (M_out, OC_pad)

        # ---- shortcut -------------------------------------------------------
        if has_proj:
            if stride == 1:
                xs = xmm
            elif im2col:
                rows = lax.slice_in_dim(x, 0, stride * (HO - 1) + 1,
                                        stride=stride, axis=1)
                cols = lax.slice_in_dim(rows, 0, stride * WO, stride=1, axis=2)
                xs = cols.reshape(Nb, HO, WO, stride, Cin)[:, :, :, 0, :]
                xs = xs.reshape(M_out, Cin).astype(matmul_dtype)
            else:
                xs = x_ref[:, pl.ds(0, HO, stride), pl.ds(0, WO, stride), :]
                xs = xs.reshape(M_out, Cin).astype(matmul_dtype)
            sh = jnp.dot(xs, ws_ref[...], preferred_element_type=jnp.float32)
            sh = sh * ss_ref[...] + bs_ref[...]                 # (M_out, OC_pad)
        else:
            sh = xf                                  # identity: Cin==OC, stride==1
            if OC_pad != OC:
                sh = jnp.concatenate(
                    [sh, jnp.zeros((M_out, OC_pad - OC), jnp.float32)], axis=-1)

        # lane-dense store: (block_n, HO*WO, OC_pad) with OC_pad % 128 == 0
        out_ref[...] = jnp.maximum(h3 + sh, 0.0).reshape(Nb, HO * WO, OC_pad)

    return kernel


# ----------------------------------------------------------------------------
# Wrapper
# ----------------------------------------------------------------------------
def _resnext_block_impl(x, params, *, stride, block_n, matmul_dtype, im2col):
    N, H, W, Cin = x.shape
    GW = params["w1"].shape[1]
    OC = params["w3"].shape[1]
    has_proj = "ws" in params
    HO = (H - 1) // stride + 1
    WO = (W - 1) // stride + 1
    OC_pad = pl.cdiv(OC, 128) * 128   # lane-dense output store

    def pad_oc(a):
        if OC_pad == OC:
            return a
        return jnp.pad(a, [(0, 0)] * (a.ndim - 1) + [(0, OC_pad - OC)])

    # Wrapper-side (free) plumbing: flatten the block-diagonal grouped-conv
    # weights to the (9*GW, GW) im2col matrix, pad OC-sized arrays to OC_pad
    # lanes, cast matmul weights to bf16 (halves weight DMA bytes).
    w1 = params["w1"].astype(matmul_dtype)
    w2 = params["w2"].reshape(9 * GW, GW).astype(matmul_dtype)
    w3 = pad_oc(params["w3"]).astype(matmul_dtype)
    ins = [x, w1, params["s1"], params["b1"], w2, params["s2"], params["b2"],
           w3, pad_oc(params["s3"]), pad_oc(params["b3"])]
    if has_proj:
        ins += [pad_oc(params["ws"]).astype(matmul_dtype),
                pad_oc(params["ss"]), pad_oc(params["bs"])]

    kernel = _make_kernel(block_n, H, W, Cin, GW, OC, OC_pad, stride, has_proj,
                          matmul_dtype, im2col)

    def full_spec(a):
        nd = a.ndim
        return pl.BlockSpec(a.shape, lambda n, _nd=nd: (0,) * _nd)

    in_specs = [pl.BlockSpec((block_n, H, W, Cin), lambda n: (n, 0, 0, 0))]
    in_specs += [full_spec(a) for a in ins[1:]]
    scratch_shapes = []
    if not im2col:
        scratch_shapes.append(pltpu.VMEM((block_n, H + 2, W + 2, GW),
                                         jnp.float32))

    # Advisory cost estimate so XLA schedules neighbouring ops sensibly.
    flops = 2 * N * (H * W * Cin * GW + HO * WO * 9 * GW * GW
                     + HO * WO * GW * OC_pad)
    if has_proj:
        flops += 2 * N * HO * WO * Cin * OC_pad
    steps = N // block_n
    bytes_accessed = (int(x.size) * x.dtype.itemsize
                      + steps * sum(int(a.size) * a.dtype.itemsize
                                    for a in ins[1:])
                      + N * HO * WO * OC_pad * 4)

    y = pl.pallas_call(
        kernel,
        grid=(steps,),
        in_specs=in_specs,
        out_specs=pl.BlockSpec((block_n, HO * WO, OC_pad), lambda n: (n, 0, 0)),
        out_shape=jax.ShapeDtypeStruct((N, HO * WO, OC_pad), jnp.float32),
        scratch_shapes=scratch_shapes,
        compiler_params=pltpu.CompilerParams(
            dimension_semantics=("parallel",)),
        cost_estimate=pl.CostEstimate(flops=int(flops), transcendentals=0,
                                      bytes_accessed=int(bytes_accessed)),
    )(*ins)
    # Surface any lowering/runtime error here (enables the fallback selection).
    y = jax.block_until_ready(y)
    # Strip the lane padding / flattened spatial dims outside the kernel.
    return y[:, :, :OC].reshape(N, HO, WO, OC)


def resnext_block(x, params, *, stride, block_n=None,
                  matmul_dtype=jnp.bfloat16):
    """x: (N, H, W, Cin) float32 NHWC.  Returns (N, HO, WO, OC) float32."""
    N, H, W, _ = x.shape
    if stride > 1:
        # TODO(synk): odd spatial sizes with stride > 1 need extra edge padding.
        assert H % stride == 0 and W % stride == 0
    HO = (H - 1) // stride + 1
    WO = (W - 1) // stride + 1
    if block_n is None:
        # fold enough images per grid step that every matmul has M >= 128 rows
        block_n = min(N, max(1, pl.cdiv(128, HO * WO)))
        while block_n > 1 and N % block_n:
            block_n -= 1
    assert N % block_n == 0, (N, block_n)

    impl = functools.partial(_resnext_block_impl, x, params, stride=stride,
                             block_n=block_n, matmul_dtype=matmul_dtype)
    try:
        return impl(im2col=True)
    except Exception:  # pragma: no cover
        # Older Mosaic versions may not lower the register-resident im2col
        # (unaligned concatenate); fall back to the VMEM-scratch variant.
        return impl(im2col=False)


# ----------------------------------------------------------------------------
# Parameter construction (deterministic) + pure-JAX references for validation.
# ----------------------------------------------------------------------------
def _bn_fold(conv_bias, gamma, beta, mean, var):
    scale = gamma / jnp.sqrt(var + EPS)
    bias = (conv_bias - mean) * scale + beta
    return scale[None, :], bias[None, :]


def make_params(key, in_planes, cardinality, bottleneck_width, stride):
    GW = cardinality * bottleneck_width
    OC = 2 * GW                       # expansion = 2
    cg = GW // cardinality
    ks = jax.random.split(key, 32)
    it = iter(ks)

    def rnd(shape, scale=0.1):
        return scale * jax.random.normal(next(it), shape, jnp.float32)

    def bn_raw(c):
        gamma = 0.5 + jax.random.uniform(next(it), (c,), jnp.float32)
        beta = rnd((c,))
        mean = rnd((c,))
        var = 0.5 + jax.random.uniform(next(it), (c,), jnp.float32)
        return gamma, beta, mean, var

    raw = {}
    raw["w1"] = rnd((in_planes, GW))                    # 1x1, (Cin, Cout)
    raw["b1"] = rnd((GW,))
    raw["bn1"] = bn_raw(GW)
    raw["w2_hwio"] = rnd((3, 3, cg, GW))                # grouped 3x3, HWIO
    raw["b2"] = rnd((GW,))
    raw["bn2"] = bn_raw(GW)
    raw["w3"] = rnd((GW, OC))
    raw["b3"] = rnd((OC,))
    raw["bn3"] = bn_raw(OC)
    has_proj = (stride != 1) or (in_planes != OC)
    if has_proj:
        raw["ws"] = rnd((in_planes, OC))
        raw["bs"] = rnd((OC,))
        raw["bns"] = bn_raw(OC)

    # Fold BN into per-channel scale/bias; expand grouped conv weights to a
    # block-diagonal (3,3,GW,GW) kernel so the grouped conv is a plain matmul.
    p = {"w1": raw["w1"], "w3": raw["w3"]}
    p["s1"], p["b1"] = _bn_fold(raw["b1"], *raw["bn1"])
    p["s2"], p["b2"] = _bn_fold(raw["b2"], *raw["bn2"])
    p["s3"], p["b3"] = _bn_fold(raw["b3"], *raw["bn3"])
    w2_bd = jnp.zeros((3, 3, GW, GW), jnp.float32)
    for g in range(cardinality):
        w2_bd = w2_bd.at[:, :, g * cg:(g + 1) * cg, g * cg:(g + 1) * cg].set(
            raw["w2_hwio"][:, :, :, g * cg:(g + 1) * cg])
    p["w2"] = w2_bd
    if has_proj:
        p["ws"] = raw["ws"]
        p["ss"], p["bs"] = _bn_fold(raw["bs"], *raw["bns"])
    return p, raw


def reference_block(x, raw, *, cardinality, stride, matmul_dtype=None):
    dn = ("NHWC", "HWIO", "NHWC")
    cast = ((lambda a: a.astype(matmul_dtype)) if matmul_dtype is not None
            else (lambda a: a))

    def conv(inp, w, strides, padding, groups=1):
        return lax.conv_general_dilated(
            cast(inp), cast(w), strides, padding, dimension_numbers=dn,
            feature_group_count=groups, preferred_element_type=jnp.float32)

    def bn(y, g, b, m, v):
        return (y - m) / jnp.sqrt(v + EPS) * g + b

    h = conv(x, raw["w1"][None, None], (1, 1), "VALID") + raw["b1"]
    h = jax.nn.relu(bn(h, *raw["bn1"]))
    h = conv(h, raw["w2_hwio"], (stride, stride), ((1, 1), (1, 1)),
             cardinality) + raw["b2"]
    h = jax.nn.relu(bn(h, *raw["bn2"]))
    h = conv(h, raw["w3"][None, None], (1, 1), "VALID") + raw["b3"]
    h = bn(h, *raw["bn3"])
    if "ws" in raw:
        sh = conv(x, raw["ws"][None, None], (stride, stride), "VALID") + raw["bs"]
        sh = bn(sh, *raw["bns"])
    else:
        sh = x
    return jax.nn.relu(h + sh)


if __name__ == "__main__":
    # Small ResNeXt block: in_planes=16, cardinality=4, bottleneck_width=8
    # -> group_width=32, output channels=64 (expansion 2), projection shortcut.
    N, H, W = 8, 8, 8
    in_planes, cardinality, bottleneck_width, stride = 16, 4, 8, 1

    key = jax.random.PRNGKey(0)
    kdata, kparam = jax.random.split(key)
    x = jax.random.normal(kdata, (N, H, W, in_planes), jnp.float32)
    params, raw = make_params(kparam, in_planes, cardinality, bottleneck_width,
                              stride)

    out = jax.block_until_ready(resnext_block(x, params, stride=stride))

    # Tight check vs a reference quantized identically (bf16 at conv inputs).
    ref_bf16 = jax.block_until_ready(reference_block(
        x, raw, cardinality=cardinality, stride=stride,
        matmul_dtype=jnp.bfloat16))
    # Loose check vs the full-f32 reference (bf16 matmul-input rounding only).
    ref_f32 = jax.block_until_ready(reference_block(
        x, raw, cardinality=cardinality, stride=stride))

    assert out.shape == ref_f32.shape, (out.shape, ref_f32.shape)
    assert jnp.allclose(out, ref_bf16, atol=1e-2, rtol=1e-2), (
        float(jnp.max(jnp.abs(out - ref_bf16))))
    assert jnp.allclose(out, ref_f32, atol=5e-2, rtol=5e-2), (
        float(jnp.max(jnp.abs(out - ref_f32))))

    print("KERNEL_OK")
</pallas_src>

<mosaic_0001>
module attributes {stable_mosaic.version = 11 : i64} {
  func.func @kernel(%arg0: i32, %arg1: memref<2x8x8x16xf32, #tpu.memory_space<vmem>>, %arg2: memref<16x32xbf16, #tpu.memory_space<vmem>>, %arg3: memref<1x32xf32, #tpu.memory_space<vmem>>, %arg4: memref<1x32xf32, #tpu.memory_space<vmem>>, %arg5: memref<288x32xbf16, #tpu.memory_space<vmem>>, %arg6: memref<1x32xf32, #tpu.memory_space<vmem>>, %arg7: memref<1x32xf32, #tpu.memory_space<vmem>>, %arg8: memref<32x128xbf16, #tpu.memory_space<vmem>>, %arg9: memref<1x128xf32, #tpu.memory_space<vmem>>, %arg10: memref<1x128xf32, #tpu.memory_space<vmem>>, %arg11: memref<16x128xbf16, #tpu.memory_space<vmem>>, %arg12: memref<1x128xf32, #tpu.memory_space<vmem>>, %arg13: memref<1x128xf32, #tpu.memory_space<vmem>>, %arg14: memref<2x64x128xf32, #tpu.memory_space<vmem>>) attributes {dimension_semantics = [#tpu.dimension_semantics<parallel>], iteration_bounds = array<i64: 4>, scalar_prefetch = 0 : i64, scratch_operands = 0 : i64, tpu.core_type = #tpu.core_type<tc>, window_params = [{transform_indices = @transform_0, window_bounds = array<i64: 2, 8, 8, 16>}, {pipeline_mode = #tpu.pipeline_mode<synchronous>, transform_indices = @transform_1, window_bounds = array<i64: 16, 32>}, {pipeline_mode = #tpu.pipeline_mode<synchronous>, transform_indices = @transform_2, window_bounds = array<i64: 1, 32>}, {pipeline_mode = #tpu.pipeline_mode<synchronous>, transform_indices = @transform_3, window_bounds = array<i64: 1, 32>}, {pipeline_mode = #tpu.pipeline_mode<synchronous>, transform_indices = @transform_4, window_bounds = array<i64: 288, 32>}, {pipeline_mode = #tpu.pipeline_mode<synchronous>, transform_indices = @transform_5, window_bounds = array<i64: 1, 32>}, {pipeline_mode = #tpu.pipeline_mode<synchronous>, transform_indices = @transform_6, window_bounds = array<i64: 1, 32>}, {pipeline_mode = #tpu.pipeline_mode<synchronous>, transform_indices = @transform_7, window_bounds = array<i64: 32, 128>}, {pipeline_mode = #tpu.pipeline_mode<synchronous>, transform_indices = @transform_8, window_bounds = array<i64: 1, 128>}, {pipeline_mode = #tpu.pipeline_mode<synchronous>, transform_indices = @transform_9, window_bounds = array<i64: 1, 128>}, {pipeline_mode = #tpu.pipeline_mode<synchronous>, transform_indices = @transform_10, window_bounds = array<i64: 16, 128>}, {pipeline_mode = #tpu.pipeline_mode<synchronous>, transform_indices = @transform_11, window_bounds = array<i64: 1, 128>}, {pipeline_mode = #tpu.pipeline_mode<synchronous>, transform_indices = @transform_12, window_bounds = array<i64: 1, 128>}, {transform_indices = @transform_13, window_bounds = array<i64: 2, 64, 128>}]} {
    %c0 = arith.constant 0 : index
    %c0_0 = arith.constant 0 : index
    %c0_1 = arith.constant 0 : index
    %c0_2 = arith.constant 0 : index
    %0 = vector.load %arg1[%c0, %c0_0, %c0_1, %c0_2] : memref<2x8x8x16xf32, #tpu.memory_space<vmem>>, vector<2x8x8x16xf32>
    %1 = vector.shape_cast %0 : vector<2x8x8x16xf32> to vector<128x16xf32>
    %2 = arith.truncf %1 : vector<128x16xf32> to vector<128x16xbf16>
    %c0_3 = arith.constant 0 : index
    %c0_4 = arith.constant 0 : index
    %3 = vector.load %arg2[%c0_3, %c0_4] : memref<16x32xbf16, #tpu.memory_space<vmem>>, vector<16x32xbf16>
    %cst = arith.constant dense<0.000000e+00> : vector<128x32xf32>
    %4 = tpu.matmul %2, %3, %cst {dimension_numbers = #tpu.dot_dimension_numbers<[1], [0], [0], [1], [0, 0, 1, 1], [], []>} : vector<128x16xbf16>, vector<16x32xbf16>, vector<128x32xf32> -> vector<128x32xf32>
    %c0_5 = arith.constant 0 : index
    %c0_6 = arith.constant 0 : index
    %5 = vector.load %arg3[%c0_5, %c0_6] : memref<1x32xf32, #tpu.memory_space<vmem>>, vector<1x32xf32>
    %6 = vector.broadcast %5 : vector<1x32xf32> to vector<128x32xf32>
    %7 = arith.mulf %4, %6 : vector<128x32xf32>
    %c0_7 = arith.constant 0 : index
    %c0_8 = arith.constant 0 : index
    %8 = vector.load %arg4[%c0_7, %c0_8] : memref<1x32xf32, #tpu.memory_space<vmem>>, vector<1x32xf32>
    %9 = vector.broadcast %8 : vector<1x32xf32> to vector<128x32xf32>
    %10 = arith.addf %7, %9 : vector<128x32xf32>
    %cst_9 = arith.constant 0.000000e+00 : f32
    %11 = vector.broadcast %cst_9 : f32 to vector<128x32xf32>
    %12 = arith.maximumf %10, %11 : vector<128x32xf32>
    %13 = vector.shape_cast %12 : vector<128x32xf32> to vector<2x8x8x32xf32>
    %cst_10 = arith.constant 0.000000e+00 : f32
    %14 = vector.broadcast %cst_10 : f32 to vector<2x1x8x32xf32>
    %cst_11 = arith.constant 0.000000e+00 : f32
    %15 = vector.broadcast %cst_11 : f32 to vector<2x1x8x32xf32>
    %16 = tpu.concatenate %14, %13, %15 in 1 : vector<2x1x8x32xf32>, vector<2x8x8x32xf32>, vector<2x1x8x32xf32> -> vector<2x10x8x32xf32>
    %cst_12 = arith.constant 0.000000e+00 : f32
    %17 = vector.broadcast %cst_12 : f32 to vector<2x10x1x32xf32>
    %cst_13 = arith.constant 0.000000e+00 : f32
    %18 = vector.broadcast %cst_13 : f32 to vector<2x10x1x32xf32>
    %19 = tpu.concatenate %17, %16, %18 in 2 : vector<2x10x1x32xf32>, vector<2x10x8x32xf32>, vector<2x10x1x32xf32> -> vector<2x10x10x32xf32>
    %20 = vector.extract_strided_slice %19 {offsets = [0, 0, 0, 0], sizes = [2, 8, 8, 32], strides = [1, 1, 1, 1]} : vector<2x10x10x32xf32> to vector<2x8x8x32xf32>
    %21 = vector.shape_cast %20 : vector<2x8x8x32xf32> to vector<128x32xf32>
    %22 = vector.extract_strided_slice %19 {offsets = [0, 0, 1, 0], sizes = [2, 8, 8, 32], strides = [1, 1, 1, 1]} : vector<2x10x10x32xf32> to vector<2x8x8x32xf32>
    %23 = vector.shape_cast %22 : vector<2x8x8x32xf32> to vector<128x32xf32>
    %24 = vector.extract_strided_slice %19 {offsets = [0, 0, 2, 0], sizes = [2, 8, 8, 32], strides = [1, 1, 1, 1]} : vector<2x10x10x32xf32> to vector<2x8x8x32xf32>
    %25 = vector.shape_cast %24 : vector<2x8x8x32xf32> to vector<128x32xf32>
    %26 = vector.extract_strided_slice %19 {offsets = [0, 1, 0, 0], sizes = [2, 8, 8, 32], strides = [1, 1, 1, 1]} : vector<2x10x10x32xf32> to vector<2x8x8x32xf32>
    %27 = vector.shape_cast %26 : vector<2x8x8x32xf32> to vector<128x32xf32>
    %28 = vector.extract_strided_slice %19 {offsets = [0, 1, 1, 0], sizes = [2, 8, 8, 32], strides = [1, 1, 1, 1]} : vector<2x10x10x32xf32> to vector<2x8x8x32xf32>
    %29 = vector.shape_cast %28 : vector<2x8x8x32xf32> to vector<128x32xf32>
    %30 = vector.extract_strided_slice %19 {offsets = [0, 1, 2, 0], sizes = [2, 8, 8, 32], strides = [1, 1, 1, 1]} : vector<2x10x10x32xf32> to vector<2x8x8x32xf32>
    %31 = vector.shape_cast %30 : vector<2x8x8x32xf32> to vector<128x32xf32>
    %32 = vector.extract_strided_slice %19 {offsets = [0, 2, 0, 0], sizes = [2, 8, 8, 32], strides = [1, 1, 1, 1]} : vector<2x10x10x32xf32> to vector<2x8x8x32xf32>
    %33 = vector.shape_cast %32 : vector<2x8x8x32xf32> to vector<128x32xf32>
    %34 = vector.extract_strided_slice %19 {offsets = [0, 2, 1, 0], sizes = [2, 8, 8, 32], strides = [1, 1, 1, 1]} : vector<2x10x10x32xf32> to vector<2x8x8x32xf32>
    %35 = vector.shape_cast %34 : vector<2x8x8x32xf32> to vector<128x32xf32>
    %36 = vector.extract_strided_slice %19 {offsets = [0, 2, 2, 0], sizes = [2, 8, 8, 32], strides = [1, 1, 1, 1]} : vector<2x10x10x32xf32> to vector<2x8x8x32xf32>
    %37 = vector.shape_cast %36 : vector<2x8x8x32xf32> to vector<128x32xf32>
    %38 = tpu.concatenate %21, %23, %25, %27, %29, %31, %33, %35, %37 in 1 : vector<128x32xf32>, vector<128x32xf32>, vector<128x32xf32>, vector<128x32xf32>, vector<128x32xf32>, vector<128x32xf32>, vector<128x32xf32>, vector<128x32xf32>, vector<128x32xf32> -> vector<128x288xf32>
    %39 = arith.truncf %38 : vector<128x288xf32> to vector<128x288xbf16>
    %c0_14 = arith.constant 0 : index
    %c0_15 = arith.constant 0 : index
    %40 = vector.load %arg5[%c0_14, %c0_15] : memref<288x32xbf16, #tpu.memory_space<vmem>>, vector<288x32xbf16>
    %cst_16 = arith.constant dense<0.000000e+00> : vector<128x32xf32>
    %41 = tpu.matmul %39, %40, %cst_16 {dimension_numbers = #tpu.dot_dimension_numbers<[1], [0], [0], [1], [0, 0, 1, 1], [], []>} : vector<128x288xbf16>, vector<288x32xbf16>, vector<128x32xf32> -> vector<128x32xf32>
    %c0_17 = arith.constant 0 : index
    %c0_18 = arith.constant 0 : index
    %42 = vector.load %arg6[%c0_17, %c0_18] : memref<1x32xf32, #tpu.memory_space<vmem>>, vector<1x32xf32>
    %43 = vector.broadcast %42 : vector<1x32xf32> to vector<128x32xf32>
    %44 = arith.mulf %41, %43 : vector<128x32xf32>
    %c0_19 = arith.constant 0 : index
    %c0_20 = arith.constant 0 : index
    %45 = vector.load %arg7[%c0_19, %c0_20] : memref<1x32xf32, #tpu.memory_space<vmem>>, vector<1x32xf32>
    %46 = vector.broadcast %45 : vector<1x32xf32> to vector<128x32xf32>
    %47 = arith.addf %44, %46 : vector<128x32xf32>
    %cst_21 = arith.constant 0.000000e+00 : f32
    %48 = vector.broadcast %cst_21 : f32 to vector<128x32xf32>
    %49 = arith.maximumf %47, %48 : vector<128x32xf32>
    %50 = arith.truncf %49 : vector<128x32xf32> to vector<128x32xbf16>
    %c0_22 = arith.constant 0 : index
    %c0_23 = arith.constant 0 : index
    %51 = vector.load %arg8[%c0_22, %c0_23] : memref<32x128xbf16, #tpu.memory_space<vmem>>, vector<32x128xbf16>
    %cst_24 = arith.constant dense<0.000000e+00> : vector<128x128xf32>
    %52 = tpu.matmul %50, %51, %cst_24 {dimension_numbers = #tpu.dot_dimension_numbers<[1], [0], [0], [1], [0, 0, 1, 1], [], []>} : vector<128x32xbf16>, vector<32x128xbf16>, vector<128x128xf32> -> vector<128x128xf32>
    %c0_25 = arith.constant 0 : index
    %c0_26 = arith.constant 0 : index
    %53 = vector.load %arg9[%c0_25, %c0_26] : memref<1x128xf32, #tpu.memory_space<vmem>>, vector<1x128xf32>
    %54 = vector.broadcast %53 : vector<1x128xf32> to vector<128x128xf32>
    %55 = arith.mulf %52, %54 : vector<128x128xf32>
    %c0_27 = arith.constant 0 : index
    %c0_28 = arith.constant 0 : index
    %56 = vector.load %arg10[%c0_27, %c0_28] : memref<1x128xf32, #tpu.memory_space<vmem>>, vector<1x128xf32>
    %57 = vector.broadcast %56 : vector<1x128xf32> to vector<128x128xf32>
    %58 = arith.addf %55, %57 : vector<128x128xf32>
    %c0_29 = arith.constant 0 : index
    %c0_30 = arith.constant 0 : index
    %59 = vector.load %arg11[%c0_29, %c0_30] : memref<16x128xbf16, #tpu.memory_space<vmem>>, vector<16x128xbf16>
    %cst_31 = arith.constant dense<0.000000e+00> : vector<128x128xf32>
    %60 = tpu.matmul %2, %59, %cst_31 {dimension_numbers = #tpu.dot_dimension_numbers<[1], [0], [0], [1], [0, 0, 1, 1], [], []>} : vector<128x16xbf16>, vector<16x128xbf16>, vector<128x128xf32> -> vector<128x128xf32>
    %c0_32 = arith.constant 0 : index
    %c0_33 = arith.constant 0 : index
    %61 = vector.load %arg12[%c0_32, %c0_33] : memref<1x128xf32, #tpu.memory_space<vmem>>, vector<1x128xf32>
    %62 = vector.broadcast %61 : vector<1x128xf32> to vector<128x128xf32>
    %63 = arith.mulf %60, %62 : vector<128x128xf32>
    %c0_34 = arith.constant 0 : index
    %c0_35 = arith.constant 0 : index
    %64 = vector.load %arg13[%c0_34, %c0_35] : memref<1x128xf32, #tpu.memory_space<vmem>>, vector<1x128xf32>
    %65 = vector.broadcast %64 : vector<1x128xf32> to vector<128x128xf32>
    %66 = arith.addf %63, %65 : vector<128x128xf32>
    %67 = arith.addf %58, %66 : vector<128x128xf32>
    %cst_36 = arith.constant 0.000000e+00 : f32
    %68 = vector.broadcast %cst_36 : f32 to vector<128x128xf32>
    %69 = arith.maximumf %67, %68 : vector<128x128xf32>
    %70 = vector.shape_cast %69 : vector<128x128xf32> to vector<2x64x128xf32>
    %c0_37 = arith.constant 0 : index
    %c0_38 = arith.constant 0 : index
    %c0_39 = arith.constant 0 : index
    %71 = vector.load %arg14[%c0_37, %c0_38, %c0_39] : memref<2x64x128xf32, #tpu.memory_space<vmem>>, vector<2x64x128xf32>
    tpu.vector_store %arg14[%c0_37, %c0_38, %c0_39], %70 {strides = array<i32>} : memref<2x64x128xf32, #tpu.memory_space<vmem>>, vector<2x64x128xf32>,
    return
  }
  func.func @transform_0(%arg0: i32) -> (i32, i32, i32, i32) {
    %c0_i32 = arith.constant 0 : i32
    %c0_i32_0 = arith.constant 0 : i32
    %c0_i32_1 = arith.constant 0 : i32
    %c0_i32_2 = arith.constant 0 : i32
    return %arg0, %c0_i32, %c0_i32_0, %c0_i32_1 : i32, i32, i32, i32
  }
  func.func @transform_1(%arg0: i32) -> (i32, i32) {
    %c0_i32 = arith.constant 0 : i32
    %c0_i32_0 = arith.constant 0 : i32
    %c0_i32_1 = arith.constant 0 : i32
    return %c0_i32, %c0_i32_0 : i32, i32
  }
  func.func @transform_2(%arg0: i32) -> (i32, i32) {
    %c0_i32 = arith.constant 0 : i32
    %c0_i32_0 = arith.constant 0 : i32
    %c0_i32_1 = arith.constant 0 : i32
    return %c0_i32, %c0_i32_0 : i32, i32
  }
  func.func @transform_3(%arg0: i32) -> (i32, i32) {
    %c0_i32 = arith.constant 0 : i32
    %c0_i32_0 = arith.constant 0 : i32
    %c0_i32_1 = arith.constant 0 : i32
    return %c0_i32, %c0_i32_0 : i32, i32
  }
  func.func @transform_4(%arg0: i32) -> (i32, i32) {
    %c0_i32 = arith.constant 0 : i32
    %c0_i32_0 = arith.constant 0 : i32
    %c0_i32_1 = arith.constant 0 : i32
    return %c0_i32, %c0_i32_0 : i32, i32
  }
  func.func @transform_5(%arg0: i32) -> (i32, i32) {
    %c0_i32 = arith.constant 0 : i32
    %c0_i32_0 = arith.constant 0 : i32
    %c0_i32_1 = arith.constant 0 : i32
    return %c0_i32, %c0_i32_0 : i32, i32
  }
  func.func @transform_6(%arg0: i32) -> (i32, i32) {
    %c0_i32 = arith.constant 0 : i32
    %c0_i32_0 = arith.constant 0 : i32
    %c0_i32_1 = arith.constant 0 : i32
    return %c0_i32, %c0_i32_0 : i32, i32
  }
  func.func @transform_7(%arg0: i32) -> (i32, i32) {
    %c0_i32 = arith.constant 0 : i32
    %c0_i32_0 = arith.constant 0 : i32
    %c0_i32_1 = arith.constant 0 : i32
    return %c0_i32, %c0_i32_0 : i32, i32
  }
  func.func @transform_8(%arg0: i32) -> (i32, i32) {
    %c0_i32 = arith.constant 0 : i32
    %c0_i32_0 = arith.constant 0 : i32
    %c0_i32_1 = arith.constant 0 : i32
    return %c0_i32, %c0_i32_0 : i32, i32
  }
  func.func @transform_9(%arg0: i32) -> (i32, i32) {
    %c0_i32 = arith.constant 0 : i32
    %c0_i32_0 = arith.constant 0 : i32
    %c0_i32_1 = arith.constant 0 : i32
    return %c0_i32, %c0_i32_0 : i32, i32
  }
  func.func @transform_10(%arg0: i32) -> (i32, i32) {
    %c0_i32 = arith.constant 0 : i32
    %c0_i32_0 = arith.constant 0 : i32
    %c0_i32_1 = arith.constant 0 : i32
    return %c0_i32, %c0_i32_0 : i32, i32
  }
  func.func @transform_11(%arg0: i32) -> (i32, i32) {
    %c0_i32 = arith.constant 0 : i32
    %c0_i32_0 = arith.constant 0 : i32
    %c0_i32_1 = arith.constant 0 : i32
    return %c0_i32, %c0_i32_0 : i32, i32
  }
  func.func @transform_12(%arg0: i32) -> (i32, i32) {
    %c0_i32 = arith.constant 0 : i32
    %c0_i32_0 = arith.constant 0 : i32
    %c0_i32_1 = arith.constant 0 : i32
    return %c0_i32, %c0_i32_0 : i32, i32
  }
  func.func @transform_13(%arg0: i32) -> (i32, i32, i32) {
    %c0_i32 = arith.constant 0 : i32
    %c0_i32_0 = arith.constant 0 : i32
    %c0_i32_1 = arith.constant 0 : i32
    return %arg0, %c0_i32, %c0_i32_0 : i32, i32, i32
  }
}

module attributes {stable_mosaic.version = 11 : i64} {
  func.func @kernel(%arg0: i32, %arg1: memref<2x8x8x16xf32, #tpu.memory_space<vmem>>, %arg2: memref<16x32xbf16, #tpu.memory_space<vmem>>, %arg3: memref<1x32xf32, #tpu.memory_space<vmem>>, %arg4: memref<1x32xf32, #tpu.memory_space<vmem>>, %arg5: memref<288x32xbf16, #tpu.memory_space<vmem>>, %arg6: memref<1x32xf32, #tpu.memory_space<vmem>>, %arg7: memref<1x32xf32, #tpu.memory_space<vmem>>, %arg8: memref<32x128xbf16, #tpu.memory_space<vmem>>, %arg9: memref<1x128xf32, #tpu.memory_space<vmem>>, %arg10: memref<1x128xf32, #tpu.memory_space<vmem>>, %arg11: memref<16x128xbf16, #tpu.memory_space<vmem>>, %arg12: memref<1x128xf32, #tpu.memory_space<vmem>>, %arg13: memref<1x128xf32, #tpu.memory_space<vmem>>, %arg14: memref<2x64x128xf32, #tpu.memory_space<vmem>>, %arg15: memref<2x10x10x32xf32, #tpu.memory_space<vmem>>) attributes {dimension_semantics = [#tpu.dimension_semantics<parallel>], iteration_bounds = array<i64: 4>, scalar_prefetch = 0 : i64, scratch_operands = 1 : i64, tpu.core_type = #tpu.core_type<tc>, window_params = [{transform_indices = @transform_0, window_bounds = array<i64: 2, 8, 8, 16>}, {pipeline_mode = #tpu.pipeline_mode<synchronous>, transform_indices = @transform_1, window_bounds = array<i64: 16, 32>}, {pipeline_mode = #tpu.pipeline_mode<synchronous>, transform_indices = @transform_2, window_bounds = array<i64: 1, 32>}, {pipeline_mode = #tpu.pipeline_mode<synchronous>, transform_indices = @transform_3, window_bounds = array<i64: 1, 32>}, {pipeline_mode = #tpu.pipeline_mode<synchronous>, transform_indices = @transform_4, window_bounds = array<i64: 288, 32>}, {pipeline_mode = #tpu.pipeline_mode<synchronous>, transform_indices = @transform_5, window_bounds = array<i64: 1, 32>}, {pipeline_mode = #tpu.pipeline_mode<synchronous>, transform_indices = @transform_6, window_bounds = array<i64: 1, 32>}, {pipeline_mode = #tpu.pipeline_mode<synchronous>, transform_indices = @transform_7, window_bounds = array<i64: 32, 128>}, {pipeline_mode = #tpu.pipeline_mode<synchronous>, transform_indices = @transform_8, window_bounds = array<i64: 1, 128>}, {pipeline_mode = #tpu.pipeline_mode<synchronous>, transform_indices = @transform_9, window_bounds = array<i64: 1, 128>}, {pipeline_mode = #tpu.pipeline_mode<synchronous>, transform_indices = @transform_10, window_bounds = array<i64: 16, 128>}, {pipeline_mode = #tpu.pipeline_mode<synchronous>, transform_indices = @transform_11, window_bounds = array<i64: 1, 128>}, {pipeline_mode = #tpu.pipeline_mode<synchronous>, transform_indices = @transform_12, window_bounds = array<i64: 1, 128>}, {transform_indices = @transform_13, window_bounds = array<i64: 2, 64, 128>}]} {
    %c0 = arith.constant 0 : index
    %c0_0 = arith.constant 0 : index
    %c0_1 = arith.constant 0 : index
    %c0_2 = arith.constant 0 : index
    %0 = vector.load %arg1[%c0, %c0_0, %c0_1, %c0_2] : memref<2x8x8x16xf32, #tpu.memory_space<vmem>>, vector<2x8x8x16xf32>
    %1 = vector.shape_cast %0 : vector<2x8x8x16xf32> to vector<128x16xf32>
    %2 = arith.truncf %1 : vector<128x16xf32> to vector<128x16xbf16>
    %c0_3 = arith.constant 0 : index
    %c0_4 = arith.constant 0 : index
    %3 = vector.load %arg2[%c0_3, %c0_4] : memref<16x32xbf16, #tpu.memory_space<vmem>>, vector<16x32xbf16>
    %cst = arith.constant dense<0.000000e+00> : vector<128x32xf32>
    %4 = tpu.matmul %2, %3, %cst {dimension_numbers = #tpu.dot_dimension_numbers<[1], [0], [0], [1], [0, 0, 1, 1], [], []>} : vector<128x16xbf16>, vector<16x32xbf16>, vector<128x32xf32> -> vector<128x32xf32>
    %c0_5 = arith.constant 0 : index
    %c0_6 = arith.constant 0 : index
    %5 = vector.load %arg3[%c0_5, %c0_6] : memref<1x32xf32, #tpu.memory_space<vmem>>, vector<1x32xf32>
    %6 = vector.broadcast %5 : vector<1x32xf32> to vector<128x32xf32>
    %7 = arith.mulf %4, %6 : vector<128x32xf32>
    %c0_7 = arith.constant 0 : index
    %c0_8 = arith.constant 0 : index
    %8 = vector.load %arg4[%c0_7, %c0_8] : memref<1x32xf32, #tpu.memory_space<vmem>>, vector<1x32xf32>
    %9 = vector.broadcast %8 : vector<1x32xf32> to vector<128x32xf32>
    %10 = arith.addf %7, %9 : vector<128x32xf32>
    %cst_9 = arith.constant 0.000000e+00 : f32
    %11 = vector.broadcast %cst_9 : f32 to vector<128x32xf32>
    %12 = arith.maximumf %10, %11 : vector<128x32xf32>
    %13 = vector.shape_cast %12 : vector<128x32xf32> to vector<2x8x8x32xf32>
    %cst_10 = arith.constant 0.000000e+00 : f32
    %14 = vector.broadcast %cst_10 : f32 to vector<2x10x10x32xf32>
    %c0_11 = arith.constant 0 : index
    %c0_12 = arith.constant 0 : index
    %c0_13 = arith.constant 0 : index
    %c0_14 = arith.constant 0 : index
    %15 = vector.load %arg15[%c0_11, %c0_12, %c0_13, %c0_14] : memref<2x10x10x32xf32, #tpu.memory_space<vmem>>, vector<2x10x10x32xf32>
    tpu.vector_store %arg15[%c0_11, %c0_12, %c0_13, %c0_14], %14 {strides = array<i32>} : memref<2x10x10x32xf32, #tpu.memory_space<vmem>>, vector<2x10x10x32xf32>,
    %c0_15 = arith.constant 0 : index
    %c1 = arith.constant 1 : index
    %c1_16 = arith.constant 1 : index
    %c0_17 = arith.constant 0 : index
    %16 = vector.load %arg15[%c0_15, %c1, %c1_16, %c0_17] : memref<2x10x10x32xf32, #tpu.memory_space<vmem>>, vector<2x8x8x32xf32>
    tpu.vector_store %arg15[%c0_15, %c1, %c1_16, %c0_17], %13 {strides = array<i32>} : memref<2x10x10x32xf32, #tpu.memory_space<vmem>>, vector<2x8x8x32xf32>,
    %cst_18 = arith.constant 0.000000e+00 : f32
    %17 = vector.broadcast %cst_18 : f32 to vector<128x32xf32>
    %c0_19 = arith.constant 0 : index
    %c0_20 = arith.constant 0 : index
    %c0_21 = arith.constant 0 : index
    %c0_22 = arith.constant 0 : index
    %18 = vector.load %arg15[%c0_19, %c0_20, %c0_21, %c0_22] : memref<2x10x10x32xf32, #tpu.memory_space<vmem>>, vector<2x8x8x32xf32>
    %19 = vector.shape_cast %18 : vector<2x8x8x32xf32> to vector<128x32xf32>
    %c0_23 = arith.constant 0 : index
    %c0_24 = arith.constant 0 : index
    %20 = vector.load %arg5[%c0_23, %c0_24] : memref<288x32xbf16, #tpu.memory_space<vmem>>, vector<32x32xbf16>
    %21 = arith.truncf %19 : vector<128x32xf32> to vector<128x32xbf16>
    %cst_25 = arith.constant dense<0.000000e+00> : vector<128x32xf32>
    %22 = tpu.matmul %21, %20, %cst_25 {dimension_numbers = #tpu.dot_dimension_numbers<[1], [0], [0], [1], [0, 0, 1, 1], [], []>} : vector<128x32xbf16>, vector<32x32xbf16>, vector<128x32xf32> -> vector<128x32xf32>
    %23 = arith.addf %17, %22 : vector<128x32xf32>
    %c0_26 = arith.constant 0 : index
    %c0_27 = arith.constant 0 : index
    %c1_28 = arith.constant 1 : index
    %c0_29 = arith.constant 0 : index
    %24 = vector.load %arg15[%c0_26, %c0_27, %c1_28, %c0_29] : memref<2x10x10x32xf32, #tpu.memory_space<vmem>>, vector<2x8x8x32xf32>
    %25 = vector.shape_cast %24 : vector<2x8x8x32xf32> to vector<128x32xf32>
    %c32 = arith.constant 32 : index
    %c0_30 = arith.constant 0 : index
    %26 = vector.load %arg5[%c32, %c0_30] : memref<288x32xbf16, #tpu.memory_space<vmem>>, vector<32x32xbf16>
    %27 = arith.truncf %25 : vector<128x32xf32> to vector<128x32xbf16>
    %cst_31 = arith.constant dense<0.000000e+00> : vector<128x32xf32>
    %28 = tpu.matmul %27, %26, %cst_31 {dimension_numbers = #tpu.dot_dimension_numbers<[1], [0], [0], [1], [0, 0, 1, 1], [], []>} : vector<128x32xbf16>, vector<32x32xbf16>, vector<128x32xf32> -> vector<128x32xf32>
    %29 = arith.addf %23, %28 : vector<128x32xf32>
    %c0_32 = arith.constant 0 : index
    %c0_33 = arith.constant 0 : index
    %c2 = arith.constant 2 : index
    %c0_34 = arith.constant 0 : index
    %30 = vector.load %arg15[%c0_32, %c0_33, %c2, %c0_34] : memref<2x10x10x32xf32, #tpu.memory_space<vmem>>, vector<2x8x8x32xf32>
    %31 = vector.shape_cast %30 : vector<2x8x8x32xf32> to vector<128x32xf32>
    %c64 = arith.constant 64 : index
    %c0_35 = arith.constant 0 : index
    %32 = vector.load %arg5[%c64, %c0_35] : memref<288x32xbf16, #tpu.memory_space<vmem>>, vector<32x32xbf16>
    %33 = arith.truncf %31 : vector<128x32xf32> to vector<128x32xbf16>
    %cst_36 = arith.constant dense<0.000000e+00> : vector<128x32xf32>
    %34 = tpu.matmul %33, %32, %cst_36 {dimension_numbers = #tpu.dot_dimension_numbers<[1], [0], [0], [1], [0, 0, 1, 1], [], []>} : vector<128x32xbf16>, vector<32x32xbf16>, vector<128x32xf32> -> vector<128x32xf32>
    %35 = arith.addf %29, %34 : vector<128x32xf32>
    %c0_37 = arith.constant 0 : index
    %c1_38 = arith.constant 1 : index
    %c0_39 = arith.constant 0 : index
    %c0_40 = arith.constant 0 : index
    %36 = vector.load %arg15[%c0_37, %c1_38, %c0_39, %c0_40] : memref<2x10x10x32xf32, #tpu.memory_space<vmem>>, vector<2x8x8x32xf32>
    %37 = vector.shape_cast %36 : vector<2x8x8x32xf32> to vector<128x32xf32>
    %c96 = arith.constant 96 : index
    %c0_41 = arith.constant 0 : index
    %38 = vector.load %arg5[%c96, %c0_41] : memref<288x32xbf16, #tpu.memory_space<vmem>>, vector<32x32xbf16>
    %39 = arith.truncf %37 : vector<128x32xf32> to vector<128x32xbf16>
    %cst_42 = arith.constant dense<0.000000e+00> : vector<128x32xf32>
    %40 = tpu.matmul %39, %38, %cst_42 {dimension_numbers = #tpu.dot_dimension_numbers<[1], [0], [0], [1], [0, 0, 1, 1], [], []>} : vector<128x32xbf16>, vector<32x32xbf16>, vector<128x32xf32> -> vector<128x32xf32>
    %41 = arith.addf %35, %40 : vector<128x32xf32>
    %c0_43 = arith.constant 0 : index
    %c1_44 = arith.constant 1 : index
    %c1_45 = arith.constant 1 : index
    %c0_46 = arith.constant 0 : index
    %42 = vector.load %arg15[%c0_43, %c1_44, %c1_45, %c0_46] : memref<2x10x10x32xf32, #tpu.memory_space<vmem>>, vector<2x8x8x32xf32>
    %43 = vector.shape_cast %42 : vector<2x8x8x32xf32> to vector<128x32xf32>
    %c128 = arith.constant 128 : index
    %c0_47 = arith.constant 0 : index
    %44 = vector.load %arg5[%c128, %c0_47] : memref<288x32xbf16, #tpu.memory_space<vmem>>, vector<32x32xbf16>
    %45 = arith.truncf %43 : vector<128x32xf32> to vector<128x32xbf16>
    %cst_48 = arith.constant dense<0.000000e+00> : vector<128x32xf32>
    %46 = tpu.matmul %45, %44, %cst_48 {dimension_numbers = #tpu.dot_dimension_numbers<[1], [0], [0], [1], [0, 0, 1, 1], [], []>} : vector<128x32xbf16>, vector<32x32xbf16>, vector<128x32xf32> -> vector<128x32xf32>
    %47 = arith.addf %41, %46 : vector<128x32xf32>
    %c0_49 = arith.constant 0 : index
    %c1_50 = arith.constant 1 : index
    %c2_51 = arith.constant 2 : index
    %c0_52 = arith.constant 0 : index
    %48 = vector.load %arg15[%c0_49, %c1_50, %c2_51, %c0_52] : memref<2x10x10x32xf32, #tpu.memory_space<vmem>>, vector<2x8x8x32xf32>
    %49 = vector.shape_cast %48 : vector<2x8x8x32xf32> to vector<128x32xf32>
    %c160 = arith.constant 160 : index
    %c0_53 = arith.constant 0 : index
    %50 = vector.load %arg5[%c160, %c0_53] : memref<288x32xbf16, #tpu.memory_space<vmem>>, vector<32x32xbf16>
    %51 = arith.truncf %49 : vector<128x32xf32> to vector<128x32xbf16>
    %cst_54 = arith.constant dense<0.000000e+00> : vector<128x32xf32>
    %52 = tpu.matmul %51, %50, %cst_54 {dimension_numbers = #tpu.dot_dimension_numbers<[1], [0], [0], [1], [0, 0, 1, 1], [], []>} : vector<128x32xbf16>, vector<32x32xbf16>, vector<128x32xf32> -> vector<128x32xf32>
    %53 = arith.addf %47, %52 : vector<128x32xf32>
    %c0_55 = arith.constant 0 : index
    %c2_56 = arith.constant 2 : index
    %c0_57 = arith.constant 0 : index
    %c0_58 = arith.constant 0 : index
    %54 = vector.load %arg15[%c0_55, %c2_56, %c0_57, %c0_58] : memref<2x10x10x32xf32, #tpu.memory_space<vmem>>, vector<2x8x8x32xf32>
    %55 = vector.shape_cast %54 : vector<2x8x8x32xf32> to vector<128x32xf32>
    %c192 = arith.constant 192 : index
    %c0_59 = arith.constant 0 : index
    %56 = vector.load %arg5[%c192, %c0_59] : memref<288x32xbf16, #tpu.memory_space<vmem>>, vector<32x32xbf16>
    %57 = arith.truncf %55 : vector<128x32xf32> to vector<128x32xbf16>
    %cst_60 = arith.constant dense<0.000000e+00> : vector<128x32xf32>
    %58 = tpu.matmul %57, %56, %cst_60 {dimension_numbers = #tpu.dot_dimension_numbers<[1], [0], [0], [1], [0, 0, 1, 1], [], []>} : vector<128x32xbf16>, vector<32x32xbf16>, vector<128x32xf32> -> vector<128x32xf32>
    %59 = arith.addf %53, %58 : vector<128x32xf32>
    %c0_61 = arith.constant 0 : index
    %c2_62 = arith.constant 2 : index
    %c1_63 = arith.constant 1 : index
    %c0_64 = arith.constant 0 : index
    %60 = vector.load %arg15[%c0_61, %c2_62, %c1_63, %c0_64] : memref<2x10x10x32xf32, #tpu.memory_space<vmem>>, vector<2x8x8x32xf32>
    %61 = vector.shape_cast %60 : vector<2x8x8x32xf32> to vector<128x32xf32>
    %c224 = arith.constant 224 : index
    %c0_65 = arith.constant 0 : index
    %62 = vector.load %arg5[%c224, %c0_65] : memref<288x32xbf16, #tpu.memory_space<vmem>>, vector<32x32xbf16>
    %63 = arith.truncf %61 : vector<128x32xf32> to vector<128x32xbf16>
    %cst_66 = arith.constant dense<0.000000e+00> : vector<128x32xf32>
    %64 = tpu.matmul %63, %62, %cst_66 {dimension_numbers = #tpu.dot_dimension_numbers<[1], [0], [0], [1], [0, 0, 1, 1], [], []>} : vector<128x32xbf16>, vector<32x32xbf16>, vector<128x32xf32> -> vector<128x32xf32>
    %65 = arith.addf %59, %64 : vector<128x32xf32>
    %c0_67 = arith.constant 0 : index
    %c2_68 = arith.constant 2 : index
    %c2_69 = arith.constant 2 : index
    %c0_70 = arith.constant 0 : index
    %66 = vector.load %arg15[%c0_67, %c2_68, %c2_69, %c0_70] : memref<2x10x10x32xf32, #tpu.memory_space<vmem>>, vector<2x8x8x32xf32>
    %67 = vector.shape_cast %66 : vector<2x8x8x32xf32> to vector<128x32xf32>
    %c256 = arith.constant 256 : index
    %c0_71 = arith.constant 0 : index
    %68 = vector.load %arg5[%c256, %c0_71] : memref<288x32xbf16, #tpu.memory_space<vmem>>, vector<32x32xbf16>
    %69 = arith.truncf %67 : vector<128x32xf32> to vector<128x32xbf16>
    %cst_72 = arith.constant dense<0.000000e+00> : vector<128x32xf32>
    %70 = tpu.matmul %69, %68, %cst_72 {dimension_numbers = #tpu.dot_dimension_numbers<[1], [0], [0], [1], [0, 0, 1, 1], [], []>} : vector<128x32xbf16>, vector<32x32xbf16>, vector<128x32xf32> -> vector<128x32xf32>
    %71 = arith.addf %65, %70 : vector<128x32xf32>
    %c0_73 = arith.constant 0 : index
    %c0_74 = arith.constant 0 : index
    %72 = vector.load %arg6[%c0_73, %c0_74] : memref<1x32xf32, #tpu.memory_space<vmem>>, vector<1x32xf32>
    %73 = vector.broadcast %72 : vector<1x32xf32> to vector<128x32xf32>
    %74 = arith.mulf %71, %73 : vector<128x32xf32>
    %c0_75 = arith.constant 0 : index
    %c0_76 = arith.constant 0 : index
    %75 = vector.load %arg7[%c0_75, %c0_76] : memref<1x32xf32, #tpu.memory_space<vmem>>, vector<1x32xf32>
    %76 = vector.broadcast %75 : vector<1x32xf32> to vector<128x32xf32>
    %77 = arith.addf %74, %76 : vector<128x32xf32>
    %cst_77 = arith.constant 0.000000e+00 : f32
    %78 = vector.broadcast %cst_77 : f32 to vector<128x32xf32>
    %79 = arith.maximumf %77, %78 : vector<128x32xf32>
    %80 = arith.truncf %79 : vector<128x32xf32> to vector<128x32xbf16>
    %c0_78 = arith.constant 0 : index
    %c0_79 = arith.constant 0 : index
    %81 = vector.load %arg8[%c0_78, %c0_79] : memref<32x128xbf16, #tpu.memory_space<vmem>>, vector<32x128xbf16>
    %cst_80 = arith.constant dense<0.000000e+00> : vector<128x128xf32>
    %82 = tpu.matmul %80, %81, %cst_80 {dimension_numbers = #tpu.dot_dimension_numbers<[1], [0], [0], [1], [0, 0, 1, 1], [], []>} : vector<128x32xbf16>, vector<32x128xbf16>, vector<128x128xf32> -> vector<128x128xf32>
    %c0_81 = arith.constant 0 : index
    %c0_82 = arith.constant 0 : index
    %83 = vector.load %arg9[%c0_81, %c0_82] : memref<1x128xf32, #tpu.memory_space<vmem>>, vector<1x128xf32>
    %84 = vector.broadcast %83 : vector<1x128xf32> to vector<128x128xf32>
    %85 = arith.mulf %82, %84 : vector<128x128xf32>
    %c0_83 = arith.constant 0 : index
    %c0_84 = arith.constant 0 : index
    %86 = vector.load %arg10[%c0_83, %c0_84] : memref<1x128xf32, #tpu.memory_space<vmem>>, vector<1x128xf32>
    %87 = vector.broadcast %86 : vector<1x128xf32> to vector<128x128xf32>
    %88 = arith.addf %85, %87 : vector<128x128xf32>
    %c0_85 = arith.constant 0 : index
    %c0_86 = arith.constant 0 : index
    %89 = vector.load %arg11[%c0_85, %c0_86] : memref<16x128xbf16, #tpu.memory_space<vmem>>, vector<16x128xbf16>
    %cst_87 = arith.constant dense<0.000000e+00> : vector<128x128xf32>
    %90 = tpu.matmul %2, %89, %cst_87 {dimension_numbers = #tpu.dot_dimension_numbers<[1], [0], [0], [1], [0, 0, 1, 1], [], []>} : vector<128x16xbf16>, vector<16x128xbf16>, vector<128x128xf32> -> vector<128x128xf32>
    %c0_88 = arith.constant 0 : index
    %c0_89 = arith.constant 0 : index
    %91 = vector.load %arg12[%c0_88, %c0_89] : memref<1x128xf32, #tpu.memory_space<vmem>>, vector<1x128xf32>
    %92 = vector.broadcast %91 : vector<1x128xf32> to vector<128x128xf32>
    %93 = arith.mulf %90, %92 : vector<128x128xf32>
    %c0_90 = arith.constant 0 : index
    %c0_91 = arith.constant 0 : index
    %94 = vector.load %arg13[%c0_90, %c0_91] : memref<1x128xf32, #tpu.memory_space<vmem>>, vector<1x128xf32>
    %95 = vector.broadcast %94 : vector<1x128xf32> to vector<128x128xf32>
    %96 = arith.addf %93, %95 : vector<128x128xf32>
    %97 = arith.addf %88, %96 : vector<128x128xf32>
    %cst_92 = arith.constant 0.000000e+00 : f32
    %98 = vector.broadcast %cst_92 : f32 to vector<128x128xf32>
    %99 = arith.maximumf %97, %98 : vector<128x128xf32>
    %100 = vector.shape_cast %99 : vector<128x128xf32> to vector<2x64x128xf32>
    %c0_93 = arith.constant 0 : index
    %c0_94 = arith.constant 0 : index
    %c0_95 = arith.constant 0 : index
    %101 = vector.load %arg14[%c0_93, %c0_94, %c0_95] : memref<2x64x128xf32, #tpu.memory_space<vmem>>, vector<2x64x128xf32>
    tpu.vector_store %arg14[%c0_93, %c0_94, %c0_95], %100 {strides = array<i32>} : memref<2x64x128xf32, #tpu.memory_space<vmem>>, vector<2x64x128xf32>,
    return
  }
  func.func @transform_0(%arg0: i32) -> (i32, i32, i32, i32) {
    %c0_i32 = arith.constant 0 : i32
    %c0_i32_0 = arith.constant 0 : i32
    %c0_i32_1 = arith.constant 0 : i32
    %c0_i32_2 = arith.constant 0 : i32
    return %arg0, %c0_i32, %c0_i32_0, %c0_i32_1 : i32, i32, i32, i32
  }
  func.func @transform_1(%arg0: i32) -> (i32, i32) {
    %c0_i32 = arith.constant 0 : i32
    %c0_i32_0 = arith.constant 0 : i32
    %c0_i32_1 = arith.constant 0 : i32
    return %c0_i32, %c0_i32_0 : i32, i32
  }
  func.func @transform_2(%arg0: i32) -> (i32, i32) {
    %c0_i32 = arith.constant 0 : i32
    %c0_i32_0 = arith.constant 0 : i32
    %c0_i32_1 = arith.constant 0 : i32
    return %c0_i32, %c0_i32_0 : i32, i32
  }
  func.func @transform_3(%arg0: i32) -> (i32, i32) {
    %c0_i32 = arith.constant 0 : i32
    %c0_i32_0 = arith.constant 0 : i32
    %c0_i32_1 = arith.constant 0 : i32
    return %c0_i32, %c0_i32_0 : i32, i32
  }
  func.func @transform_4(%arg0: i32) -> (i32, i32) {
    %c0_i32 = arith.constant 0 : i32
    %c0_i32_0 = arith.constant 0 : i32
    %c0_i32_1 = arith.constant 0 : i32
    return %c0_i32, %c0_i32_0 : i32, i32
  }
  func.func @transform_5(%arg0: i32) -> (i32, i32) {
    %c0_i32 = arith.constant 0 : i32
    %c0_i32_0 = arith.constant 0 : i32
    %c0_i32_1 = arith.constant 0 : i32
    return %c0_i32, %c0_i32_0 : i32, i32
  }
  func.func @transform_6(%arg0: i32) -> (i32, i32) {
    %c0_i32 = arith.constant 0 : i32
    %c0_i32_0 = arith.constant 0 : i32
    %c0_i32_1 = arith.constant 0 : i32
    return %c0_i32, %c0_i32_0 : i32, i32
  }
  func.func @transform_7(%arg0: i32) -> (i32, i32) {
    %c0_i32 = arith.constant 0 : i32
    %c0_i32_0 = arith.constant 0 : i32
    %c0_i32_1 = arith.constant 0 : i32
    return %c0_i32, %c0_i32_0 : i32, i32
  }
  func.func @transform_8(%arg0: i32) -> (i32, i32) {
    %c0_i32 = arith.constant 0 : i32
    %c0_i32_0 = arith.constant 0 : i32
    %c0_i32_1 = arith.constant 0 : i32
    return %c0_i32, %c0_i32_0 : i32, i32
  }
  func.func @transform_9(%arg0: i32) -> (i32, i32) {
    %c0_i32 = arith.constant 0 : i32
    %c0_i32_0 = arith.constant 0 : i32
    %c0_i32_1 = arith.constant 0 : i32
    return %c0_i32, %c0_i32_0 : i32, i32
  }
  func.func @transform_10(%arg0: i32) -> (i32, i32) {
    %c0_i32 = arith.constant 0 : i32
    %c0_i32_0 = arith.constant 0 : i32
    %c0_i32_1 = arith.constant 0 : i32
    return %c0_i32, %c0_i32_0 : i32, i32
  }
  func.func @transform_11(%arg0: i32) -> (i32, i32) {
    %c0_i32 = arith.constant 0 : i32
    %c0_i32_0 = arith.constant 0 : i32
    %c0_i32_1 = arith.constant 0 : i32
    return %c0_i32, %c0_i32_0 : i32, i32
  }
  func.func @transform_12(%arg0: i32) -> (i32, i32) {
    %c0_i32 = arith.constant 0 : i32
    %c0_i32_0 = arith.constant 0 : i32
    %c0_i32_1 = arith.constant 0 : i32
    return %c0_i32, %c0_i32_0 : i32, i32
  }
  func.func @transform_13(%arg0: i32) -> (i32, i32, i32) {
    %c0_i32 = arith.constant 0 : i32
    %c0_i32_0 = arith.constant 0 : i32
    %c0_i32_1 = arith.constant 0 : i32
    return %arg0, %c0_i32, %c0_i32_0 : i32, i32, i32
  }
}

</mosaic_0001>

<llo_original>
// kernel: tpu_custom_call.1
$region0: #{tpu_custom_call.1}
  #allocation0 [shape = 'u32[]', space=smem, size = 0x4, offset = 0x4, fixed_abs, tag = 'smem constant byte address 0x4 - core index']
  #allocation1 [shape = 'u32[144,128]{1,0:T(1,128)}', space=vmem, size = 0x12000, scoped, tag = 'internal scratch']
  %s0 = inlined_call_operand.hbm [shape: f32[8,8,8,16], index: 0, kind: input, shape index: {}]
  %s1 = inlined_call_operand.vmem [shape: bf16[16,32], index: 1, kind: input, shape index: {}]
  %s2 = inlined_call_operand.vmem [shape: f32[1,32], index: 2, kind: input, shape index: {}]
  %s3 = inlined_call_operand.vmem [shape: f32[1,32], index: 3, kind: input, shape index: {}]
  %s4 = inlined_call_operand.vmem [shape: bf16[288,32], index: 4, kind: input, shape index: {}]
  %s5 = inlined_call_operand.vmem [shape: f32[1,32], index: 5, kind: input, shape index: {}]
  %s6 = inlined_call_operand.vmem [shape: f32[1,32], index: 6, kind: input, shape index: {}]
  %s7 = inlined_call_operand.vmem [shape: bf16[32,128], index: 7, kind: input, shape index: {}]
  %s8 = inlined_call_operand.vmem [shape: f32[1,128], index: 8, kind: input, shape index: {}]
  %s9 = inlined_call_operand.vmem [shape: f32[1,128], index: 9, kind: input, shape index: {}]
  %s10 = inlined_call_operand.vmem [shape: bf16[16,128], index: 10, kind: input, shape index: {}]
  %s11 = inlined_call_operand.vmem [shape: f32[1,128], index: 11, kind: input, shape index: {}]
  %s12 = inlined_call_operand.vmem [shape: f32[1,128], index: 12, kind: input, shape index: {}]
  %s13 = inlined_call_operand.hbm [shape: f32[8,64,128], index: 13, kind: output, shape index: {}]
  %s14 = sld [smem:[#allocation0]]
  $region89: #{tpu_custom_call.1} parent=0
    _
  %s16 = ssub.s32 1, %s14
  %s17 = scalar_select 0, %s16, %s14
  $region1: #{tpu_custom_call.1} parent=0
    #allocation2 [shape = 'u8[131072]{0}', space=vmem, size = 0x20000, scoped, tag = 'input window, operand 0']
    #allocation3 [shape = 's32[2]{0}', space=sflag, size = 0x8, scoped, tag = 'scoped memory for tpu_custom_call.1']
    #allocation4 [shape = 's32[2]{0}', space=sflag, size = 0x8, scoped, tag = 'scoped memory for tpu_custom_call.1']
    #allocation5 [shape = 'u8[131072]{0}', space=vmem, size = 0x20000, scoped, tag = 'output window, operand 0']
    %18 = vsyncpa [#allocation3], 0
    %s19 = scalar_lea.sflag [#allocation3], 1
    %20 = vsyncpa %s19, 0
    %21 = vsyncpa [#allocation4], 0
    %s22 = scalar_lea.sflag [#allocation4], 1
    %23 = vsyncpa %s22, 0
    loop: start=0, step=1, limit=6
    $region2: #{tpu_custom_call.1} parent=1 // loop_pre_header
      _
    $region3: #{tpu_custom_call.1} parent=1 // loop_header
      %s25 = sphi 0, %s29
      %p26 = scmp.ge.s32.totalorder %s25, 6
      %s35 = sphi 0, %s37
      %s38 = sphi 0, %s35
      %s39 = sphi 0, %s38
      %s55 = sphi 0, %s39
      %s59 = sphi 0, %s59
      %s61 = sphi 0, %s59
      %s62 = sphi 0, %s61
      %s76 = sphi 0, %s62
      %s80 = sphi 0, %s80
      %s82 = sphi 0, %s80
      %s83 = sphi 0, %s82
      %s97 = sphi 0, %s83
      %s101 = sphi 0, %s101
      %s103 = sphi 0, %s101
      %s104 = sphi 0, %s103
      %s118 = sphi 0, %s104
      %s122 = sphi 0, %s122
      %s124 = sphi 0, %s122
      %s125 = sphi 0, %s124
      %s139 = sphi 0, %s125
      %s143 = sphi 0, %s143
      %s145 = sphi 0, %s143
      %s146 = sphi 0, %s145
      %s160 = sphi 0, %s146
      %s164 = sphi 0, %s164
      %s166 = sphi 0, %s164
      %s167 = sphi 0, %s166
      %s181 = sphi 0, %s167
      %s185 = sphi 0, %s185
      %s187 = sphi 0, %s185
      %s188 = sphi 0, %s187
      %s202 = sphi 0, %s188
      %s206 = sphi 0, %s206
      %s208 = sphi 0, %s206
      %s209 = sphi 0, %s208
      %s223 = sphi 0, %s209
      %s227 = sphi 0, %s227
      %s229 = sphi 0, %s227
      %s230 = sphi 0, %s229
      %s244 = sphi 0, %s230
      %s248 = sphi 0, %s248
      %s250 = sphi 0, %s248
      %s251 = sphi 0, %s250
      %s265 = sphi 0, %s251
      %s269 = sphi 0, %s269
      %s271 = sphi 0, %s269
      %s272 = sphi 0, %s271
      %s286 = sphi 0, %s272
      %s290 = sphi 0, %s290
      %s292 = sphi 0, %s290
      %s293 = sphi 0, %s292
      %s307 = sphi 0, %s293
      %s313 = sphi 0, %s315
      %s316 = sphi 0, %s313
      %s317 = sphi 0, %s316
      %s333 = sphi 0, %s317
    $region4: #{tpu_custom_call.1} parent=1 // loop_header_branch
      %28 = sbr.rel (%p26) target = $region8
    $region5: #{tpu_custom_call.1} parent=1 // loop_body
      %s30 = ssub.s32 %s25, 1
      %s31 = ssub.s32 %s25, 2
      %s32 = sadd.s32 %s25, 1
      %s33 = ssub.s32 %s25, %s32
      %p34 = scmp.eq.s32.totalorder %s33, 0
      %s36 = sadd.s32 %s35, 1
      %s37 = scalar_select %p34, %s35, %s36
      %p40 = pneg %p34
      %p41 = scmp.eq.s32.totalorder %s25, 3
      %p42 = por %p40, %p41
      %p43 = scmp.ne.s32.totalorder %s35, %s38
      %p44 = scmp.eq.s32.totalorder %s25, 0
      %p45 = por %p43, %p44
      %p46 = scmp.ne.s32.totalorder %s35, %s38
      %p47 = scmp.eq.s32.totalorder %s30, 3
      %p48 = por %p46, %p47
      %p49 = scmp.ne.s32.totalorder %s38, %s39
      %p50 = scmp.eq.s32.totalorder %s30, 0
      %p51 = por %p49, %p50
      %p52 = scmp.ne.s32.totalorder %s38, %s39
      %p53 = scmp.eq.s32.totalorder %s31, 3
      %p54 = por %p52, %p53
      %p56 = scmp.ne.s32.totalorder %s39, %s55
      %p57 = scmp.eq.s32.totalorder %s31, 0
      %p58 = por %p56, %p57
      %s60 = sadd.s32 %s59, 1
      %p63 = scmp.eq.s32.totalorder %s25, 3
      %p64 = scmp.ne.s32.totalorder %s59, %s61
      %p65 = scmp.eq.s32.totalorder %s25, 0
      %p66 = por %p64, %p65
      %p67 = scmp.ne.s32.totalorder %s59, %s61
      %p68 = scmp.eq.s32.totalorder %s30, 3
      %p69 = por %p67, %p68
      %p70 = scmp.ne.s32.totalorder %s61, %s62
      %p71 = scmp.eq.s32.totalorder %s30, 0
      %p72 = por %p70, %p71
      %p73 = scmp.ne.s32.totalorder %s61, %s62
      %p74 = scmp.eq.s32.totalorder %s31, 3
      %p75 = por %p73, %p74
      %p77 = scmp.ne.s32.totalorder %s62, %s76
      %p78 = scmp.eq.s32.totalorder %s31, 0
      %p79 = por %p77, %p78
      %s81 = sadd.s32 %s80, 1
      %p84 = scmp.eq.s32.totalorder %s25, 3
      %p85 = scmp.ne.s32.totalorder %s80, %s82
      %p86 = scmp.eq.s32.totalorder %s25, 0
      %p87 = por %p85, %p86
      %p88 = scmp.ne.s32.totalorder %s80, %s82
      %p89 = scmp.eq.s32.totalorder %s30, 3
      %p90 = por %p88, %p89
      %p91 = scmp.ne.s32.totalorder %s82, %s83
      %p92 = scmp.eq.s32.totalorder %s30, 0
      %p93 = por %p91, %p92
      %p94 = scmp.ne.s32.totalorder %s82, %s83
      %p95 = scmp.eq.s32.totalorder %s31, 3
      %p96 = por %p94, %p95
      %p98 = scmp.ne.s32.totalorder %s83, %s97
      %p99 = scmp.eq.s32.totalorder %s31, 0
      %p100 = por %p98, %p99
      %s102 = sadd.s32 %s101, 1
      %p105 = scmp.eq.s32.totalorder %s25, 3
      %p106 = scmp.ne.s32.totalorder %s101, %s103
      %p107 = scmp.eq.s32.totalorder %s25, 0
      %p108 = por %p106, %p107
      %p109 = scmp.ne.s32.totalorder %s101, %s103
      %p110 = scmp.eq.s32.totalorder %s30, 3
      %p111 = por %p109, %p110
      %p112 = scmp.ne.s32.totalorder %s103, %s104
      %p113 = scmp.eq.s32.totalorder %s30, 0
      %p114 = por %p112, %p113
      %p115 = scmp.ne.s32.totalorder %s103, %s104
      %p116 = scmp.eq.s32.totalorder %s31, 3
      %p117 = por %p115, %p116
      %p119 = scmp.ne.s32.totalorder %s104, %s118
      %p120 = scmp.eq.s32.totalorder %s31, 0
      %p121 = por %p119, %p120
      %s123 = sadd.s32 %s122, 1
      %p126 = scmp.eq.s32.totalorder %s25, 3
      %p127 = scmp.ne.s32.totalorder %s122, %s124
      %p128 = scmp.eq.s32.totalorder %s25, 0
      %p129 = por %p127, %p128
      %p130 = scmp.ne.s32.totalorder %s122, %s124
      %p131 = scmp.eq.s32.totalorder %s30, 3
      %p132 = por %p130, %p131
      %p133 = scmp.ne.s32.totalorder %s124, %s125
      %p134 = scmp.eq.s32.totalorder %s30, 0
      %p135 = por %p133, %p134
      %p136 = scmp.ne.s32.totalorder %s124, %s125
      %p137 = scmp.eq.s32.totalorder %s31, 3
      %p138 = por %p136, %p137
      %p140 = scmp.ne.s32.totalorder %s125, %s139
      %p141 = scmp.eq.s32.totalorder %s31, 0
      %p142 = por %p140, %p141
      %s144 = sadd.s32 %s143, 1
      %p147 = scmp.eq.s32.totalorder %s25, 3
      %p148 = scmp.ne.s32.totalorder %s143, %s145
      %p149 = scmp.eq.s32.totalorder %s25, 0
      %p150 = por %p148, %p149
      %p151 = scmp.ne.s32.totalorder %s143, %s145
      %p152 = scmp.eq.s32.totalorder %s30, 3
      %p153 = por %p151, %p152
      %p154 = scmp.ne.s32.totalorder %s145, %s146
      %p155 = scmp.eq.s32.totalorder %s30, 0
      %p156 = por %p154, %p155
      %p157 = scmp.ne.s32.totalorder %s145, %s146
      %p158 = scmp.eq.s32.totalorder %s31, 3
      %p159 = por %p157, %p158
      %p161 = scmp.ne.s32.totalorder %s146, %s160
      %p162 = scmp.eq.s32.totalorder %s31, 0
      %p163 = por %p161, %p162
      %s165 = sadd.s32 %s164, 1
      %p168 = scmp.eq.s32.totalorder %s25, 3
      %p169 = scmp.ne.s32.totalorder %s164, %s166
      %p170 = scmp.eq.s32.totalorder %s25, 0
      %p171 = por %p169, %p170
      %p172 = scmp.ne.s32.totalorder %s164, %s166
      %p173 = scmp.eq.s32.totalorder %s30, 3
      %p174 = por %p172, %p173
      %p175 = scmp.ne.s32.totalorder %s166, %s167
      %p176 = scmp.eq.s32.totalorder %s30, 0
      %p177 = por %p175, %p176
      %p178 = scmp.ne.s32.totalorder %s166, %s167
      %p179 = scmp.eq.s32.totalorder %s31, 3
      %p180 = por %p178, %p179
      %p182 = scmp.ne.s32.totalorder %s167, %s181
      %p183 = scmp.eq.s32.totalorder %s31, 0
      %p184 = por %p182, %p183
      %s186 = sadd.s32 %s185, 1
      %p189 = scmp.eq.s32.totalorder %s25, 3
      %p190 = scmp.ne.s32.totalorder %s185, %s187
      %p191 = scmp.eq.s32.totalorder %s25, 0
      %p192 = por %p190, %p191
      %p193 = scmp.ne.s32.totalorder %s185, %s187
      %p194 = scmp.eq.s32.totalorder %s30, 3
      %p195 = por %p193, %p194
      %p196 = scmp.ne.s32.totalorder %s187, %s188
      %p197 = scmp.eq.s32.totalorder %s30, 0
      %p198 = por %p196, %p197
      %p199 = scmp.ne.s32.totalorder %s187, %s188
      %p200 = scmp.eq.s32.totalorder %s31, 3
      %p201 = por %p199, %p200
      %p203 = scmp.ne.s32.totalorder %s188, %s202
      %p204 = scmp.eq.s32.totalorder %s31, 0
      %p205 = por %p203, %p204
      %s207 = sadd.s32 %s206, 1
      %p210 = scmp.eq.s32.totalorder %s25, 3
      %p211 = scmp.ne.s32.totalorder %s206, %s208
      %p212 = scmp.eq.s32.totalorder %s25, 0
      %p213 = por %p211, %p212
      %p214 = scmp.ne.s32.totalorder %s206, %s208
      %p215 = scmp.eq.s32.totalorder %s30, 3
      %p216 = por %p214, %p215
      %p217 = scmp.ne.s32.totalorder %s208, %s209
      %p218 = scmp.eq.s32.totalorder %s30, 0
      %p219 = por %p217, %p218
      %p220 = scmp.ne.s32.totalorder %s208, %s209
      %p221 = scmp.eq.s32.totalorder %s31, 3
      %p222 = por %p220, %p221
      %p224 = scmp.ne.s32.totalorder %s209, %s223
      %p225 = scmp.eq.s32.totalorder %s31, 0
      %p226 = por %p224, %p225
      %s228 = sadd.s32 %s227, 1
      %p231 = scmp.eq.s32.totalorder %s25, 3
      %p232 = scmp.ne.s32.totalorder %s227, %s229
      %p233 = scmp.eq.s32.totalorder %s25, 0
      %p234 = por %p232, %p233
      %p235 = scmp.ne.s32.totalorder %s227, %s229
      %p236 = scmp.eq.s32.totalorder %s30, 3
      %p237 = por %p235, %p236
      %p238 = scmp.ne.s32.totalorder %s229, %s230
      %p239 = scmp.eq.s32.totalorder %s30, 0
      %p240 = por %p238, %p239
      %p241 = scmp.ne.s32.totalorder %s229, %s230
      %p242 = scmp.eq.s32.totalorder %s31, 3
      %p243 = por %p241, %p242
      %p245 = scmp.ne.s32.totalorder %s230, %s244
      %p246 = scmp.eq.s32.totalorder %s31, 0
      %p247 = por %p245, %p246
      %s249 = sadd.s32 %s248, 1
      %p252 = scmp.eq.s32.totalorder %s25, 3
      %p253 = scmp.ne.s32.totalorder %s248, %s250
      %p254 = scmp.eq.s32.totalorder %s25, 0
      %p255 = por %p253, %p254
      %p256 = scmp.ne.s32.totalorder %s248, %s250
      %p257 = scmp.eq.s32.totalorder %s30, 3
      %p258 = por %p256, %p257
      %p259 = scmp.ne.s32.totalorder %s250, %s251
      %p260 = scmp.eq.s32.totalorder %s30, 0
      %p261 = por %p259, %p260
      %p262 = scmp.ne.s32.totalorder %s250, %s251
      %p263 = scmp.eq.s32.totalorder %s31, 3
      %p264 = por %p262, %p263
      %p266 = scmp.ne.s32.totalorder %s251, %s265
      %p267 = scmp.eq.s32.totalorder %s31, 0
      %p268 = por %p266, %p267
      %s270 = sadd.s32 %s269, 1
      %p273 = scmp.eq.s32.totalorder %s25, 3
      %p274 = scmp.ne.s32.totalorder %s269, %s271
      %p275 = scmp.eq.s32.totalorder %s25, 0
      %p276 = por %p274, %p275
      %p277 = scmp.ne.s32.totalorder %s269, %s271
      %p278 = scmp.eq.s32.totalorder %s30, 3
      %p279 = por %p277, %p278
      %p280 = scmp.ne.s32.totalorder %s271, %s272
      %p281 = scmp.eq.s32.totalorder %s30, 0
      %p282 = por %p280, %p281
      %p283 = scmp.ne.s32.totalorder %s271, %s272
      %p284 = scmp.eq.s32.totalorder %s31, 3
      %p285 = por %p283, %p284
      %p287 = scmp.ne.s32.totalorder %s272, %s286
      %p288 = scmp.eq.s32.totalorder %s31, 0
      %p289 = por %p287, %p288
      %s291 = sadd.s32 %s290, 1
      %p294 = scmp.eq.s32.totalorder %s25, 3
      %p295 = scmp.ne.s32.totalorder %s290, %s292
      %p296 = scmp.eq.s32.totalorder %s25, 0
      %p297 = por %p295, %p296
      %p298 = scmp.ne.s32.totalorder %s290, %s292
      %p299 = scmp.eq.s32.totalorder %s30, 3
      %p300 = por %p298, %p299
      %p301 = scmp.ne.s32.totalorder %s292, %s293
      %p302 = scmp.eq.s32.totalorder %s30, 0
      %p303 = por %p301, %p302
      %p304 = scmp.ne.s32.totalorder %s292, %s293
      %p305 = scmp.eq.s32.totalorder %s31, 3
      %p306 = por %p304, %p305
      %p308 = scmp.ne.s32.totalorder %s293, %s307
      %p309 = scmp.eq.s32.totalorder %s31, 0
      %p310 = por %p308, %p309
      %s311 = ssub.s32 %s25, %s32
      %p312 = scmp.eq.s32.totalorder %s311, 0
      %s314 = sadd.s32 %s313, 1
      %s315 = scalar_select %p312, %s313, %s314
      %p318 = pneg %p312
      %p319 = scmp.eq.s32.totalorder %s25, 3
      %p320 = por %p318, %p319
      %p321 = scmp.ne.s32.totalorder %s313, %s316
      %p322 = scmp.eq.s32.totalorder %s25, 0
      %p323 = por %p321, %p322
      %p324 = scmp.ne.s32.totalorder %s313, %s316
      %p325 = scmp.eq.s32.totalorder %s30, 3
      %p326 = por %p324, %p325
      %p327 = scmp.ne.s32.totalorder %s316, %s317
      %p328 = scmp.eq.s32.totalorder %s30, 0
      %p329 = por %p327, %p328
      %p330 = scmp.ne.s32.totalorder %s316, %s317
      %p331 = scmp.eq.s32.totalorder %s31, 3
      %p332 = por %p330, %p331
      %p334 = scmp.ne.s32.totalorder %s317, %s333
      %p335 = scmp.eq.s32.totalorder %s31, 0
      %p336 = por %p334, %p335
      %p337 = scmp.le.s32.totalorder 1, %s25
      %p338 = scmp.lt.s32.totalorder %s25, 5
      %p339 = pnand %p337, %p338
      %p340 = pneg %p339
      // Predicated region
      $region9: #{tpu_custom_call.1} parent=5 // pred_check
        _
      $region10: #{tpu_custom_call.1} parent=5 // pred_check_branch
        %342 = sbr.rel (%p339) target = $region12
      $region11: #{tpu_custom_call.1} parent=5 // pred_region
        %s343 = ssub.s32 %s25, 1
        // Predicated region
        $region13: #{tpu_custom_call.1} parent=11 // pred_check
          %p344 = pneg %p72
        $region14: #{tpu_custom_call.1} parent=11 // pred_check_branch
          %346 = sbr.rel (%p344) target = $region16
        $region15: #{tpu_custom_call.1} parent=11 // pred_region
          _
        $region16: #{tpu_custom_call.1} parent=11 // pred_fallthru
          _
        // Predicated region
        $region17: #{tpu_custom_call.1} parent=11 // pred_check
          %p347 = pneg %p93
        $region18: #{tpu_custom_call.1} parent=11 // pred_check_branch
          %349 = sbr.rel (%p347) target = $region20
        $region19: #{tpu_custom_call.1} parent=11 // pred_region
          _
        $region20: #{tpu_custom_call.1} parent=11 // pred_fallthru
          _
        // Predicated region
        $region21: #{tpu_custom_call.1} parent=11 // pred_check
          %p350 = pneg %p114
        $region22: #{tpu_custom_call.1} parent=11 // pred_check_branch
          %352 = sbr.rel (%p350) target = $region24
        $region23: #{tpu_custom_call.1} parent=11 // pred_region
          _
        $region24: #{tpu_custom_call.1} parent=11 // pred_fallthru
          _
        // Predicated region
        $region25: #{tpu_custom_call.1} parent=11 // pred_check
          %p353 = pneg %p135
        $region26: #{tpu_custom_call.1} parent=11 // pred_check_branch
          %355 = sbr.rel (%p353) target = $region28
        $region27: #{tpu_custom_call.1} parent=11 // pred_region
          _
        $region28: #{tpu_custom_call.1} parent=11 // pred_fallthru
          _
        // Predicated region
        $region29: #{tpu_custom_call.1} parent=11 // pred_check
          %p356 = pneg %p156
        $region30: #{tpu_custom_call.1} parent=11 // pred_check_branch
          %358 = sbr.rel (%p356) target = $region32
        $region31: #{tpu_custom_call.1} parent=11 // pred_region
          _
        $region32: #{tpu_custom_call.1} parent=11 // pred_fallthru
          _
        // Predicated region
        $region33: #{tpu_custom_call.1} parent=11 // pred_check
          %p359 = pneg %p177
        $region34: #{tpu_custom_call.1} parent=11 // pred_check_branch
          %361 = sbr.rel (%p359) target = $region36
        $region35: #{tpu_custom_call.1} parent=11 // pred_region
          _
        $region36: #{tpu_custom_call.1} parent=11 // pred_fallthru
          _
        // Predicated region
        $region37: #{tpu_custom_call.1} parent=11 // pred_check
          %p362 = pneg %p198
        $region38: #{tpu_custom_call.1} parent=11 // pred_check_branch
          %364 = sbr.rel (%p362) target = $region40
        $region39: #{tpu_custom_call.1} parent=11 // pred_region
          _
        $region40: #{tpu_custom_call.1} parent=11 // pred_fallthru
          _
        // Predicated region
        $region41: #{tpu_custom_call.1} parent=11 // pred_check
          %p365 = pneg %p219
        $region42: #{tpu_custom_call.1} parent=11 // pred_check_branch
          %367 = sbr.rel (%p365) target = $region44
        $region43: #{tpu_custom_call.1} parent=11 // pred_region
          _
        $region44: #{tpu_custom_call.1} parent=11 // pred_fallthru
          _
        // Predicated region
        $region45: #{tpu_custom_call.1} parent=11 // pred_check
          %p368 = pneg %p240
        $region46: #{tpu_custom_call.1} parent=11 // pred_check_branch
          %370 = sbr.rel (%p368) target = $region48
        $region47: #{tpu_custom_call.1} parent=11 // pred_region
          _
        $region48: #{tpu_custom_call.1} parent=11 // pred_fallthru
          _
        // Predicated region
        $region49: #{tpu_custom_call.1} parent=11 // pred_check
          %p371 = pneg %p261
        $region50: #{tpu_custom_call.1} parent=11 // pred_check_branch
          %373 = sbr.rel (%p371) target = $region52
        $region51: #{tpu_custom_call.1} parent=11 // pred_region
          _
        $region52: #{tpu_custom_call.1} parent=11 // pred_fallthru
          _
        // Predicated region
        $region53: #{tpu_custom_call.1} parent=11 // pred_check
          %p374 = pneg %p282
        $region54: #{tpu_custom_call.1} parent=11 // pred_check_branch
          %376 = sbr.rel (%p374) target = $region56
        $region55: #{tpu_custom_call.1} parent=11 // pred_region
          _
        $region56: #{tpu_custom_call.1} parent=11 // pred_fallthru
          _
        // Predicated region
        $region57: #{tpu_custom_call.1} parent=11 // pred_check
          %p377 = pneg %p303
        $region58: #{tpu_custom_call.1} parent=11 // pred_check_branch
          %379 = sbr.rel (%p377) target = $region60
        $region59: #{tpu_custom_call.1} parent=11 // pred_region
          _
        $region60: #{tpu_custom_call.1} parent=11 // pred_fallthru
          _
      $region12: #{tpu_custom_call.1} parent=5 // pred_fallthru
        _
      %p380 = scmp.lt.s32.totalorder %s25, 4
      // Predicated region
      $region61: #{tpu_custom_call.1} parent=5 // pred_check
        %p381 = pneg %p380
      $region62: #{tpu_custom_call.1} parent=5 // pred_check_branch
        %383 = sbr.rel (%p381) target = $region64
      $region63: #{tpu_custom_call.1} parent=5 // pred_region
        // Predicated region
        $region65: #{tpu_custom_call.1} parent=63 // pred_check
          %p384 = pneg %p45
        $region66: #{tpu_custom_call.1} parent=63 // pred_check_branch
          %386 = sbr.rel (%p384) target = $region68
        $region67: #{tpu_custom_call.1} parent=63 // pred_region
          %s387 = sand.u32 %s35, 1
          %s388 = scalar_lea.sflag [#allocation3], %s387
          %s389 = sand.u32 %s35, 1
          %s390 = smul.addr %s389, 128
          %s391 = scalar_lea.vmem [#allocation2], %s390
          %s392 = smul.u32 2, %s25
          %s394 = ssub.s32 2048, 2048
          %395 = vsyncadd %s388, %s394
          %s396 = smul.addr %s392, 8
          %s397 = smul.addr %s396, 128
          %s398 = scalar_lea.hbm %s0, %s397
          %s399 = sshll.u32 %s391, 4
          %s400 = int_to_ptr.vmem [resolvable:$true] %s399
          %405 = dma.hbm_to_vmem [thread:$0]  %s398, 2048, %s400, %s388, 128, 128, 8
        $region68: #{tpu_custom_call.1} parent=63 // pred_fallthru
          _
      $region64: #{tpu_custom_call.1} parent=5 // pred_fallthru
        _
      %p406 = scmp.le.s32.totalorder 1, %s25
      %p407 = scmp.lt.s32.totalorder %s25, 5
      %p408 = pnand %p406, %p407
      %p409 = pneg %p408
      // Predicated region
      $region69: #{tpu_custom_call.1} parent=5 // pred_check
        _
      $region70: #{tpu_custom_call.1} parent=5 // pred_check_branch
        %411 = sbr.rel (%p408) target = $region72
      $region71: #{tpu_custom_call.1} parent=5 // pred_region
        %s412 = ssub.s32 %s25, 1
        %s413 = sand.u32 %s38, 1
        %s414 = scalar_lea.sflag [#allocation3], %s413
        %s415 = sand.u32 %s38, 1
        %s416 = smul.addr %s415, 128
        %s417 = scalar_lea.vmem [#allocation2], %s416
        // Predicated region
        $region73: #{tpu_custom_call.1} parent=71 // pred_check
          %p418 = pneg %p51
        $region74: #{tpu_custom_call.1} parent=71 // pred_check_branch
          %420 = sbr.rel (%p418) target = $region76
        $region75: #{tpu_custom_call.1} parent=71 // pred_region
          %421 = dma.done %s414, 2048
        $region76: #{tpu_custom_call.1} parent=71 // pred_fallthru
          _
        %s422 = sand.u32 %s38, 1
        %s423 = scalar_lea.sflag [#allocation3], %s422
        %s424 = sand.u32 %s38, 1
        %s425 = smul.addr %s424, 128
        %s426 = scalar_lea.vmem [#allocation2], %s425
        %p427 = pneg %p51
        %p428 = pneg %p48
        %p429 = pneg %p72
        %p430 = pneg %p69
        %p431 = pneg %p93
        %p432 = pneg %p90
        %p433 = pneg %p114
        %p434 = pneg %p111
        %p435 = pneg %p135
        %p436 = pneg %p132
        %p437 = pneg %p156
        %p438 = pneg %p153
        %p439 = pneg %p177
        %p440 = pneg %p174
        %p441 = pneg %p198
        %p442 = pneg %p195
        %p443 = pneg %p219
        %p444 = pneg %p216
        %p445 = pneg %p240
        %p446 = pneg %p237
        %p447 = pneg %p261
        %p448 = pneg %p258
        %p449 = pneg %p282
        %p450 = pneg %p279
        %p451 = pneg %p303
        %p452 = pneg %p300
        %p453 = pneg %p329
        %p454 = pneg %p326
        %s455 = sand.u32 %s316, 1
        %s456 = scalar_lea.sflag [#allocation4], %s455
        %s457 = sand.u32 %s316, 1
        %s458 = smul.addr %s457, 128
        %s459 = scalar_lea.vmem [#allocation5], %s458
        %s460 = smul.u32 2, %s30
        %s461 = smul.u32 2, %s30
        %v463 = vld [vmem:[%s417] sm:$0xff]
        %v464 = vld [vmem:[%s417 + $0x8] sm:$0xff]
        %v465 = vld [vmem:[%s417 + $0x10] sm:$0xff]
        %v466 = vld [vmem:[%s417 + $0x18] sm:$0xff]
        %v467 = vld [vmem:[%s417 + $0x20] sm:$0xff]
        %v468 = vld [vmem:[%s417 + $0x28] sm:$0xff]
        %v469 = vld [vmem:[%s417 + $0x30] sm:$0xff]
        %v470 = vld [vmem:[%s417 + $0x38] sm:$0xff]
        %v471 = vld [vmem:[%s417 + $0x40] sm:$0xff]
        %v472 = vld [vmem:[%s417 + $0x48] sm:$0xff]
        %v473 = vld [vmem:[%s417 + $0x50] sm:$0xff]
        %v474 = vld [vmem:[%s417 + $0x58] sm:$0xff]
        %v475 = vld [vmem:[%s417 + $0x60] sm:$0xff]
        %v476 = vld [vmem:[%s417 + $0x68] sm:$0xff]
        %v477 = vld [vmem:[%s417 + $0x70] sm:$0xff]
        %v478 = vld [vmem:[%s417 + $0x78] sm:$0xff]
        %v479 = vpack.c.bf16 %v464, %v463
        %v480 = vpack.c.bf16 %v466, %v465
        %v481 = vpack.c.bf16 %v468, %v467
        %v482 = vpack.c.bf16 %v470, %v469
        %v483 = vpack.c.bf16 %v472, %v471
        %v484 = vpack.c.bf16 %v474, %v473
        %v485 = vpack.c.bf16 %v476, %v475
        %v486 = vpack.c.bf16 %v478, %v477
        %v487 = vld [vmem:[%s1] sm:$0xf]
        %v488 = vld [vmem:[%s1 + $0x4] sm:$0xf]
        %v491 = vunpack.c.l.b16 %v487
        %v492 = vunpack.c.l.b16 %v488
        %v493 = vpack.c.b16 %v492, %v491
        %vm495 = vcmask 130048
        %v497 = vsel %vm495, %v479, 0
        %v500 = vsel %vm495, %v480, 0
        %v503 = vsel %vm495, %v481, 0
        %v506 = vsel %vm495, %v482, 0
        %v509 = vsel %vm495, %v483, 0
        %v512 = vsel %vm495, %v484, 0
        %v515 = vsel %vm495, %v485, 0
        %v518 = vsel %vm495, %v486, 0
        %520 = vmatprep.subr.bf16.mxu0 0
        %521 = vmatpush1.bf16.msra.mxu0 %v493
        %522 = vmatprep.subr.bf16.mxu0 0
        %523 = vmatpush1.bf16.msra.mxu0 0
        %524 = vmatprep.subr.bf16.mxu0 0
        %525 = vmatpush1.bf16.msra.mxu0 0
        %526 = vmatprep.subr.bf16.mxu0 0
        %527 = vmatpush1.bf16.msra.mxu0 0
        %528 = vmatprep.subr.bf16.mxu0 0
        %529 = vmatpush1.bf16.msra.mxu0 0
        %530 = vmatprep.subr.bf16.mxu0 0
        %531 = vmatpush1.bf16.msra.mxu0 0
        %532 = vmatprep.subr.bf16.mxu0 0
        %533 = vmatpush1.bf16.msra.mxu0 0
        %534 = vmatprep.subr.bf16.mxu0 0
        %535 = vmatpush1.bf16.msra.mxu0 0
        %536 = vmatprep.subr.bf16.mxu0 0
        %537 = vmatpush1.bf16.msra.mxu0 0
        %538 = vmatprep.subr.bf16.mxu0 0
        %539 = vmatpush1.bf16.msra.mxu0 0
        %540 = vmatprep.subr.bf16.mxu0 0
        %541 = vmatpush1.bf16.msra.mxu0 0
        %542 = vmatprep.subr.bf16.mxu0 0
        %543 = vmatpush1.bf16.msra.mxu0 0
        %544 = vmatprep.subr.bf16.mxu0 0
        %545 = vmatpush1.bf16.msra.mxu0 0
        %546 = vmatprep.subr.bf16.mxu0 0
        %547 = vmatpush1.bf16.msra.mxu0 0
        %548 = vmatprep.subr.bf16.mxu0 0
        %549 = vmatpush1.bf16.msra.mxu0 0
        %550 = vmatprep.subr.bf16.mxu0 0
        %551 = vmatpush1.bf16.msra.mxu0 0
        %552 = vmatprep.mubr.bf16.mxu0 0
        %553 = vmatmul.mubr.bf16.gmra.mrb[0].mxu0 %v497
        %v554 = vpop.f32.mrb[0].mxu0
        %v555 = vadd.f32 0.0, %v554
        %v556 = vpop.f32.mrb[0].mxu0
        %v557 = vpop.f32.mrb[0].mxu0
        %v558 = vadd.f32 0.0, %v557
        %v559 = vpop.f32.mrb[0].mxu0
        %560 = vmatprep.mubr.bf16.mxu0 0
        %561 = vmatmul.mubr.bf16.gmra.mrb[0].mxu0 %v500
        %v562 = vpop.f32.mrb[0].mxu0
        %v563 = vadd.f32 0.0, %v562
        %v564 = vpop.f32.mrb[0].mxu0
        %v565 = vpop.f32.mrb[0].mxu0
        %v566 = vadd.f32 0.0, %v565
        %v567 = vpop.f32.mrb[0].mxu0
        %568 = vmatprep.mubr.bf16.mxu0 0
        %569 = vmatmul.mubr.bf16.gmra.mrb[0].mxu0 %v503
        %v570 = vpop.f32.mrb[0].mxu0
        %v571 = vadd.f32 0.0, %v570
        %v572 = vpop.f32.mrb[0].mxu0
        %v573 = vpop.f32.mrb[0].mxu0
        %v574 = vadd.f32 0.0, %v573
        %v575 = vpop.f32.mrb[0].mxu0
        %576 = vmatprep.mubr.bf16.mxu0 0
        %577 = vmatmul.mubr.bf16.gmra.mrb[0].mxu0 %v506
        %v578 = vpop.f32.mrb[0].mxu0
        %v579 = vadd.f32 0.0, %v578
        %v580 = vpop.f32.mrb[0].mxu0
        %v581 = vpop.f32.mrb[0].mxu0
        %v582 = vadd.f32 0.0, %v581
        %v583 = vpop.f32.mrb[0].mxu0
        %584 = vmatprep.mubr.bf16.mxu0 0
        %585 = vmatmul.mubr.bf16.gmra.mrb[0].mxu0 %v509
        %v586 = vpop.f32.mrb[0].mxu0
        %v587 = vadd.f32 0.0, %v586
        %v588 = vpop.f32.mrb[0].mxu0
        %v589 = vpop.f32.mrb[0].mxu0
        %v590 = vadd.f32 0.0, %v589
        %v591 = vpop.f32.mrb[0].mxu0
        %592 = vmatprep.mubr.bf16.mxu0 0
        %593 = vmatmul.mubr.bf16.gmra.mrb[0].mxu0 %v512
        %v594 = vpop.f32.mrb[0].mxu0
        %v595 = vadd.f32 0.0, %v594
        %v596 = vpop.f32.mrb[0].mxu0
        %v597 = vpop.f32.mrb[0].mxu0
        %v598 = vadd.f32 0.0, %v597
        %v599 = vpop.f32.mrb[0].mxu0
        %600 = vmatprep.mubr.bf16.mxu0 0
        %601 = vmatmul.mubr.bf16.gmra.mrb[0].mxu0 %v515
        %v602 = vpop.f32.mrb[0].mxu0
        %v603 = vadd.f32 0.0, %v602
        %v604 = vpop.f32.mrb[0].mxu0
        %v605 = vpop.f32.mrb[0].mxu0
        %v606 = vadd.f32 0.0, %v605
        %v607 = vpop.f32.mrb[0].mxu0
        %608 = vmatprep.mubr.bf16.mxu0 0
        %609 = vmatmul.mubr.bf16.gmra.mrb[0].mxu0 %v518
        %v610 = vpop.f32.mrb[0].mxu0
        %v611 = vadd.f32 0.0, %v610
        %v612 = vpop.f32.mrb[0].mxu0
        %v613 = vpop.f32.mrb[0].mxu0
        %v614 = vadd.f32 0.0, %v613
        %v615 = vpop.f32.mrb[0].mxu0
        %616 = vdwg.mxu0
        %v617 = vld [vmem:[%s2] sm:$0x1]
        %v619 = vlaneseq
        %v620 = vshrl.u32 %v619, 7
        %v621 = vsub.s32 0, %v620
        %v622 = vrot.slane %v617, %v621
        %v624 = vmul.f32 %v555, %v622
        %v625 = vmul.f32 %v558, %v622
        %v626 = vmul.f32 %v563, %v622
        %v627 = vmul.f32 %v566, %v622
        %v628 = vmul.f32 %v571, %v622
        %v629 = vmul.f32 %v574, %v622
        %v630 = vmul.f32 %v579, %v622
        %v631 = vmul.f32 %v582, %v622
        %v632 = vmul.f32 %v587, %v622
        %v633 = vmul.f32 %v590, %v622
        %v634 = vmul.f32 %v595, %v622
        %v635 = vmul.f32 %v598, %v622
        %v636 = vmul.f32 %v603, %v622
        %v637 = vmul.f32 %v606, %v622
        %v638 = vmul.f32 %v611, %v622
        %v639 = vmul.f32 %v614, %v622
        %v640 = vld [vmem:[%s3] sm:$0x1]
        %v642 = vlaneseq
        %v643 = vshrl.u32 %v642, 7
        %v644 = vsub.s32 0, %v643
        %v645 = vrot.slane %v640, %v644
        %v647 = vadd.f32 %v624, %v645
        %v648 = vadd.f32 %v625, %v645
        %v649 = vadd.f32 %v626, %v645
        %v650 = vadd.f32 %v627, %v645
        %v651 = vadd.f32 %v628, %v645
        %v652 = vadd.f32 %v629, %v645
        %v653 = vadd.f32 %v630, %v645
        %v654 = vadd.f32 %v631, %v645
        %v655 = vadd.f32 %v632, %v645
        %v656 = vadd.f32 %v633, %v645
        %v657 = vadd.f32 %v634, %v645
        %v658 = vadd.f32 %v635, %v645
        %v659 = vadd.f32 %v636, %v645
        %v660 = vadd.f32 %v637, %v645
        %v661 = vadd.f32 %v638, %v645
        %v662 = vadd.f32 %v639, %v645
        %v663 = vmax.f32 %v647, 0.0
        %v664 = vmax.f32 %v648, 0.0
        %v665 = vmax.f32 %v649, 0.0
        %v666 = vmax.f32 %v650, 0.0
        %v667 = vmax.f32 %v651, 0.0
        %v668 = vmax.f32 %v652, 0.0
        %v669 = vmax.f32 %v653, 0.0
        %v670 = vmax.f32 %v654, 0.0
        %v671 = vmax.f32 %v655, 0.0
        %v672 = vmax.f32 %v656, 0.0
        %v673 = vmax.f32 %v657, 0.0
        %v674 = vmax.f32 %v658, 0.0
        %v675 = vmax.f32 %v659, 0.0
        %v676 = vmax.f32 %v660, 0.0
        %v677 = vmax.f32 %v661, 0.0
        %v678 = vmax.f32 %v662, 0.0
        %v696 = vrot.slane 0.0, 7
        %v697 = vrot.slane %v663, 7
        %v698 = vrot.slane %v664, 7
        %v699 = vrot.slane %v665, 7
        %v700 = vrot.slane %v666, 7
        %v701 = vrot.slane %v667, 7
        %v702 = vrot.slane %v668, 7
        %v703 = vrot.slane %v669, 7
        %v704 = vrot.slane %v670, 7
        %v705 = vrot.slane %v671, 7
        %v706 = vrot.slane %v672, 7
        %v707 = vrot.slane %v673, 7
        %v708 = vrot.slane %v674, 7
        %v709 = vrot.slane %v675, 7
        %v710 = vrot.slane %v676, 7
        %v711 = vrot.slane %v677, 7
        %v712 = vrot.slane %v678, 7
        %vm730 = vcmask 1040384
        %v731 = vsel %vm730, 0.0, %v696
        %v732 = vsel %vm730, 0.0, %v697
        %v733 = vsel %vm730, 0.0, %v698
        %v734 = vsel %vm730, 0.0, %v699
        %v735 = vsel %vm730, 0.0, %v700
        %v736 = vsel %vm730, 0.0, %v701
        %v737 = vsel %vm730, 0.0, %v702
        %v738 = vsel %vm730, 0.0, %v703
        %v739 = vsel %vm730, 0.0, %v704
        %v740 = vsel %vm730, 0.0, %v705
        %v741 = vsel %vm730, 0.0, %v706
        %v742 = vsel %vm730, 0.0, %v707
        %v743 = vsel %vm730, 0.0, %v708
        %v744 = vsel %vm730, 0.0, %v709
        %v745 = vsel %vm730, 0.0, %v710
        %v746 = vsel %vm730, 0.0, %v711
        %v747 = vsel %vm730, 0.0, %v712
        %v748 = vsel %vm730, %v696, 0.0
        %v749 = vsel %vm730, %v697, 0.0
        %v750 = vsel %vm730, %v698, 0.0
        %v751 = vsel %vm730, %v699, 0.0
        %v752 = vsel %vm730, %v700, 0.0
        %v753 = vsel %vm730, %v701, 0.0
        %v754 = vsel %vm730, %v702, 0.0
        %v755 = vsel %vm730, %v703, 0.0
        %v756 = vsel %vm730, %v704, 0.0
        %v757 = vsel %vm730, %v705, 0.0
        %v758 = vsel %vm730, %v706, 0.0
        %v759 = vsel %vm730, %v707, 0.0
        %v760 = vsel %vm730, %v708, 0.0
        %v761 = vsel %vm730, %v709, 0.0
        %v762 = vsel %vm730, %v710, 0.0
        %v763 = vsel %vm730, %v711, 0.0
        %v764 = vsel %vm730, %v712, 0.0
        %vm795 = vcmask 1046528
        %v796 = vrot.slane %v731, 1
        %v797 = vrot.slane %v748, 1
        %v798 = vsel %vm795, %v796, %v797
        %v799 = vrot.slane %v732, 1
        %v800 = vrot.slane %v749, 1
        %v801 = vsel %vm795, %v799, %v800
        %v802 = vrot.slane %v733, 1
        %v803 = vrot.slane %v750, 1
        %v804 = vsel %vm795, %v802, %v803
        %v805 = vrot.slane %v734, 1
        %v806 = vrot.slane %v751, 1
        %v807 = vsel %vm795, %v805, %v806
        %v808 = vrot.slane %v735, 1
        %v809 = vrot.slane %v752, 1
        %v810 = vsel %vm795, %v808, %v809
        %v811 = vrot.slane %v736, 1
        %v812 = vrot.slane %v753, 1
        %v813 = vsel %vm795, %v811, %v812
        %v814 = vrot.slane %v737, 1
        %v815 = vrot.slane %v754, 1
        %v816 = vsel %vm795, %v814, %v815
        %v817 = vrot.slane %v738, 1
        %v818 = vrot.slane %v755, 1
        %v819 = vsel %vm795, %v817, %v818
        %v820 = vrot.slane %v740, 1
        %v821 = vrot.slane %v757, 1
        %v822 = vsel %vm795, %v820, %v821
        %v823 = vrot.slane %v741, 1
        %v824 = vrot.slane %v758, 1
        %v825 = vsel %vm795, %v823, %v824
        %v826 = vrot.slane %v742, 1
        %v827 = vrot.slane %v759, 1
        %v828 = vsel %vm795, %v826, %v827
        %v829 = vrot.slane %v743, 1
        %v830 = vrot.slane %v760, 1
        %v831 = vsel %vm795, %v829, %v830
        %v832 = vrot.slane %v744, 1
        %v833 = vrot.slane %v761, 1
        %v834 = vsel %vm795, %v832, %v833
        %v835 = vrot.slane %v745, 1
        %v836 = vrot.slane %v762, 1
        %v837 = vsel %vm795, %v835, %v836
        %v838 = vrot.slane %v746, 1
        %v839 = vrot.slane %v763, 1
        %v840 = vsel %vm795, %v838, %v839
        %vm841 = vcmask 1045504
        %v842 = vrot.slane %v731, 2
        %v843 = vrot.slane %v748, 2
        %v844 = vsel %vm841, %v842, %v843
        %v845 = vrot.slane %v732, 2
        %v846 = vrot.slane %v749, 2
        %v847 = vsel %vm841, %v845, %v846
        %v848 = vrot.slane %v733, 2
        %v849 = vrot.slane %v750, 2
        %v850 = vsel %vm841, %v848, %v849
        %v851 = vrot.slane %v734, 2
        %v852 = vrot.slane %v751, 2
        %v853 = vsel %vm841, %v851, %v852
        %v854 = vrot.slane %v735, 2
        %v855 = vrot.slane %v752, 2
        %v856 = vsel %vm841, %v854, %v855
        %v857 = vrot.slane %v736, 2
        %v858 = vrot.slane %v753, 2
        %v859 = vsel %vm841, %v857, %v858
        %v860 = vrot.slane %v737, 2
        %v861 = vrot.slane %v754, 2
        %v862 = vsel %vm841, %v860, %v861
        %v863 = vrot.slane %v738, 2
        %v864 = vrot.slane %v755, 2
        %v865 = vsel %vm841, %v863, %v864
        %v866 = vrot.slane %v740, 2
        %v867 = vrot.slane %v757, 2
        %v868 = vsel %vm841, %v866, %v867
        %v869 = vrot.slane %v741, 2
        %v870 = vrot.slane %v758, 2
        %v871 = vsel %vm841, %v869, %v870
        %v872 = vrot.slane %v742, 2
        %v873 = vrot.slane %v759, 2
        %v874 = vsel %vm841, %v872, %v873
        %v875 = vrot.slane %v743, 2
        %v876 = vrot.slane %v760, 2
        %v877 = vsel %vm841, %v875, %v876
        %v878 = vrot.slane %v744, 2
        %v879 = vrot.slane %v761, 2
        %v880 = vsel %vm841, %v878, %v879
        %v881 = vrot.slane %v745, 2
        %v882 = vrot.slane %v762, 2
        %v883 = vsel %vm841, %v881, %v882
        %v884 = vrot.slane %v746, 2
        %v885 = vrot.slane %v763, 2
        %v886 = vsel %vm841, %v884, %v885
        %v891 = vrot.slane %v739, 1
        %v892 = vrot.slane %v756, 1
        %v893 = vsel %vm795, %v891, %v892
        %v894 = vrot.slane %v747, 1
        %v895 = vrot.slane %v764, 1
        %v896 = vsel %vm795, %v894, %v895
        %v913 = vrot.slane %v739, 2
        %v914 = vrot.slane %v756, 2
        %v915 = vsel %vm841, %v913, %v914
        %v916 = vrot.slane %v747, 2
        %v917 = vrot.slane %v764, 2
        %v918 = vsel %vm841, %v916, %v917
        %934 = vrot.lane.b32.xlu0 %v798, 32
        %v935 = vpop.permute.xlu0 %934
        %936 = vrot.lane.b32.xlu0 %v801, 32
        %v937 = vpop.permute.xlu0 %936
        %938 = vrot.lane.b32.xlu0 %v804, 32
        %v939 = vpop.permute.xlu0 %938
        %940 = vrot.lane.b32.xlu0 %v807, 32
        %v941 = vpop.permute.xlu0 %940
        %942 = vrot.lane.b32.xlu0 %v810, 32
        %v943 = vpop.permute.xlu0 %942
        %944 = vrot.lane.b32.xlu0 %v813, 32
        %v945 = vpop.permute.xlu0 %944
        %946 = vrot.lane.b32.xlu0 %v816, 32
        %v947 = vpop.permute.xlu0 %946
        %948 = vrot.lane.b32.xlu0 %v819, 32
        %v949 = vpop.permute.xlu0 %948
        %950 = vrot.lane.b32.xlu0 %v822, 32
        %v951 = vpop.permute.xlu0 %950
        %952 = vrot.lane.b32.xlu0 %v825, 32
        %v953 = vpop.permute.xlu0 %952
        %954 = vrot.lane.b32.xlu0 %v828, 32
        %v955 = vpop.permute.xlu0 %954
        %956 = vrot.lane.b32.xlu0 %v831, 32
        %v957 = vpop.permute.xlu0 %956
        %958 = vrot.lane.b32.xlu0 %v834, 32
        %v959 = vpop.permute.xlu0 %958
        %960 = vrot.lane.b32.xlu0 %v837, 32
        %v961 = vpop.permute.xlu0 %960
        %962 = vrot.lane.b32.xlu0 %v840, 32
        %v963 = vpop.permute.xlu0 %962
        %979 = vrot.lane.b32.xlu0 %v844, 64
        %v980 = vpop.permute.xlu0 %979
        %981 = vrot.lane.b32.xlu0 %v847, 64
        %v982 = vpop.permute.xlu0 %981
        %983 = vrot.lane.b32.xlu0 %v850, 64
        %v984 = vpop.permute.xlu0 %983
        %985 = vrot.lane.b32.xlu0 %v853, 64
        %v986 = vpop.permute.xlu0 %985
        %987 = vrot.lane.b32.xlu0 %v856, 64
        %v988 = vpop.permute.xlu0 %987
        %989 = vrot.lane.b32.xlu0 %v859, 64
        %v990 = vpop.permute.xlu0 %989
        %991 = vrot.lane.b32.xlu0 %v862, 64
        %v992 = vpop.permute.xlu0 %991
        %993 = vrot.lane.b32.xlu0 %v865, 64
        %v994 = vpop.permute.xlu0 %993
        %995 = vrot.lane.b32.xlu0 %v868, 64
        %v996 = vpop.permute.xlu0 %995
        %997 = vrot.lane.b32.xlu0 %v871, 64
        %v998 = vpop.permute.xlu0 %997
        %999 = vrot.lane.b32.xlu0 %v874, 64
        %v1000 = vpop.permute.xlu0 %999
        %1001 = vrot.lane.b32.xlu0 %v877, 64
        %v1002 = vpop.permute.xlu0 %1001
        %1003 = vrot.lane.b32.xlu0 %v880, 64
        %v1004 = vpop.permute.xlu0 %1003
        %1005 = vrot.lane.b32.xlu0 %v883, 64
        %v1006 = vpop.permute.xlu0 %1005
        %1007 = vrot.lane.b32.xlu0 %v886, 64
        %v1008 = vpop.permute.xlu0 %1007
        %1024 = vrot.lane.b32.xlu0 %v732, 96
        %v1025 = vpop.permute.xlu0 %1024
        %1026 = vrot.lane.b32.xlu0 %v733, 96
        %v1027 = vpop.permute.xlu0 %1026
        %1028 = vrot.lane.b32.xlu0 %v734, 96
        %v1029 = vpop.permute.xlu0 %1028
        %1030 = vrot.lane.b32.xlu0 %v735, 96
        %v1031 = vpop.permute.xlu0 %1030
        %1032 = vrot.lane.b32.xlu0 %v736, 96
        %v1033 = vpop.permute.xlu0 %1032
        %1034 = vrot.lane.b32.xlu0 %v737, 96
        %v1035 = vpop.permute.xlu0 %1034
        %1036 = vrot.lane.b32.xlu0 %v738, 96
        %v1037 = vpop.permute.xlu0 %1036
        %1038 = vrot.lane.b32.xlu0 %v739, 96
        %v1039 = vpop.permute.xlu0 %1038
        %1040 = vrot.lane.b32.xlu0 %v740, 96
        %v1041 = vpop.permute.xlu0 %1040
        %1042 = vrot.lane.b32.xlu0 %v741, 96
        %v1043 = vpop.permute.xlu0 %1042
        %1044 = vrot.lane.b32.xlu0 %v742, 96
        %v1045 = vpop.permute.xlu0 %1044
        %1046 = vrot.lane.b32.xlu0 %v743, 96
        %v1047 = vpop.permute.xlu0 %1046
        %1048 = vrot.lane.b32.xlu0 %v744, 96
        %v1049 = vpop.permute.xlu0 %1048
        %1050 = vrot.lane.b32.xlu0 %v745, 96
        %v1051 = vpop.permute.xlu0 %1050
        %1052 = vrot.lane.b32.xlu0 %v746, 96
        %v1053 = vpop.permute.xlu0 %1052
        %1054 = vrot.lane.b32.xlu0 %v747, 96
        %v1055 = vpop.permute.xlu0 %1054
        %1072 = vrot.lane.b32.xlu0 %v847, 32
        %v1073 = vpop.permute.xlu0 %1072
        %1074 = vrot.lane.b32.xlu0 %v850, 32
        %v1075 = vpop.permute.xlu0 %1074
        %1076 = vrot.lane.b32.xlu0 %v853, 32
        %v1077 = vpop.permute.xlu0 %1076
        %1078 = vrot.lane.b32.xlu0 %v856, 32
        %v1079 = vpop.permute.xlu0 %1078
        %1080 = vrot.lane.b32.xlu0 %v859, 32
        %v1081 = vpop.permute.xlu0 %1080
        %1082 = vrot.lane.b32.xlu0 %v862, 32
        %v1083 = vpop.permute.xlu0 %1082
        %1084 = vrot.lane.b32.xlu0 %v865, 32
        %v1085 = vpop.permute.xlu0 %1084
        %1086 = vrot.lane.b32.xlu0 %v915, 32
        %v1087 = vpop.permute.xlu0 %1086
        %1088 = vrot.lane.b32.xlu0 %v868, 32
        %v1089 = vpop.permute.xlu0 %1088
        %1090 = vrot.lane.b32.xlu0 %v871, 32
        %v1091 = vpop.permute.xlu0 %1090
        %1092 = vrot.lane.b32.xlu0 %v874, 32
        %v1093 = vpop.permute.xlu0 %1092
        %1094 = vrot.lane.b32.xlu0 %v877, 32
        %v1095 = vpop.permute.xlu0 %1094
        %1096 = vrot.lane.b32.xlu0 %v880, 32
        %v1097 = vpop.permute.xlu0 %1096
        %1098 = vrot.lane.b32.xlu0 %v883, 32
        %v1099 = vpop.permute.xlu0 %1098
        %1100 = vrot.lane.b32.xlu0 %v886, 32
        %v1101 = vpop.permute.xlu0 %1100
        %1102 = vrot.lane.b32.xlu0 %v918, 32
        %v1103 = vpop.permute.xlu0 %1102
        %1120 = vrot.lane.b32.xlu0 %v733, 64
        %v1121 = vpop.permute.xlu0 %1120
        %1122 = vrot.lane.b32.xlu0 %v734, 64
        %v1123 = vpop.permute.xlu0 %1122
        %1124 = vrot.lane.b32.xlu0 %v735, 64
        %v1125 = vpop.permute.xlu0 %1124
        %1126 = vrot.lane.b32.xlu0 %v736, 64
        %v1127 = vpop.permute.xlu0 %1126
        %1128 = vrot.lane.b32.xlu0 %v737, 64
        %v1129 = vpop.permute.xlu0 %1128
        %1130 = vrot.lane.b32.xlu0 %v738, 64
        %v1131 = vpop.permute.xlu0 %1130
        %1132 = vrot.lane.b32.xlu0 %v739, 64
        %v1133 = vpop.permute.xlu0 %1132
        %1134 = vrot.lane.b32.xlu0 %v731, 64
        %v1135 = vpop.permute.xlu0 %1134
        %1136 = vrot.lane.b32.xlu0 %v741, 64
        %v1137 = vpop.permute.xlu0 %1136
        %1138 = vrot.lane.b32.xlu0 %v742, 64
        %v1139 = vpop.permute.xlu0 %1138
        %1140 = vrot.lane.b32.xlu0 %v743, 64
        %v1141 = vpop.permute.xlu0 %1140
        %1142 = vrot.lane.b32.xlu0 %v744, 64
        %v1143 = vpop.permute.xlu0 %1142
        %1144 = vrot.lane.b32.xlu0 %v745, 64
        %v1145 = vpop.permute.xlu0 %1144
        %1146 = vrot.lane.b32.xlu0 %v746, 64
        %v1147 = vpop.permute.xlu0 %1146
        %1148 = vrot.lane.b32.xlu0 %v747, 64
        %v1149 = vpop.permute.xlu0 %1148
        %1165 = vrot.lane.b32.xlu0 %v804, 96
        %v1166 = vpop.permute.xlu0 %1165
        %1167 = vrot.lane.b32.xlu0 %v807, 96
        %v1168 = vpop.permute.xlu0 %1167
        %1169 = vrot.lane.b32.xlu0 %v810, 96
        %v1170 = vpop.permute.xlu0 %1169
        %1171 = vrot.lane.b32.xlu0 %v813, 96
        %v1172 = vpop.permute.xlu0 %1171
        %1173 = vrot.lane.b32.xlu0 %v816, 96
        %v1174 = vpop.permute.xlu0 %1173
        %1175 = vrot.lane.b32.xlu0 %v819, 96
        %v1176 = vpop.permute.xlu0 %1175
        %1177 = vrot.lane.b32.xlu0 %v893, 96
        %v1178 = vpop.permute.xlu0 %1177
        %1179 = vrot.lane.b32.xlu0 %v798, 96
        %v1180 = vpop.permute.xlu0 %1179
        %1181 = vrot.lane.b32.xlu0 %v825, 96
        %v1182 = vpop.permute.xlu0 %1181
        %1183 = vrot.lane.b32.xlu0 %v828, 96
        %v1184 = vpop.permute.xlu0 %1183
        %1185 = vrot.lane.b32.xlu0 %v831, 96
        %v1186 = vpop.permute.xlu0 %1185
        %1187 = vrot.lane.b32.xlu0 %v834, 96
        %v1188 = vpop.permute.xlu0 %1187
        %1189 = vrot.lane.b32.xlu0 %v837, 96
        %v1190 = vpop.permute.xlu0 %1189
        %1191 = vrot.lane.b32.xlu0 %v840, 96
        %v1192 = vpop.permute.xlu0 %1191
        %1193 = vrot.lane.b32.xlu0 %v896, 96
        %v1194 = vpop.permute.xlu0 %1193
        %vm1210 = vcmask 261120
        %v1211 = vsel %vm1210, %v731, %v935
        %v1212 = vsel %vm1210, %v732, %v937
        %v1213 = vsel %vm1210, %v733, %v939
        %v1214 = vsel %vm1210, %v734, %v941
        %v1215 = vsel %vm1210, %v735, %v943
        %v1216 = vsel %vm1210, %v736, %v945
        %v1217 = vsel %vm1210, %v737, %v947
        %v1218 = vsel %vm1210, %v738, %v949
        %v1219 = vsel %vm1210, %v740, %v951
        %v1220 = vsel %vm1210, %v741, %v953
        %v1221 = vsel %vm1210, %v742, %v955
        %v1222 = vsel %vm1210, %v743, %v957
        %v1223 = vsel %vm1210, %v744, %v959
        %v1224 = vsel %vm1210, %v745, %v961
        %v1225 = vsel %vm1210, %v746, %v963
        %vm1226 = vcmask 523264
        %v1227 = vsel %vm1226, %v1211, %v980
        %v1228 = vsel %vm1226, %v1212, %v982
        %v1229 = vsel %vm1226, %v1213, %v984
        %v1230 = vsel %vm1226, %v1214, %v986
        %v1231 = vsel %vm1226, %v1215, %v988
        %v1232 = vsel %vm1226, %v1216, %v990
        %v1233 = vsel %vm1226, %v1217, %v992
        %v1234 = vsel %vm1226, %v1218, %v994
        %v1235 = vsel %vm1226, %v1219, %v996
        %v1236 = vsel %vm1226, %v1220, %v998
        %v1237 = vsel %vm1226, %v1221, %v1000
        %v1238 = vsel %vm1226, %v1222, %v1002
        %v1239 = vsel %vm1226, %v1223, %v1004
        %v1240 = vsel %vm1226, %v1224, %v1006
        %v1241 = vsel %vm1226, %v1225, %v1008
        %vm1242 = vcmask 785408
        %v1243 = vsel %vm1242, %v1227, %v1025
        %v1244 = vsel %vm1242, %v1228, %v1027
        %v1245 = vsel %vm1242, %v1229, %v1029
        %v1246 = vsel %vm1242, %v1230, %v1031
        %v1247 = vsel %vm1242, %v1231, %v1033
        %v1248 = vsel %vm1242, %v1232, %v1035
        %v1249 = vsel %vm1242, %v1233, %v1037
        %v1250 = vsel %vm1242, %v1234, %v1039
        %v1251 = vsel %vm1242, %v1227, %v1041
        %v1252 = vsel %vm1242, %v1235, %v1043
        %v1253 = vsel %vm1242, %v1236, %v1045
        %v1254 = vsel %vm1242, %v1237, %v1047
        %v1255 = vsel %vm1242, %v1238, %v1049
        %v1256 = vsel %vm1242, %v1239, %v1051
        %v1257 = vsel %vm1242, %v1240, %v1053
        %v1258 = vsel %vm1242, %v1241, %v1055
        %v1259 = vsel %vm1210, %v801, %v1073
        %v1260 = vsel %vm1210, %v804, %v1075
        %v1261 = vsel %vm1210, %v807, %v1077
        %v1262 = vsel %vm1210, %v810, %v1079
        %v1263 = vsel %vm1210, %v813, %v1081
        %v1264 = vsel %vm1210, %v816, %v1083
        %v1265 = vsel %vm1210, %v819, %v1085
        %v1266 = vsel %vm1210, %v893, %v1087
        %v1267 = vsel %vm1210, %v822, %v1089
        %v1268 = vsel %vm1210, %v825, %v1091
        %v1269 = vsel %vm1210, %v828, %v1093
        %v1270 = vsel %vm1210, %v831, %v1095
        %v1271 = vsel %vm1210, %v834, %v1097
        %v1272 = vsel %vm1210, %v837, %v1099
        %v1273 = vsel %vm1210, %v840, %v1101
        %v1274 = vsel %vm1210, %v896, %v1103
        %v1275 = vsel %vm1226, %v1259, %v1121
        %v1276 = vsel %vm1226, %v1260, %v1123
        %v1277 = vsel %vm1226, %v1261, %v1125
        %v1278 = vsel %vm1226, %v1262, %v1127
        %v1279 = vsel %vm1226, %v1263, %v1129
        %v1280 = vsel %vm1226, %v1264, %v1131
        %v1281 = vsel %vm1226, %v1265, %v1133
        %v1282 = vsel %vm1226, %v1266, %v1135
        %v1283 = vsel %vm1226, %v1267, %v1137
        %v1284 = vsel %vm1226, %v1268, %v1139
        %v1285 = vsel %vm1226, %v1269, %v1141
        %v1286 = vsel %vm1226, %v1270, %v1143
        %v1287 = vsel %vm1226, %v1271, %v1145
        %v1288 = vsel %vm1226, %v1272, %v1147
        %v1289 = vsel %vm1226, %v1273, %v1149
        %v1290 = vsel %vm1226, %v1274, %v1135
        %v1291 = vsel %vm1242, %v1275, %v1166
        %v1292 = vsel %vm1242, %v1276, %v1168
        %v1293 = vsel %vm1242, %v1277, %v1170
        %v1294 = vsel %vm1242, %v1278, %v1172
        %v1295 = vsel %vm1242, %v1279, %v1174
        %v1296 = vsel %vm1242, %v1280, %v1176
        %v1297 = vsel %vm1242, %v1281, %v1178
        %v1298 = vsel %vm1242, %v1282, %v1180
        %v1299 = vsel %vm1242, %v1283, %v1182
        %v1300 = vsel %vm1242, %v1284, %v1184
        %v1301 = vsel %vm1242, %v1285, %v1186
        %v1302 = vsel %vm1242, %v1286, %v1188
        %v1303 = vsel %vm1242, %v1287, %v1190
        %v1304 = vsel %vm1242, %v1288, %v1192
        %v1305 = vsel %vm1242, %v1289, %v1194
        %v1306 = vsel %vm1242, %v1290, %v1180
        %v1307 = vpack.c.bf16 %v1244, %v1243
        %v1308 = vpack.c.bf16 %v1292, %v1291
        %v1309 = vpack.c.bf16 %v853, %v850
        %v1310 = vpack.c.bf16 %v1246, %v1245
        %v1311 = vpack.c.bf16 %v1294, %v1293
        %v1312 = vpack.c.bf16 %v859, %v856
        %v1313 = vpack.c.bf16 %v1248, %v1247
        %v1314 = vpack.c.bf16 %v1296, %v1295
        %v1315 = vpack.c.bf16 %v865, %v862
        %v1316 = vpack.c.bf16 %v1250, %v1249
        %v1317 = vpack.c.bf16 %v1298, %v1297
        %v1318 = vpack.c.bf16 %v844, %v915
        %v1319 = vpack.c.bf16 %v1252, %v1251
        %v1320 = vpack.c.bf16 %v1300, %v1299
        %v1321 = vpack.c.bf16 %v874, %v871
        %v1322 = vpack.c.bf16 %v1254, %v1253
        %v1323 = vpack.c.bf16 %v1302, %v1301
        %v1324 = vpack.c.bf16 %v880, %v877
        %v1325 = vpack.c.bf16 %v1256, %v1255
        %v1326 = vpack.c.bf16 %v1304, %v1303
        %v1327 = vpack.c.bf16 %v886, %v883
        %v1328 = vpack.c.bf16 %v1258, %v1257
        %v1329 = vpack.c.bf16 %v1306, %v1305
        %v1330 = vpack.c.bf16 %v844, %v918
        %v1331 = vld [vmem:[%s4] sm:$0xf]
        %v1332 = vld [vmem:[%s4 + $0x4] sm:$0xf]
        %v1333 = vld [vmem:[%s4 + $0x8] sm:$0xf]
        %v1334 = vld [vmem:[%s4 + $0xc] sm:$0xf]
        %v1335 = vld [vmem:[%s4 + $0x10] sm:$0xf]
        %v1336 = vld [vmem:[%s4 + $0x14] sm:$0xf]
        %v1337 = vld [vmem:[%s4 + $0x18] sm:$0xf]
        %v1338 = vld [vmem:[%s4 + $0x1c] sm:$0xf]
        %v1339 = vld [vmem:[%s4 + $0x20] sm:$0xf]
        %v1340 = vld [vmem:[%s4 + $0x24] sm:$0xf]
        %v1341 = vld [vmem:[%s4 + $0x28] sm:$0xf]
        %v1342 = vld [vmem:[%s4 + $0x2c] sm:$0xf]
        %v1343 = vld [vmem:[%s4 + $0x30] sm:$0xf]
        %v1344 = vld [vmem:[%s4 + $0x34] sm:$0xf]
        %v1345 = vld [vmem:[%s4 + $0x38] sm:$0xf]
        %v1346 = vld [vmem:[%s4 + $0x3c] sm:$0xf]
        %v1347 = vld [vmem:[%s4 + $0x40] sm:$0xf]
        %v1348 = vld [vmem:[%s4 + $0x44] sm:$0xf]
        %v1349 = vld [vmem:[%s4 + $0x48] sm:$0xf]
        %v1350 = vld [vmem:[%s4 + $0x4c] sm:$0xf]
        %v1351 = vld [vmem:[%s4 + $0x50] sm:$0xf]
        %v1352 = vld [vmem:[%s4 + $0x54] sm:$0xf]
        %v1353 = vld [vmem:[%s4 + $0x58] sm:$0xf]
        %v1354 = vld [vmem:[%s4 + $0x5c] sm:$0xf]
        %v1355 = vld [vmem:[%s4 + $0x60] sm:$0xf]
        %v1356 = vld [vmem:[%s4 + $0x64] sm:$0xf]
        %v1357 = vld [vmem:[%s4 + $0x68] sm:$0xf]
        %v1358 = vld [vmem:[%s4 + $0x6c] sm:$0xf]
        %v1359 = vld [vmem:[%s4 + $0x70] sm:$0xf]
        %v1360 = vld [vmem:[%s4 + $0x74] sm:$0xf]
        %v1361 = vld [vmem:[%s4 + $0x78] sm:$0xf]
        %v1362 = vld [vmem:[%s4 + $0x7c] sm:$0xf]
        %v1363 = vld [vmem:[%s4 + $0x80] sm:$0xf]
        %v1364 = vld [vmem:[%s4 + $0x84] sm:$0xf]
        %v1365 = vld [vmem:[%s4 + $0x88] sm:$0xf]
        %v1366 = vld [vmem:[%s4 + $0x8c] sm:$0xf]
        %v1403 = vunpack.c.l.b16 %v1331
        %v1404 = vunpack.c.l.b16 %v1332
        %v1405 = vunpack.c.l.b16 %v1333
        %v1406 = vunpack.c.l.b16 %v1334
        %v1407 = vunpack.c.l.b16 %v1335
        %v1408 = vunpack.c.l.b16 %v1336
        %v1409 = vunpack.c.l.b16 %v1337
        %v1410 = vunpack.c.l.b16 %v1338
        %v1411 = vunpack.c.l.b16 %v1339
        %v1412 = vunpack.c.l.b16 %v1340
        %v1413 = vunpack.c.l.b16 %v1341
        %v1414 = vunpack.c.l.b16 %v1342
        %v1415 = vunpack.c.l.b16 %v1343
        %v1416 = vunpack.c.l.b16 %v1344
        %v1417 = vunpack.c.l.b16 %v1345
        %v1418 = vunpack.c.l.b16 %v1346
        %v1419 = vunpack.c.l.b16 %v1347
        %v1420 = vunpack.c.l.b16 %v1348
        %v1421 = vunpack.c.l.b16 %v1349
        %v1422 = vunpack.c.l.b16 %v1350
        %v1423 = vunpack.c.l.b16 %v1351
        %v1424 = vunpack.c.l.b16 %v1352
        %v1425 = vunpack.c.l.b16 %v1353
        %v1426 = vunpack.c.l.b16 %v1354
        %v1427 = vunpack.c.l.b16 %v1355
        %v1428 = vunpack.c.l.b16 %v1356
        %v1429 = vunpack.c.l.b16 %v1357
        %v1430 = vunpack.c.l.b16 %v1358
        %v1431 = vunpack.c.l.b16 %v1359
        %v1432 = vunpack.c.l.b16 %v1360
        %v1433 = vunpack.c.l.b16 %v1361
        %v1434 = vunpack.c.l.b16 %v1362
        %v1435 = vunpack.c.l.b16 %v1363
        %v1436 = vunpack.c.l.b16 %v1364
        %v1437 = vunpack.c.l.b16 %v1365
        %v1438 = vunpack.c.l.b16 %v1366
        %v1439 = vpack.c.b16 %v1404, %v1403
        %v1440 = vpack.c.b16 %v1406, %v1405
        %v1441 = vpack.c.b16 %v1408, %v1407
        %v1442 = vpack.c.b16 %v1410, %v1409
        %v1443 = vpack.c.b16 %v1412, %v1411
        %v1444 = vpack.c.b16 %v1414, %v1413
        %v1445 = vpack.c.b16 %v1416, %v1415
        %v1446 = vpack.c.b16 %v1418, %v1417
        %v1447 = vpack.c.b16 %v1420, %v1419
        %v1448 = vpack.c.b16 %v1422, %v1421
        %v1449 = vpack.c.b16 %v1424, %v1423
        %v1450 = vpack.c.b16 %v1426, %v1425
        %v1451 = vpack.c.b16 %v1428, %v1427
        %v1452 = vpack.c.b16 %v1430, %v1429
        %v1453 = vpack.c.b16 %v1432, %v1431
        %v1454 = vpack.c.b16 %v1434, %v1433
        %v1455 = vpack.c.b16 %v1436, %v1435
        %v1456 = vpack.c.b16 %v1438, %v1437
        %v1476 = vsel %vm1210, %v1309, 0
        %v1479 = vsel %vm1210, %v1312, 0
        %v1482 = vsel %vm1210, %v1315, 0
        %v1485 = vsel %vm1210, %v1318, 0
        %v1488 = vsel %vm1210, %v1321, 0
        %v1491 = vsel %vm1210, %v1324, 0
        %v1494 = vsel %vm1210, %v1327, 0
        %v1497 = vsel %vm1210, %v1330, 0
        %1499 = vmatprep.subr.bf16.mxu0 0
        %1500 = vmatpush1.bf16.msra.mxu0 %v1439
        %1501 = vmatprep.subr.bf16.mxu0 0
        %1502 = vmatpush1.bf16.msra.mxu0 %v1440
        %1503 = vmatprep.subr.bf16.mxu0 0
        %1504 = vmatpush1.bf16.msra.mxu0 %v1441
        %1505 = vmatprep.subr.bf16.mxu0 0
        %1506 = vmatpush1.bf16.msra.mxu0 %v1442
        %1507 = vmatprep.subr.bf16.mxu0 0
        %1508 = vmatpush1.bf16.msra.mxu0 %v1443
        %1509 = vmatprep.subr.bf16.mxu0 0
        %1510 = vmatpush1.bf16.msra.mxu0 %v1444
        %1511 = vmatprep.subr.bf16.mxu0 0
        %1512 = vmatpush1.bf16.msra.mxu0 %v1445
        %1513 = vmatprep.subr.bf16.mxu0 0
        %1514 = vmatpush1.bf16.msra.mxu0 %v1446
        %1515 = vmatprep.subr.bf16.mxu0 0
        %1516 = vmatpush1.bf16.msra.mxu0 %v1447
        %1517 = vmatprep.subr.bf16.mxu0 0
        %1518 = vmatpush1.bf16.msra.mxu0 %v1448
        %1519 = vmatprep.subr.bf16.mxu0 0
        %1520 = vmatpush1.bf16.msra.mxu0 %v1449
        %1521 = vmatprep.subr.bf16.mxu0 0
        %1522 = vmatpush1.bf16.msra.mxu0 %v1450
        %1523 = vmatprep.subr.bf16.mxu0 0
        %1524 = vmatpush1.bf16.msra.mxu0 %v1451
        %1525 = vmatprep.subr.bf16.mxu0 0
        %1526 = vmatpush1.bf16.msra.mxu0 %v1452
        %1527 = vmatprep.subr.bf16.mxu0 0
        %1528 = vmatpush1.bf16.msra.mxu0 %v1453
        %1529 = vmatprep.subr.bf16.mxu0 0
        %1530 = vmatpush1.bf16.msra.mxu0 %v1454
        %1531 = vmatprep.mubr.bf16.mxu0 %v1308
        %1532 = vmatmul.mubr.bf16.gmra.mrb[0].mxu0 %v1307
        %v1533 = vpop.f32.mrb[0].mxu0
        %v1534 = vadd.f32 0.0, %v1533
        %v1535 = vpop.f32.mrb[0].mxu0
        %v1536 = vpop.f32.mrb[0].mxu0
        %v1537 = vadd.f32 0.0, %v1536
        %v1538 = vpop.f32.mrb[0].mxu0
        %1539 = vmatprep.mubr.bf16.mxu0 %v1311
        %1540 = vmatmul.mubr.bf16.gmra.mrb[0].mxu0 %v1310
        %v1541 = vpop.f32.mrb[0].mxu0
        %v1542 = vadd.f32 0.0, %v1541
        %v1543 = vpop.f32.mrb[0].mxu0
        %v1544 = vpop.f32.mrb[0].mxu0
        %v1545 = vadd.f32 0.0, %v1544
        %v1546 = vpop.f32.mrb[0].mxu0
        %1547 = vmatprep.mubr.bf16.mxu0 %v1314
        %1548 = vmatmul.mubr.bf16.gmra.mrb[0].mxu0 %v1313
        %v1549 = vpop.f32.mrb[0].mxu0
        %v1550 = vadd.f32 0.0, %v1549
        %v1551 = vpop.f32.mrb[0].mxu0
        %v1552 = vpop.f32.mrb[0].mxu0
        %v1553 = vadd.f32 0.0, %v1552
        %v1554 = vpop.f32.mrb[0].mxu0
        %1555 = vmatprep.mubr.bf16.mxu0 %v1317
        %1556 = vmatmul.mubr.bf16.gmra.mrb[0].mxu0 %v1316
        %v1557 = vpop.f32.mrb[0].mxu0
        %v1558 = vadd.f32 0.0, %v1557
        %v1559 = vpop.f32.mrb[0].mxu0
        %v1560 = vpop.f32.mrb[0].mxu0
        %v1561 = vadd.f32 0.0, %v1560
        %v1562 = vpop.f32.mrb[0].mxu0
        %1563 = vmatprep.mubr.bf16.mxu0 %v1320
        %1564 = vmatmul.mubr.bf16.gmra.mrb[0].mxu0 %v1319
        %v1565 = vpop.f32.mrb[0].mxu0
        %v1566 = vadd.f32 0.0, %v1565
        %v1567 = vpop.f32.mrb[0].mxu0
        %v1568 = vpop.f32.mrb[0].mxu0
        %v1569 = vadd.f32 0.0, %v1568
        %v1570 = vpop.f32.mrb[0].mxu0
        %1571 = vmatprep.mubr.bf16.mxu0 %v1323
        %1572 = vmatmul.mubr.bf16.gmra.mrb[0].mxu0 %v1322
        %v1573 = vpop.f32.mrb[0].mxu0
        %v1574 = vadd.f32 0.0, %v1573
        %v1575 = vpop.f32.mrb[0].mxu0
        %v1576 = vpop.f32.mrb[0].mxu0
        %v1577 = vadd.f32 0.0, %v1576
        %v1578 = vpop.f32.mrb[0].mxu0
        %1579 = vmatprep.mubr.bf16.mxu0 %v1326
        %1580 = vmatmul.mubr.bf16.gmra.mrb[0].mxu0 %v1325
        %v1581 = vpop.f32.mrb[0].mxu0
        %v1582 = vadd.f32 0.0, %v1581
        %v1583 = vpop.f32.mrb[0].mxu0
        %v1584 = vpop.f32.mrb[0].mxu0
        %v1585 = vadd.f32 0.0, %v1584
        %v1586 = vpop.f32.mrb[0].mxu0
        %1587 = vmatprep.mubr.bf16.mxu0 %v1329
        %1588 = vmatmul.mubr.bf16.gmra.mrb[0].mxu0 %v1328
        %v1589 = vpop.f32.mrb[0].mxu0
        %v1590 = vadd.f32 0.0, %v1589
        %v1591 = vpop.f32.mrb[0].mxu0
        %v1592 = vpop.f32.mrb[0].mxu0
        %v1593 = vadd.f32 0.0, %v1592
        %v1594 = vpop.f32.mrb[0].mxu0
        %1595 = vdwg.mxu0
        %1596 = vmatprep.subr.bf16.mxu0 0
        %1597 = vmatpush1.bf16.msra.mxu0 %v1455
        %1598 = vmatprep.subr.bf16.mxu0 0
        %1599 = vmatpush1.bf16.msra.mxu0 %v1456
        %1600 = vmatprep.subr.bf16.mxu0 0
        %1601 = vmatpush1.bf16.msra.mxu0 0
        %1602 = vmatprep.subr.bf16.mxu0 0
        %1603 = vmatpush1.bf16.msra.mxu0 0
        %1604 = vmatprep.subr.bf16.mxu0 0
        %1605 = vmatpush1.bf16.msra.mxu0 0
        %1606 = vmatprep.subr.bf16.mxu0 0
        %1607 = vmatpush1.bf16.msra.mxu0 0
        %1608 = vmatprep.subr.bf16.mxu0 0
        %1609 = vmatpush1.bf16.msra.mxu0 0
        %1610 = vmatprep.subr.bf16.mxu0 0
        %1611 = vmatpush1.bf16.msra.mxu0 0
        %1612 = vmatprep.subr.bf16.mxu0 0
        %1613 = vmatpush1.bf16.msra.mxu0 0
        %1614 = vmatprep.subr.bf16.mxu0 0
        %1615 = vmatpush1.bf16.msra.mxu0 0
        %1616 = vmatprep.subr.bf16.mxu0 0
        %1617 = vmatpush1.bf16.msra.mxu0 0
        %1618 = vmatprep.subr.bf16.mxu0 0
        %1619 = vmatpush1.bf16.msra.mxu0 0
        %1620 = vmatprep.subr.bf16.mxu0 0
        %1621 = vmatpush1.bf16.msra.mxu0 0
        %1622 = vmatprep.subr.bf16.mxu0 0
        %1623 = vmatpush1.bf16.msra.mxu0 0
        %1624 = vmatprep.subr.bf16.mxu0 0
        %1625 = vmatpush1.bf16.msra.mxu0 0
        %1626 = vmatprep.subr.bf16.mxu0 0
        %1627 = vmatpush1.bf16.msra.mxu0 0
        %1628 = vmatprep.mubr.bf16.mxu0 0
        %1629 = vmatmul.mubr.bf16.gmra.mrb[0].mxu0 %v1476
        %v1630 = vpop.f32.mrb[0].mxu0
        %v1631 = vadd.f32 %v1534, %v1630
        %v1632 = vpop.f32.mrb[0].mxu0
        %v1633 = vpop.f32.mrb[0].mxu0
        %v1634 = vadd.f32 %v1537, %v1633
        %v1635 = vpop.f32.mrb[0].mxu0
        %1636 = vmatprep.mubr.bf16.mxu0 0
        %1637 = vmatmul.mubr.bf16.gmra.mrb[0].mxu0 %v1479
        %v1638 = vpop.f32.mrb[0].mxu0
        %v1639 = vadd.f32 %v1542, %v1638
        %v1640 = vpop.f32.mrb[0].mxu0
        %v1641 = vpop.f32.mrb[0].mxu0
        %v1642 = vadd.f32 %v1545, %v1641
        %v1643 = vpop.f32.mrb[0].mxu0
        %1644 = vmatprep.mubr.bf16.mxu0 0
        %1645 = vmatmul.mubr.bf16.gmra.mrb[0].mxu0 %v1482
        %v1646 = vpop.f32.mrb[0].mxu0
        %v1647 = vadd.f32 %v1550, %v1646
        %v1648 = vpop.f32.mrb[0].mxu0
        %v1649 = vpop.f32.mrb[0].mxu0
        %v1650 = vadd.f32 %v1553, %v1649
        %v1651 = vpop.f32.mrb[0].mxu0
        %1652 = vmatprep.mubr.bf16.mxu0 0
        %1653 = vmatmul.mubr.bf16.gmra.mrb[0].mxu0 %v1485
        %v1654 = vpop.f32.mrb[0].mxu0
        %v1655 = vadd.f32 %v1558, %v1654
        %v1656 = vpop.f32.mrb[0].mxu0
        %v1657 = vpop.f32.mrb[0].mxu0
        %v1658 = vadd.f32 %v1561, %v1657
        %v1659 = vpop.f32.mrb[0].mxu0
        %1660 = vmatprep.mubr.bf16.mxu0 0
        %1661 = vmatmul.mubr.bf16.gmra.mrb[0].mxu0 %v1488
        %v1662 = vpop.f32.mrb[0].mxu0
        %v1663 = vadd.f32 %v1566, %v1662
        %v1664 = vpop.f32.mrb[0].mxu0
        %v1665 = vpop.f32.mrb[0].mxu0
        %v1666 = vadd.f32 %v1569, %v1665
        %v1667 = vpop.f32.mrb[0].mxu0
        %1668 = vmatprep.mubr.bf16.mxu0 0
        %1669 = vmatmul.mubr.bf16.gmra.mrb[0].mxu0 %v1491
        %v1670 = vpop.f32.mrb[0].mxu0
        %v1671 = vadd.f32 %v1574, %v1670
        %v1672 = vpop.f32.mrb[0].mxu0
        %v1673 = vpop.f32.mrb[0].mxu0
        %v1674 = vadd.f32 %v1577, %v1673
        %v1675 = vpop.f32.mrb[0].mxu0
        %1676 = vmatprep.mubr.bf16.mxu0 0
        %1677 = vmatmul.mubr.bf16.gmra.mrb[0].mxu0 %v1494
        %v1678 = vpop.f32.mrb[0].mxu0
        %v1679 = vadd.f32 %v1582, %v1678
        %v1680 = vpop.f32.mrb[0].mxu0
        %v1681 = vpop.f32.mrb[0].mxu0
        %v1682 = vadd.f32 %v1585, %v1681
        %v1683 = vpop.f32.mrb[0].mxu0
        %1684 = vmatprep.mubr.bf16.mxu0 0
        %1685 = vmatmul.mubr.bf16.gmra.mrb[0].mxu0 %v1497
        %v1686 = vpop.f32.mrb[0].mxu0
        %v1687 = vadd.f32 %v1590, %v1686
        %v1688 = vpop.f32.mrb[0].mxu0
        %v1689 = vpop.f32.mrb[0].mxu0
        %v1690 = vadd.f32 %v1593, %v1689
        %v1691 = vpop.f32.mrb[0].mxu0
        %1692 = vdwg.mxu0
        %v1693 = vld [vmem:[%s5] sm:$0x1]
        %v1695 = vlaneseq
        %v1696 = vshrl.u32 %v1695, 7
        %v1697 = vsub.s32 0, %v1696
        %v1698 = vrot.slane %v1693, %v1697
        %v1700 = vmul.f32 %v1631, %v1698
        %v1701 = vmul.f32 %v1634, %v1698
        %v1702 = vmul.f32 %v1639, %v1698
        %v1703 = vmul.f32 %v1642, %v1698
        %v1704 = vmul.f32 %v1647, %v1698
        %v1705 = vmul.f32 %v1650, %v1698
        %v1706 = vmul.f32 %v1655, %v1698
        %v1707 = vmul.f32 %v1658, %v1698
        %v1708 = vmul.f32 %v1663, %v1698
        %v1709 = vmul.f32 %v1666, %v1698
        %v1710 = vmul.f32 %v1671, %v1698
        %v1711 = vmul.f32 %v1674, %v1698
        %v1712 = vmul.f32 %v1679, %v1698
        %v1713 = vmul.f32 %v1682, %v1698
        %v1714 = vmul.f32 %v1687, %v1698
        %v1715 = vmul.f32 %v1690, %v1698
        %v1716 = vld [vmem:[%s6] sm:$0x1]
        %v1718 = vlaneseq
        %v1719 = vshrl.u32 %v1718, 7
        %v1720 = vsub.s32 0, %v1719
        %v1721 = vrot.slane %v1716, %v1720
        %v1723 = vadd.f32 %v1700, %v1721
        %v1724 = vadd.f32 %v1701, %v1721
        %v1725 = vadd.f32 %v1702, %v1721
        %v1726 = vadd.f32 %v1703, %v1721
        %v1727 = vadd.f32 %v1704, %v1721
        %v1728 = vadd.f32 %v1705, %v1721
        %v1729 = vadd.f32 %v1706, %v1721
        %v1730 = vadd.f32 %v1707, %v1721
        %v1731 = vadd.f32 %v1708, %v1721
        %v1732 = vadd.f32 %v1709, %v1721
        %v1733 = vadd.f32 %v1710, %v1721
        %v1734 = vadd.f32 %v1711, %v1721
        %v1735 = vadd.f32 %v1712, %v1721
        %v1736 = vadd.f32 %v1713, %v1721
        %v1737 = vadd.f32 %v1714, %v1721
        %v1738 = vadd.f32 %v1715, %v1721
        %v1739 = vmax.f32 %v1723, 0.0
        %v1740 = vmax.f32 %v1724, 0.0
        %v1741 = vmax.f32 %v1725, 0.0
        %v1742 = vmax.f32 %v1726, 0.0
        %v1743 = vmax.f32 %v1727, 0.0
        %v1744 = vmax.f32 %v1728, 0.0
        %v1745 = vmax.f32 %v1729, 0.0
        %v1746 = vmax.f32 %v1730, 0.0
        %v1747 = vmax.f32 %v1731, 0.0
        %v1748 = vmax.f32 %v1732, 0.0
        %v1749 = vmax.f32 %v1733, 0.0
        %v1750 = vmax.f32 %v1734, 0.0
        %v1751 = vmax.f32 %v1735, 0.0
        %v1752 = vmax.f32 %v1736, 0.0
        %v1753 = vmax.f32 %v1737, 0.0
        %v1754 = vmax.f32 %v1738, 0.0
        %v1755 = vpack.c.bf16 %v1740, %v1739
        %v1756 = vpack.c.bf16 %v1742, %v1741
        %v1757 = vpack.c.bf16 %v1744, %v1743
        %v1758 = vpack.c.bf16 %v1746, %v1745
        %v1759 = vpack.c.bf16 %v1748, %v1747
        %v1760 = vpack.c.bf16 %v1750, %v1749
        %v1761 = vpack.c.bf16 %v1752, %v1751
        %v1762 = vpack.c.bf16 %v1754, %v1753
        %v1763 = vld [vmem:[%s7] sm:$0xf]
        %v1764 = vld [vmem:[%s7 + $0x4] sm:$0xf]
        %v1765 = vld [vmem:[%s7 + $0x8] sm:$0xf]
        %v1766 = vld [vmem:[%s7 + $0xc] sm:$0xf]
        %v1771 = vunpack.c.l.b16 %v1763
        %v1772 = vunpack.c.l.b16 %v1764
        %v1773 = vunpack.c.l.b16 %v1765
        %v1774 = vunpack.c.l.b16 %v1766
        %v1775 = vpack.c.b16 %v1772, %v1771
        %v1776 = vpack.c.b16 %v1774, %v1773
        %v1780 = vsel %vm1210, %v1755, 0
        %v1783 = vsel %vm1210, %v1756, 0
        %v1786 = vsel %vm1210, %v1757, 0
        %v1789 = vsel %vm1210, %v1758, 0
        %v1792 = vsel %vm1210, %v1759, 0
        %v1795 = vsel %vm1210, %v1760, 0
        %v1798 = vsel %vm1210, %v1761, 0
        %v1801 = vsel %vm1210, %v1762, 0
        %1803 = vmatprep.subr.bf16.mxu0 0
        %1804 = vmatpush1.bf16.msra.mxu0 %v1775
        %1805 = vmatprep.subr.bf16.mxu0 0
        %1806 = vmatpush1.bf16.msra.mxu0 %v1776
        %1807 = vmatprep.subr.bf16.mxu0 0
        %1808 = vmatpush1.bf16.msra.mxu0 0
        %1809 = vmatprep.subr.bf16.mxu0 0
        %1810 = vmatpush1.bf16.msra.mxu0 0
        %1811 = vmatprep.subr.bf16.mxu0 0
        %1812 = vmatpush1.bf16.msra.mxu0 0
        %1813 = vmatprep.subr.bf16.mxu0 0
        %1814 = vmatpush1.bf16.msra.mxu0 0
        %1815 = vmatprep.subr.bf16.mxu0 0
        %1816 = vmatpush1.bf16.msra.mxu0 0
        %1817 = vmatprep.subr.bf16.mxu0 0
        %1818 = vmatpush1.bf16.msra.mxu0 0
        %1819 = vmatprep.subr.bf16.mxu0 0
        %1820 = vmatpush1.bf16.msra.mxu0 0
        %1821 = vmatprep.subr.bf16.mxu0 0
        %1822 = vmatpush1.bf16.msra.mxu0 0
        %1823 = vmatprep.subr.bf16.mxu0 0
        %1824 = vmatpush1.bf16.msra.mxu0 0
        %1825 = vmatprep.subr.bf16.mxu0 0
        %1826 = vmatpush1.bf16.msra.mxu0 0
        %1827 = vmatprep.subr.bf16.mxu0 0
        %1828 = vmatpush1.bf16.msra.mxu0 0
        %1829 = vmatprep.subr.bf16.mxu0 0
        %1830 = vmatpush1.bf16.msra.mxu0 0
        %1831 = vmatprep.subr.bf16.mxu0 0
        %1832 = vmatpush1.bf16.msra.mxu0 0
        %1833 = vmatprep.subr.bf16.mxu0 0
        %1834 = vmatpush1.bf16.msra.mxu0 0
        %1835 = vmatprep.mubr.bf16.mxu0 0
        %1836 = vmatmul.mubr.bf16.gmra.mrb[0].mxu0 %v1780
        %v1837 = vpop.f32.mrb[0].mxu0
        %v1838 = vadd.f32 0.0, %v1837
        %v1839 = vpop.f32.mrb[0].mxu0
        %v1840 = vpop.f32.mrb[0].mxu0
        %v1841 = vadd.f32 0.0, %v1840
        %v1842 = vpop.f32.mrb[0].mxu0
        %1843 = vmatprep.mubr.bf16.mxu0 0
        %1844 = vmatmul.mubr.bf16.gmra.mrb[0].mxu0 %v1783
        %v1845 = vpop.f32.mrb[0].mxu0
        %v1846 = vadd.f32 0.0, %v1845
        %v1847 = vpop.f32.mrb[0].mxu0
        %v1848 = vpop.f32.mrb[0].mxu0
        %v1849 = vadd.f32 0.0, %v1848
        %v1850 = vpop.f32.mrb[0].mxu0
        %1851 = vmatprep.mubr.bf16.mxu0 0
        %1852 = vmatmul.mubr.bf16.gmra.mrb[0].mxu0 %v1786
        %v1853 = vpop.f32.mrb[0].mxu0
        %v1854 = vadd.f32 0.0, %v1853
        %v1855 = vpop.f32.mrb[0].mxu0
        %v1856 = vpop.f32.mrb[0].mxu0
        %v1857 = vadd.f32 0.0, %v1856
        %v1858 = vpop.f32.mrb[0].mxu0
        %1859 = vmatprep.mubr.bf16.mxu0 0
        %1860 = vmatmul.mubr.bf16.gmra.mrb[0].mxu0 %v1789
        %v1861 = vpop.f32.mrb[0].mxu0
        %v1862 = vadd.f32 0.0, %v1861
        %v1863 = vpop.f32.mrb[0].mxu0
        %v1864 = vpop.f32.mrb[0].mxu0
        %v1865 = vadd.f32 0.0, %v1864
        %v1866 = vpop.f32.mrb[0].mxu0
        %1867 = vmatprep.mubr.bf16.mxu0 0
        %1868 = vmatmul.mubr.bf16.gmra.mrb[0].mxu0 %v1792
        %v1869 = vpop.f32.mrb[0].mxu0
        %v1870 = vadd.f32 0.0, %v1869
        %v1871 = vpop.f32.mrb[0].mxu0
        %v1872 = vpop.f32.mrb[0].mxu0
        %v1873 = vadd.f32 0.0, %v1872
        %v1874 = vpop.f32.mrb[0].mxu0
        %1875 = vmatprep.mubr.bf16.mxu0 0
        %1876 = vmatmul.mubr.bf16.gmra.mrb[0].mxu0 %v1795
        %v1877 = vpop.f32.mrb[0].mxu0
        %v1878 = vadd.f32 0.0, %v1877
        %v1879 = vpop.f32.mrb[0].mxu0
        %v1880 = vpop.f32.mrb[0].mxu0
        %v1881 = vadd.f32 0.0, %v1880
        %v1882 = vpop.f32.mrb[0].mxu0
        %1883 = vmatprep.mubr.bf16.mxu0 0
        %1884 = vmatmul.mubr.bf16.gmra.mrb[0].mxu0 %v1798
        %v1885 = vpop.f32.mrb[0].mxu0
        %v1886 = vadd.f32 0.0, %v1885
        %v1887 = vpop.f32.mrb[0].mxu0
        %v1888 = vpop.f32.mrb[0].mxu0
        %v1889 = vadd.f32 0.0, %v1888
        %v1890 = vpop.f32.mrb[0].mxu0
        %1891 = vmatprep.mubr.bf16.mxu0 0
        %1892 = vmatmul.mubr.bf16.gmra.mrb[0].mxu0 %v1801
        %v1893 = vpop.f32.mrb[0].mxu0
        %v1894 = vadd.f32 0.0, %v1893
        %v1895 = vpop.f32.mrb[0].mxu0
        %v1896 = vpop.f32.mrb[0].mxu0
        %v1897 = vadd.f32 0.0, %v1896
        %v1898 = vpop.f32.mrb[0].mxu0
        %1899 = vdwg.mxu0
        %v1900 = vld [vmem:[%s8] sm:$0x1]
        %v1902 = vlaneseq
        %v1903 = vshrl.u32 %v1902, 7
        %v1904 = vsub.s32 0, %v1903
        %v1905 = vrot.slane %v1900, %v1904
        %v1907 = vmul.f32 %v1838, %v1905
        %v1908 = vmul.f32 %v1841, %v1905
        %v1909 = vmul.f32 %v1846, %v1905
        %v1910 = vmul.f32 %v1849, %v1905
        %v1911 = vmul.f32 %v1854, %v1905
        %v1912 = vmul.f32 %v1857, %v1905
        %v1913 = vmul.f32 %v1862, %v1905
        %v1914 = vmul.f32 %v1865, %v1905
        %v1915 = vmul.f32 %v1870, %v1905
        %v1916 = vmul.f32 %v1873, %v1905
        %v1917 = vmul.f32 %v1878, %v1905
        %v1918 = vmul.f32 %v1881, %v1905
        %v1919 = vmul.f32 %v1886, %v1905
        %v1920 = vmul.f32 %v1889, %v1905
        %v1921 = vmul.f32 %v1894, %v1905
        %v1922 = vmul.f32 %v1897, %v1905
        %v1923 = vld [vmem:[%s9] sm:$0x1]
        %v1925 = vlaneseq
        %v1926 = vshrl.u32 %v1925, 7
        %v1927 = vsub.s32 0, %v1926
        %v1928 = vrot.slane %v1923, %v1927
        %v1930 = vadd.f32 %v1907, %v1928
        %v1931 = vadd.f32 %v1908, %v1928
        %v1932 = vadd.f32 %v1909, %v1928
        %v1933 = vadd.f32 %v1910, %v1928
        %v1934 = vadd.f32 %v1911, %v1928
        %v1935 = vadd.f32 %v1912, %v1928
        %v1936 = vadd.f32 %v1913, %v1928
        %v1937 = vadd.f32 %v1914, %v1928
        %v1938 = vadd.f32 %v1915, %v1928
        %v1939 = vadd.f32 %v1916, %v1928
        %v1940 = vadd.f32 %v1917, %v1928
        %v1941 = vadd.f32 %v1918, %v1928
        %v1942 = vadd.f32 %v1919, %v1928
        %v1943 = vadd.f32 %v1920, %v1928
        %v1944 = vadd.f32 %v1921, %v1928
        %v1945 = vadd.f32 %v1922, %v1928
        %v1946 = vld [vmem:[%s10] sm:$0xf]
        %v1947 = vld [vmem:[%s10 + $0x4] sm:$0xf]
        %v1950 = vunpack.c.l.b16 %v1946
        %v1951 = vunpack.c.l.b16 %v1947
        %v1952 = vpack.c.b16 %v1951, %v1950
        %1954 = vmatprep.subr.bf16.mxu0 0
        %1955 = vmatpush1.bf16.msra.mxu0 %v1952
        %1956 = vmatprep.subr.bf16.mxu0 0
        %1957 = vmatpush1.bf16.msra.mxu0 0
        %1958 = vmatprep.subr.bf16.mxu0 0
        %1959 = vmatpush1.bf16.msra.mxu0 0
        %1960 = vmatprep.subr.bf16.mxu0 0
        %1961 = vmatpush1.bf16.msra.mxu0 0
        %1962 = vmatprep.subr.bf16.mxu0 0
        %1963 = vmatpush1.bf16.msra.mxu0 0
        %1964 = vmatprep.subr.bf16.mxu0 0
        %1965 = vmatpush1.bf16.msra.mxu0 0
        %1966 = vmatprep.subr.bf16.mxu0 0
        %1967 = vmatpush1.bf16.msra.mxu0 0
        %1968 = vmatprep.subr.bf16.mxu0 0
        %1969 = vmatpush1.bf16.msra.mxu0 0
        %1970 = vmatprep.subr.bf16.mxu0 0
        %1971 = vmatpush1.bf16.msra.mxu0 0
        %1972 = vmatprep.subr.bf16.mxu0 0
        %1973 = vmatpush1.bf16.msra.mxu0 0
        %1974 = vmatprep.subr.bf16.mxu0 0
        %1975 = vmatpush1.bf16.msra.mxu0 0
        %1976 = vmatprep.subr.bf16.mxu0 0
        %1977 = vmatpush1.bf16.msra.mxu0 0
        %1978 = vmatprep.subr.bf16.mxu0 0
        %1979 = vmatpush1.bf16.msra.mxu0 0
        %1980 = vmatprep.subr.bf16.mxu0 0
        %1981 = vmatpush1.bf16.msra.mxu0 0
        %1982 = vmatprep.subr.bf16.mxu0 0
        %1983 = vmatpush1.bf16.msra.mxu0 0
        %1984 = vmatprep.subr.bf16.mxu0 0
        %1985 = vmatpush1.bf16.msra.mxu0 0
        %1986 = vmatprep.mubr.bf16.mxu0 0
        %1987 = vmatmul.mubr.bf16.gmra.mrb[0].mxu0 %v497
        %v1988 = vpop.f32.mrb[0].mxu0
        %v1989 = vadd.f32 0.0, %v1988
        %v1990 = vpop.f32.mrb[0].mxu0
        %v1991 = vpop.f32.mrb[0].mxu0
        %v1992 = vadd.f32 0.0, %v1991
        %v1993 = vpop.f32.mrb[0].mxu0
        %1994 = vmatprep.mubr.bf16.mxu0 0
        %1995 = vmatmul.mubr.bf16.gmra.mrb[0].mxu0 %v500
        %v1996 = vpop.f32.mrb[0].mxu0
        %v1997 = vadd.f32 0.0, %v1996
        %v1998 = vpop.f32.mrb[0].mxu0
        %v1999 = vpop.f32.mrb[0].mxu0
        %v2000 = vadd.f32 0.0, %v1999
        %v2001 = vpop.f32.mrb[0].mxu0
        %2002 = vmatprep.mubr.bf16.mxu0 0
        %2003 = vmatmul.mubr.bf16.gmra.mrb[0].mxu0 %v503
        %v2004 = vpop.f32.mrb[0].mxu0
        %v2005 = vadd.f32 0.0, %v2004
        %v2006 = vpop.f32.mrb[0].mxu0
        %v2007 = vpop.f32.mrb[0].mxu0
        %v2008 = vadd.f32 0.0, %v2007
        %v2009 = vpop.f32.mrb[0].mxu0
        %2010 = vmatprep.mubr.bf16.mxu0 0
        %2011 = vmatmul.mubr.bf16.gmra.mrb[0].mxu0 %v506
        %v2012 = vpop.f32.mrb[0].mxu0
        %v2013 = vadd.f32 0.0, %v2012
        %v2014 = vpop.f32.mrb[0].mxu0
        %v2015 = vpop.f32.mrb[0].mxu0
        %v2016 = vadd.f32 0.0, %v2015
        %v2017 = vpop.f32.mrb[0].mxu0
        %2018 = vmatprep.mubr.bf16.mxu0 0
        %2019 = vmatmul.mubr.bf16.gmra.mrb[0].mxu0 %v509
        %v2020 = vpop.f32.mrb[0].mxu0
        %v2021 = vadd.f32 0.0, %v2020
        %v2022 = vpop.f32.mrb[0].mxu0
        %v2023 = vpop.f32.mrb[0].mxu0
        %v2024 = vadd.f32 0.0, %v2023
        %v2025 = vpop.f32.mrb[0].mxu0
        %2026 = vmatprep.mubr.bf16.mxu0 0
        %2027 = vmatmul.mubr.bf16.gmra.mrb[0].mxu0 %v512
        %v2028 = vpop.f32.mrb[0].mxu0
        %v2029 = vadd.f32 0.0, %v2028
        %v2030 = vpop.f32.mrb[0].mxu0
        %v2031 = vpop.f32.mrb[0].mxu0
        %v2032 = vadd.f32 0.0, %v2031
        %v2033 = vpop.f32.mrb[0].mxu0
        %2034 = vmatprep.mubr.bf16.mxu0 0
        %2035 = vmatmul.mubr.bf16.gmra.mrb[0].mxu0 %v515
        %v2036 = vpop.f32.mrb[0].mxu0
        %v2037 = vadd.f32 0.0, %v2036
        %v2038 = vpop.f32.mrb[0].mxu0
        %v2039 = vpop.f32.mrb[0].mxu0
        %v2040 = vadd.f32 0.0, %v2039
        %v2041 = vpop.f32.mrb[0].mxu0
        %2042 = vmatprep.mubr.bf16.mxu0 0
        %2043 = vmatmul.mubr.bf16.gmra.mrb[0].mxu0 %v518
        %v2044 = vpop.f32.mrb[0].mxu0
        %v2045 = vadd.f32 0.0, %v2044
        %v2046 = vpop.f32.mrb[0].mxu0
        %v2047 = vpop.f32.mrb[0].mxu0
        %v2048 = vadd.f32 0.0, %v2047
        %v2049 = vpop.f32.mrb[0].mxu0
        %2050 = vdwg.mxu0
        %v2051 = vld [vmem:[%s11] sm:$0x1]
        %v2053 = vlaneseq
        %v2054 = vshrl.u32 %v2053, 7
        %v2055 = vsub.s32 0, %v2054
        %v2056 = vrot.slane %v2051, %v2055
        %v2058 = vmul.f32 %v1989, %v2056
        %v2059 = vmul.f32 %v1992, %v2056
        %v2060 = vmul.f32 %v1997, %v2056
        %v2061 = vmul.f32 %v2000, %v2056
        %v2062 = vmul.f32 %v2005, %v2056
        %v2063 = vmul.f32 %v2008, %v2056
        %v2064 = vmul.f32 %v2013, %v2056
        %v2065 = vmul.f32 %v2016, %v2056
        %v2066 = vmul.f32 %v2021, %v2056
        %v2067 = vmul.f32 %v2024, %v2056
        %v2068 = vmul.f32 %v2029, %v2056
        %v2069 = vmul.f32 %v2032, %v2056
        %v2070 = vmul.f32 %v2037, %v2056
        %v2071 = vmul.f32 %v2040, %v2056
        %v2072 = vmul.f32 %v2045, %v2056
        %v2073 = vmul.f32 %v2048, %v2056
        %v2074 = vld [vmem:[%s12] sm:$0x1]
        %v2076 = vlaneseq
        %v2077 = vshrl.u32 %v2076, 7
        %v2078 = vsub.s32 0, %v2077
        %v2079 = vrot.slane %v2074, %v2078
        %v2081 = vadd.f32 %v2058, %v2079
        %v2082 = vadd.f32 %v2059, %v2079
        %v2083 = vadd.f32 %v2060, %v2079
        %v2084 = vadd.f32 %v2061, %v2079
        %v2085 = vadd.f32 %v2062, %v2079
        %v2086 = vadd.f32 %v2063, %v2079
        %v2087 = vadd.f32 %v2064, %v2079
        %v2088 = vadd.f32 %v2065, %v2079
        %v2089 = vadd.f32 %v2066, %v2079
        %v2090 = vadd.f32 %v2067, %v2079
        %v2091 = vadd.f32 %v2068, %v2079
        %v2092 = vadd.f32 %v2069, %v2079
        %v2093 = vadd.f32 %v2070, %v2079
        %v2094 = vadd.f32 %v2071, %v2079
        %v2095 = vadd.f32 %v2072, %v2079
        %v2096 = vadd.f32 %v2073, %v2079
        %v2097 = vadd.f32 %v1930, %v2081
        %v2098 = vadd.f32 %v1931, %v2082
        %v2099 = vadd.f32 %v1932, %v2083
        %v2100 = vadd.f32 %v1933, %v2084
        %v2101 = vadd.f32 %v1934, %v2085
        %v2102 = vadd.f32 %v1935, %v2086
        %v2103 = vadd.f32 %v1936, %v2087
        %v2104 = vadd.f32 %v1937, %v2088
        %v2105 = vadd.f32 %v1938, %v2089
        %v2106 = vadd.f32 %v1939, %v2090
        %v2107 = vadd.f32 %v1940, %v2091
        %v2108 = vadd.f32 %v1941, %v2092
        %v2109 = vadd.f32 %v1942, %v2093
        %v2110 = vadd.f32 %v1943, %v2094
        %v2111 = vadd.f32 %v1944, %v2095
        %v2112 = vadd.f32 %v1945, %v2096
        %v2113 = vmax.f32 %v2097, 0.0
        %v2114 = vmax.f32 %v2098, 0.0
        %v2115 = vmax.f32 %v2099, 0.0
        %v2116 = vmax.f32 %v2100, 0.0
        %v2117 = vmax.f32 %v2101, 0.0
        %v2118 = vmax.f32 %v2102, 0.0
        %v2119 = vmax.f32 %v2103, 0.0
        %v2120 = vmax.f32 %v2104, 0.0
        %v2121 = vmax.f32 %v2105, 0.0
        %v2122 = vmax.f32 %v2106, 0.0
        %v2123 = vmax.f32 %v2107, 0.0
        %v2124 = vmax.f32 %v2108, 0.0
        %v2125 = vmax.f32 %v2109, 0.0
        %v2126 = vmax.f32 %v2110, 0.0
        %v2127 = vmax.f32 %v2111, 0.0
        %v2128 = vmax.f32 %v2112, 0.0
        %2129 = vst [vmem:[%s459] sm:$0xff] %v2113
        %2130 = vst [vmem:[%s459 + $0x8] sm:$0xff] %v2114
        %2131 = vst [vmem:[%s459 + $0x10] sm:$0xff] %v2115
        %2132 = vst [vmem:[%s459 + $0x18] sm:$0xff] %v2116
        %2133 = vst [vmem:[%s459 + $0x20] sm:$0xff] %v2117
        %2134 = vst [vmem:[%s459 + $0x28] sm:$0xff] %v2118
        %2135 = vst [vmem:[%s459 + $0x30] sm:$0xff] %v2119
        %2136 = vst [vmem:[%s459 + $0x38] sm:$0xff] %v2120
        %2137 = vst [vmem:[%s459 + $0x40] sm:$0xff] %v2121
        %2138 = vst [vmem:[%s459 + $0x48] sm:$0xff] %v2122
        %2139 = vst [vmem:[%s459 + $0x50] sm:$0xff] %v2123
        %2140 = vst [vmem:[%s459 + $0x58] sm:$0xff] %v2124
        %2141 = vst [vmem:[%s459 + $0x60] sm:$0xff] %v2125
        %2142 = vst [vmem:[%s459 + $0x68] sm:$0xff] %v2126
        %2143 = vst [vmem:[%s459 + $0x70] sm:$0xff] %v2127
        %2144 = vst [vmem:[%s459 + $0x78] sm:$0xff] %v2128
        %s2145 = sand.u32 %s316, 1
        %s2146 = scalar_lea.sflag [#allocation4], %s2145
        %s2147 = sand.u32 %s316, 1
        %s2148 = smul.addr %s2147, 128
        %s2149 = scalar_lea.vmem [#allocation5], %s2148
        // Predicated region
        $region77: #{tpu_custom_call.1} parent=71 // pred_check
          %p2150 = pneg %p326
        $region78: #{tpu_custom_call.1} parent=71 // pred_check_branch
          %2152 = sbr.rel (%p2150) target = $region80
        $region79: #{tpu_custom_call.1} parent=71 // pred_region
          %s2153 = smul.u32 2, %s30
          %s2155 = ssub.s32 2048, 2048
          %2156 = vsyncadd %s2146, %s2155
          %s2157 = smul.addr %s2153, 8
          %s2158 = smul.addr %s2157, 128
          %s2159 = scalar_lea.hbm %s13, %s2158
          %s2160 = sshll.u32 %s2149, 4
          %s2161 = int_to_ptr.vmem [resolvable:$true] %s2160
          %2166 = dma.vmem_to_hbm [thread:$0]  %s2161, 2048, %s2159, %s2146, 128, 128, 8
        $region80: #{tpu_custom_call.1} parent=71 // pred_fallthru
          _
      $region72: #{tpu_custom_call.1} parent=5 // pred_fallthru
        _
      %p2167 = scmp.le.s32.totalorder 2, %s25
      // Predicated region
      $region81: #{tpu_custom_call.1} parent=5 // pred_check
        %p2168 = pneg %p2167
      $region82: #{tpu_custom_call.1} parent=5 // pred_check_branch
        %2170 = sbr.rel (%p2168) target = $region84
      $region83: #{tpu_custom_call.1} parent=5 // pred_region
        %s2171 = ssub.s32 %s25, 2
        // Predicated region
        $region85: #{tpu_custom_call.1} parent=83 // pred_check
          %p2172 = pneg %p332
        $region86: #{tpu_custom_call.1} parent=83 // pred_check_branch
          %2174 = sbr.rel (%p2172) target = $region88
        $region87: #{tpu_custom_call.1} parent=83 // pred_region
          %s2175 = sand.u32 %s317, 1
          %s2176 = scalar_lea.sflag [#allocation4], %s2175
          %s2177 = sand.u32 %s317, 1
          %s2178 = smul.addr %s2177, 128
          %s2179 = scalar_lea.vmem [#allocation5], %s2178
          %2180 = dma.done %s2176, 2048
        $region88: #{tpu_custom_call.1} parent=83 // pred_fallthru
          _
      $region84: #{tpu_custom_call.1} parent=5 // pred_fallthru
        _
    $region6: #{tpu_custom_call.1} parent=1 // loop_footer
      %s29 = sadd.s32 1, %s25
    $region7: #{tpu_custom_call.1} parent=1 // loop_footer_branch
      %24 = sbr.rel target = $region3
    $region8: #{tpu_custom_call.1} parent=1 // loop_exit
      _
    %2181 = vsyncpa [#allocation3], 1
    %s2182 = scalar_lea.sflag [#allocation3], 1
    %2183 = vsyncpa %s2182, 1
    %2184 = vsyncpa [#allocation4], 1
    %s2185 = scalar_lea.sflag [#allocation4], 1
    %2186 = vsyncpa %s2185, 1

// kernel: tpu_custom_call.1
$region0: #{tpu_custom_call.1}
  #allocation0 [shape = 'u32[]', space=smem, size = 0x4, offset = 0x4, fixed_abs, tag = 'smem constant byte address 0x4 - core index']
  #allocation1 [shape = 'u32[144,128]{1,0:T(1,128)}', space=vmem, size = 0x12000, scoped, tag = 'internal scratch']
  #allocation2 [shape = 'f32[2,10,10,32]{3,2,1,0:T(8,128)}', space=vmem, size = 0x28000, scoped, tag = 'scratch operand']
  %s0 = inlined_call_operand.hbm [shape: f32[8,8,8,16], index: 0, kind: input, shape index: {}]
  %s1 = inlined_call_operand.vmem [shape: bf16[16,32], index: 1, kind: input, shape index: {}]
  %s2 = inlined_call_operand.vmem [shape: f32[1,32], index: 2, kind: input, shape index: {}]
  %s3 = inlined_call_operand.vmem [shape: f32[1,32], index: 3, kind: input, shape index: {}]
  %s4 = inlined_call_operand.vmem [shape: bf16[288,32], index: 4, kind: input, shape index: {}]
  %s5 = inlined_call_operand.vmem [shape: f32[1,32], index: 5, kind: input, shape index: {}]
  %s6 = inlined_call_operand.vmem [shape: f32[1,32], index: 6, kind: input, shape index: {}]
  %s7 = inlined_call_operand.vmem [shape: bf16[32,128], index: 7, kind: input, shape index: {}]
  %s8 = inlined_call_operand.vmem [shape: f32[1,128], index: 8, kind: input, shape index: {}]
  %s9 = inlined_call_operand.vmem [shape: f32[1,128], index: 9, kind: input, shape index: {}]
  %s10 = inlined_call_operand.vmem [shape: bf16[16,128], index: 10, kind: input, shape index: {}]
  %s11 = inlined_call_operand.vmem [shape: f32[1,128], index: 11, kind: input, shape index: {}]
  %s12 = inlined_call_operand.vmem [shape: f32[1,128], index: 12, kind: input, shape index: {}]
  %s13 = inlined_call_operand.hbm [shape: f32[8,64,128], index: 13, kind: output, shape index: {}]
  %s14 = sld [smem:[#allocation0]]
  $region89: #{tpu_custom_call.1} parent=0
    _
  %s16 = ssub.s32 1, %s14
  %s17 = scalar_select 0, %s16, %s14
  $region1: #{tpu_custom_call.1} parent=0
    #allocation3 [shape = 'u8[131072]{0}', space=vmem, size = 0x20000, scoped, tag = 'input window, operand 0']
    #allocation4 [shape = 's32[2]{0}', space=sflag, size = 0x8, scoped, tag = 'scoped memory for tpu_custom_call.1']
    #allocation5 [shape = 's32[2]{0}', space=sflag, size = 0x8, scoped, tag = 'scoped memory for tpu_custom_call.1']
    #allocation6 [shape = 'u8[131072]{0}', space=vmem, size = 0x20000, scoped, tag = 'output window, operand 0']
    %18 = vsyncpa [#allocation4], 0
    %s19 = scalar_lea.sflag [#allocation4], 1
    %20 = vsyncpa %s19, 0
    %21 = vsyncpa [#allocation5], 0
    %s22 = scalar_lea.sflag [#allocation5], 1
    %23 = vsyncpa %s22, 0
    loop: start=0, step=1, limit=6
    $region2: #{tpu_custom_call.1} parent=1 // loop_pre_header
      _
    $region3: #{tpu_custom_call.1} parent=1 // loop_header
      %s25 = sphi 0, %s29
      %p26 = scmp.ge.s32.totalorder %s25, 6
      %s35 = sphi 0, %s37
      %s38 = sphi 0, %s35
      %s39 = sphi 0, %s38
      %s55 = sphi 0, %s39
      %s59 = sphi 0, %s59
      %s61 = sphi 0, %s59
      %s62 = sphi 0, %s61
      %s76 = sphi 0, %s62
      %s80 = sphi 0, %s80
      %s82 = sphi 0, %s80
      %s83 = sphi 0, %s82
      %s97 = sphi 0, %s83
      %s101 = sphi 0, %s101
      %s103 = sphi 0, %s101
      %s104 = sphi 0, %s103
      %s118 = sphi 0, %s104
      %s122 = sphi 0, %s122
      %s124 = sphi 0, %s122
      %s125 = sphi 0, %s124
      %s139 = sphi 0, %s125
      %s143 = sphi 0, %s143
      %s145 = sphi 0, %s143
      %s146 = sphi 0, %s145
      %s160 = sphi 0, %s146
      %s164 = sphi 0, %s164
      %s166 = sphi 0, %s164
      %s167 = sphi 0, %s166
      %s181 = sphi 0, %s167
      %s185 = sphi 0, %s185
      %s187 = sphi 0, %s185
      %s188 = sphi 0, %s187
      %s202 = sphi 0, %s188
      %s206 = sphi 0, %s206
      %s208 = sphi 0, %s206
      %s209 = sphi 0, %s208
      %s223 = sphi 0, %s209
      %s227 = sphi 0, %s227
      %s229 = sphi 0, %s227
      %s230 = sphi 0, %s229
      %s244 = sphi 0, %s230
      %s248 = sphi 0, %s248
      %s250 = sphi 0, %s248
      %s251 = sphi 0, %s250
      %s265 = sphi 0, %s251
      %s269 = sphi 0, %s269
      %s271 = sphi 0, %s269
      %s272 = sphi 0, %s271
      %s286 = sphi 0, %s272
      %s290 = sphi 0, %s290
      %s292 = sphi 0, %s290
      %s293 = sphi 0, %s292
      %s307 = sphi 0, %s293
      %s313 = sphi 0, %s315
      %s316 = sphi 0, %s313
      %s317 = sphi 0, %s316
      %s333 = sphi 0, %s317
    $region4: #{tpu_custom_call.1} parent=1 // loop_header_branch
      %28 = sbr.rel (%p26) target = $region8
    $region5: #{tpu_custom_call.1} parent=1 // loop_body
      %s30 = ssub.s32 %s25, 1
      %s31 = ssub.s32 %s25, 2
      %s32 = sadd.s32 %s25, 1
      %s33 = ssub.s32 %s25, %s32
      %p34 = scmp.eq.s32.totalorder %s33, 0
      %s36 = sadd.s32 %s35, 1
      %s37 = scalar_select %p34, %s35, %s36
      %p40 = pneg %p34
      %p41 = scmp.eq.s32.totalorder %s25, 3
      %p42 = por %p40, %p41
      %p43 = scmp.ne.s32.totalorder %s35, %s38
      %p44 = scmp.eq.s32.totalorder %s25, 0
      %p45 = por %p43, %p44
      %p46 = scmp.ne.s32.totalorder %s35, %s38
      %p47 = scmp.eq.s32.totalorder %s30, 3
      %p48 = por %p46, %p47
      %p49 = scmp.ne.s32.totalorder %s38, %s39
      %p50 = scmp.eq.s32.totalorder %s30, 0
      %p51 = por %p49, %p50
      %p52 = scmp.ne.s32.totalorder %s38, %s39
      %p53 = scmp.eq.s32.totalorder %s31, 3
      %p54 = por %p52, %p53
      %p56 = scmp.ne.s32.totalorder %s39, %s55
      %p57 = scmp.eq.s32.totalorder %s31, 0
      %p58 = por %p56, %p57
      %s60 = sadd.s32 %s59, 1
      %p63 = scmp.eq.s32.totalorder %s25, 3
      %p64 = scmp.ne.s32.totalorder %s59, %s61
      %p65 = scmp.eq.s32.totalorder %s25, 0
      %p66 = por %p64, %p65
      %p67 = scmp.ne.s32.totalorder %s59, %s61
      %p68 = scmp.eq.s32.totalorder %s30, 3
      %p69 = por %p67, %p68
      %p70 = scmp.ne.s32.totalorder %s61, %s62
      %p71 = scmp.eq.s32.totalorder %s30, 0
      %p72 = por %p70, %p71
      %p73 = scmp.ne.s32.totalorder %s61, %s62
      %p74 = scmp.eq.s32.totalorder %s31, 3
      %p75 = por %p73, %p74
      %p77 = scmp.ne.s32.totalorder %s62, %s76
      %p78 = scmp.eq.s32.totalorder %s31, 0
      %p79 = por %p77, %p78
      %s81 = sadd.s32 %s80, 1
      %p84 = scmp.eq.s32.totalorder %s25, 3
      %p85 = scmp.ne.s32.totalorder %s80, %s82
      %p86 = scmp.eq.s32.totalorder %s25, 0
      %p87 = por %p85, %p86
      %p88 = scmp.ne.s32.totalorder %s80, %s82
      %p89 = scmp.eq.s32.totalorder %s30, 3
      %p90 = por %p88, %p89
      %p91 = scmp.ne.s32.totalorder %s82, %s83
      %p92 = scmp.eq.s32.totalorder %s30, 0
      %p93 = por %p91, %p92
      %p94 = scmp.ne.s32.totalorder %s82, %s83
      %p95 = scmp.eq.s32.totalorder %s31, 3
      %p96 = por %p94, %p95
      %p98 = scmp.ne.s32.totalorder %s83, %s97
      %p99 = scmp.eq.s32.totalorder %s31, 0
      %p100 = por %p98, %p99
      %s102 = sadd.s32 %s101, 1
      %p105 = scmp.eq.s32.totalorder %s25, 3
      %p106 = scmp.ne.s32.totalorder %s101, %s103
      %p107 = scmp.eq.s32.totalorder %s25, 0
      %p108 = por %p106, %p107
      %p109 = scmp.ne.s32.totalorder %s101, %s103
      %p110 = scmp.eq.s32.totalorder %s30, 3
      %p111 = por %p109, %p110
      %p112 = scmp.ne.s32.totalorder %s103, %s104
      %p113 = scmp.eq.s32.totalorder %s30, 0
      %p114 = por %p112, %p113
      %p115 = scmp.ne.s32.totalorder %s103, %s104
      %p116 = scmp.eq.s32.totalorder %s31, 3
      %p117 = por %p115, %p116
      %p119 = scmp.ne.s32.totalorder %s104, %s118
      %p120 = scmp.eq.s32.totalorder %s31, 0
      %p121 = por %p119, %p120
      %s123 = sadd.s32 %s122, 1
      %p126 = scmp.eq.s32.totalorder %s25, 3
      %p127 = scmp.ne.s32.totalorder %s122, %s124
      %p128 = scmp.eq.s32.totalorder %s25, 0
      %p129 = por %p127, %p128
      %p130 = scmp.ne.s32.totalorder %s122, %s124
      %p131 = scmp.eq.s32.totalorder %s30, 3
      %p132 = por %p130, %p131
      %p133 = scmp.ne.s32.totalorder %s124, %s125
      %p134 = scmp.eq.s32.totalorder %s30, 0
      %p135 = por %p133, %p134
      %p136 = scmp.ne.s32.totalorder %s124, %s125
      %p137 = scmp.eq.s32.totalorder %s31, 3
      %p138 = por %p136, %p137
      %p140 = scmp.ne.s32.totalorder %s125, %s139
      %p141 = scmp.eq.s32.totalorder %s31, 0
      %p142 = por %p140, %p141
      %s144 = sadd.s32 %s143, 1
      %p147 = scmp.eq.s32.totalorder %s25, 3
      %p148 = scmp.ne.s32.totalorder %s143, %s145
      %p149 = scmp.eq.s32.totalorder %s25, 0
      %p150 = por %p148, %p149
      %p151 = scmp.ne.s32.totalorder %s143, %s145
      %p152 = scmp.eq.s32.totalorder %s30, 3
      %p153 = por %p151, %p152
      %p154 = scmp.ne.s32.totalorder %s145, %s146
      %p155 = scmp.eq.s32.totalorder %s30, 0
      %p156 = por %p154, %p155
      %p157 = scmp.ne.s32.totalorder %s145, %s146
      %p158 = scmp.eq.s32.totalorder %s31, 3
      %p159 = por %p157, %p158
      %p161 = scmp.ne.s32.totalorder %s146, %s160
      %p162 = scmp.eq.s32.totalorder %s31, 0
      %p163 = por %p161, %p162
      %s165 = sadd.s32 %s164, 1
      %p168 = scmp.eq.s32.totalorder %s25, 3
      %p169 = scmp.ne.s32.totalorder %s164, %s166
      %p170 = scmp.eq.s32.totalorder %s25, 0
      %p171 = por %p169, %p170
      %p172 = scmp.ne.s32.totalorder %s164, %s166
      %p173 = scmp.eq.s32.totalorder %s30, 3
      %p174 = por %p172, %p173
      %p175 = scmp.ne.s32.totalorder %s166, %s167
      %p176 = scmp.eq.s32.totalorder %s30, 0
      %p177 = por %p175, %p176
      %p178 = scmp.ne.s32.totalorder %s166, %s167
      %p179 = scmp.eq.s32.totalorder %s31, 3
      %p180 = por %p178, %p179
      %p182 = scmp.ne.s32.totalorder %s167, %s181
      %p183 = scmp.eq.s32.totalorder %s31, 0
      %p184 = por %p182, %p183
      %s186 = sadd.s32 %s185, 1
      %p189 = scmp.eq.s32.totalorder %s25, 3
      %p190 = scmp.ne.s32.totalorder %s185, %s187
      %p191 = scmp.eq.s32.totalorder %s25, 0
      %p192 = por %p190, %p191
      %p193 = scmp.ne.s32.totalorder %s185, %s187
      %p194 = scmp.eq.s32.totalorder %s30, 3
      %p195 = por %p193, %p194
      %p196 = scmp.ne.s32.totalorder %s187, %s188
      %p197 = scmp.eq.s32.totalorder %s30, 0
      %p198 = por %p196, %p197
      %p199 = scmp.ne.s32.totalorder %s187, %s188
      %p200 = scmp.eq.s32.totalorder %s31, 3
      %p201 = por %p199, %p200
      %p203 = scmp.ne.s32.totalorder %s188, %s202
      %p204 = scmp.eq.s32.totalorder %s31, 0
      %p205 = por %p203, %p204
      %s207 = sadd.s32 %s206, 1
      %p210 = scmp.eq.s32.totalorder %s25, 3
      %p211 = scmp.ne.s32.totalorder %s206, %s208
      %p212 = scmp.eq.s32.totalorder %s25, 0
      %p213 = por %p211, %p212
      %p214 = scmp.ne.s32.totalorder %s206, %s208
      %p215 = scmp.eq.s32.totalorder %s30, 3
      %p216 = por %p214, %p215
      %p217 = scmp.ne.s32.totalorder %s208, %s209
      %p218 = scmp.eq.s32.totalorder %s30, 0
      %p219 = por %p217, %p218
      %p220 = scmp.ne.s32.totalorder %s208, %s209
      %p221 = scmp.eq.s32.totalorder %s31, 3
      %p222 = por %p220, %p221
      %p224 = scmp.ne.s32.totalorder %s209, %s223
      %p225 = scmp.eq.s32.totalorder %s31, 0
      %p226 = por %p224, %p225
      %s228 = sadd.s32 %s227, 1
      %p231 = scmp.eq.s32.totalorder %s25, 3
      %p232 = scmp.ne.s32.totalorder %s227, %s229
      %p233 = scmp.eq.s32.totalorder %s25, 0
      %p234 = por %p232, %p233
      %p235 = scmp.ne.s32.totalorder %s227, %s229
      %p236 = scmp.eq.s32.totalorder %s30, 3
      %p237 = por %p235, %p236
      %p238 = scmp.ne.s32.totalorder %s229, %s230
      %p239 = scmp.eq.s32.totalorder %s30, 0
      %p240 = por %p238, %p239
      %p241 = scmp.ne.s32.totalorder %s229, %s230
      %p242 = scmp.eq.s32.totalorder %s31, 3
      %p243 = por %p241, %p242
      %p245 = scmp.ne.s32.totalorder %s230, %s244
      %p246 = scmp.eq.s32.totalorder %s31, 0
      %p247 = por %p245, %p246
      %s249 = sadd.s32 %s248, 1
      %p252 = scmp.eq.s32.totalorder %s25, 3
      %p253 = scmp.ne.s32.totalorder %s248, %s250
      %p254 = scmp.eq.s32.totalorder %s25, 0
      %p255 = por %p253, %p254
      %p256 = scmp.ne.s32.totalorder %s248, %s250
      %p257 = scmp.eq.s32.totalorder %s30, 3
      %p258 = por %p256, %p257
      %p259 = scmp.ne.s32.totalorder %s250, %s251
      %p260 = scmp.eq.s32.totalorder %s30, 0
      %p261 = por %p259, %p260
      %p262 = scmp.ne.s32.totalorder %s250, %s251
      %p263 = scmp.eq.s32.totalorder %s31, 3
      %p264 = por %p262, %p263
      %p266 = scmp.ne.s32.totalorder %s251, %s265
      %p267 = scmp.eq.s32.totalorder %s31, 0
      %p268 = por %p266, %p267
      %s270 = sadd.s32 %s269, 1
      %p273 = scmp.eq.s32.totalorder %s25, 3
      %p274 = scmp.ne.s32.totalorder %s269, %s271
      %p275 = scmp.eq.s32.totalorder %s25, 0
      %p276 = por %p274, %p275
      %p277 = scmp.ne.s32.totalorder %s269, %s271
      %p278 = scmp.eq.s32.totalorder %s30, 3
      %p279 = por %p277, %p278
      %p280 = scmp.ne.s32.totalorder %s271, %s272
      %p281 = scmp.eq.s32.totalorder %s30, 0
      %p282 = por %p280, %p281
      %p283 = scmp.ne.s32.totalorder %s271, %s272
      %p284 = scmp.eq.s32.totalorder %s31, 3
      %p285 = por %p283, %p284
      %p287 = scmp.ne.s32.totalorder %s272, %s286
      %p288 = scmp.eq.s32.totalorder %s31, 0
      %p289 = por %p287, %p288
      %s291 = sadd.s32 %s290, 1
      %p294 = scmp.eq.s32.totalorder %s25, 3
      %p295 = scmp.ne.s32.totalorder %s290, %s292
      %p296 = scmp.eq.s32.totalorder %s25, 0
      %p297 = por %p295, %p296
      %p298 = scmp.ne.s32.totalorder %s290, %s292
      %p299 = scmp.eq.s32.totalorder %s30, 3
      %p300 = por %p298, %p299
      %p301 = scmp.ne.s32.totalorder %s292, %s293
      %p302 = scmp.eq.s32.totalorder %s30, 0
      %p303 = por %p301, %p302
      %p304 = scmp.ne.s32.totalorder %s292, %s293
      %p305 = scmp.eq.s32.totalorder %s31, 3
      %p306 = por %p304, %p305
      %p308 = scmp.ne.s32.totalorder %s293, %s307
      %p309 = scmp.eq.s32.totalorder %s31, 0
      %p310 = por %p308, %p309
      %s311 = ssub.s32 %s25, %s32
      %p312 = scmp.eq.s32.totalorder %s311, 0
      %s314 = sadd.s32 %s313, 1
      %s315 = scalar_select %p312, %s313, %s314
      %p318 = pneg %p312
      %p319 = scmp.eq.s32.totalorder %s25, 3
      %p320 = por %p318, %p319
      %p321 = scmp.ne.s32.totalorder %s313, %s316
      %p322 = scmp.eq.s32.totalorder %s25, 0
      %p323 = por %p321, %p322
      %p324 = scmp.ne.s32.totalorder %s313, %s316
      %p325 = scmp.eq.s32.totalorder %s30, 3
      %p326 = por %p324, %p325
      %p327 = scmp.ne.s32.totalorder %s316, %s317
      %p328 = scmp.eq.s32.totalorder %s30, 0
      %p329 = por %p327, %p328
      %p330 = scmp.ne.s32.totalorder %s316, %s317
      %p331 = scmp.eq.s32.totalorder %s31, 3
      %p332 = por %p330, %p331
      %p334 = scmp.ne.s32.totalorder %s317, %s333
      %p335 = scmp.eq.s32.totalorder %s31, 0
      %p336 = por %p334, %p335
      %p337 = scmp.le.s32.totalorder 1, %s25
      %p338 = scmp.lt.s32.totalorder %s25, 5
      %p339 = pnand %p337, %p338
      %p340 = pneg %p339
      // Predicated region
      $region9: #{tpu_custom_call.1} parent=5 // pred_check
        _
      $region10: #{tpu_custom_call.1} parent=5 // pred_check_branch
        %342 = sbr.rel (%p339) target = $region12
      $region11: #{tpu_custom_call.1} parent=5 // pred_region
        %s343 = ssub.s32 %s25, 1
        // Predicated region
        $region13: #{tpu_custom_call.1} parent=11 // pred_check
          %p344 = pneg %p72
        $region14: #{tpu_custom_call.1} parent=11 // pred_check_branch
          %346 = sbr.rel (%p344) target = $region16
        $region15: #{tpu_custom_call.1} parent=11 // pred_region
          _
        $region16: #{tpu_custom_call.1} parent=11 // pred_fallthru
          _
        // Predicated region
        $region17: #{tpu_custom_call.1} parent=11 // pred_check
          %p347 = pneg %p93
        $region18: #{tpu_custom_call.1} parent=11 // pred_check_branch
          %349 = sbr.rel (%p347) target = $region20
        $region19: #{tpu_custom_call.1} parent=11 // pred_region
          _
        $region20: #{tpu_custom_call.1} parent=11 // pred_fallthru
          _
        // Predicated region
        $region21: #{tpu_custom_call.1} parent=11 // pred_check
          %p350 = pneg %p114
        $region22: #{tpu_custom_call.1} parent=11 // pred_check_branch
          %352 = sbr.rel (%p350) target = $region24
        $region23: #{tpu_custom_call.1} parent=11 // pred_region
          _
        $region24: #{tpu_custom_call.1} parent=11 // pred_fallthru
          _
        // Predicated region
        $region25: #{tpu_custom_call.1} parent=11 // pred_check
          %p353 = pneg %p135
        $region26: #{tpu_custom_call.1} parent=11 // pred_check_branch
          %355 = sbr.rel (%p353) target = $region28
        $region27: #{tpu_custom_call.1} parent=11 // pred_region
          _
        $region28: #{tpu_custom_call.1} parent=11 // pred_fallthru
          _
        // Predicated region
        $region29: #{tpu_custom_call.1} parent=11 // pred_check
          %p356 = pneg %p156
        $region30: #{tpu_custom_call.1} parent=11 // pred_check_branch
          %358 = sbr.rel (%p356) target = $region32
        $region31: #{tpu_custom_call.1} parent=11 // pred_region
          _
        $region32: #{tpu_custom_call.1} parent=11 // pred_fallthru
          _
        // Predicated region
        $region33: #{tpu_custom_call.1} parent=11 // pred_check
          %p359 = pneg %p177
        $region34: #{tpu_custom_call.1} parent=11 // pred_check_branch
          %361 = sbr.rel (%p359) target = $region36
        $region35: #{tpu_custom_call.1} parent=11 // pred_region
          _
        $region36: #{tpu_custom_call.1} parent=11 // pred_fallthru
          _
        // Predicated region
        $region37: #{tpu_custom_call.1} parent=11 // pred_check
          %p362 = pneg %p198
        $region38: #{tpu_custom_call.1} parent=11 // pred_check_branch
          %364 = sbr.rel (%p362) target = $region40
        $region39: #{tpu_custom_call.1} parent=11 // pred_region
          _
        $region40: #{tpu_custom_call.1} parent=11 // pred_fallthru
          _
        // Predicated region
        $region41: #{tpu_custom_call.1} parent=11 // pred_check
          %p365 = pneg %p219
        $region42: #{tpu_custom_call.1} parent=11 // pred_check_branch
          %367 = sbr.rel (%p365) target = $region44
        $region43: #{tpu_custom_call.1} parent=11 // pred_region
          _
        $region44: #{tpu_custom_call.1} parent=11 // pred_fallthru
          _
        // Predicated region
        $region45: #{tpu_custom_call.1} parent=11 // pred_check
          %p368 = pneg %p240
        $region46: #{tpu_custom_call.1} parent=11 // pred_check_branch
          %370 = sbr.rel (%p368) target = $region48
        $region47: #{tpu_custom_call.1} parent=11 // pred_region
          _
        $region48: #{tpu_custom_call.1} parent=11 // pred_fallthru
          _
        // Predicated region
        $region49: #{tpu_custom_call.1} parent=11 // pred_check
          %p371 = pneg %p261
        $region50: #{tpu_custom_call.1} parent=11 // pred_check_branch
          %373 = sbr.rel (%p371) target = $region52
        $region51: #{tpu_custom_call.1} parent=11 // pred_region
          _
        $region52: #{tpu_custom_call.1} parent=11 // pred_fallthru
          _
        // Predicated region
        $region53: #{tpu_custom_call.1} parent=11 // pred_check
          %p374 = pneg %p282
        $region54: #{tpu_custom_call.1} parent=11 // pred_check_branch
          %376 = sbr.rel (%p374) target = $region56
        $region55: #{tpu_custom_call.1} parent=11 // pred_region
          _
        $region56: #{tpu_custom_call.1} parent=11 // pred_fallthru
          _
        // Predicated region
        $region57: #{tpu_custom_call.1} parent=11 // pred_check
          %p377 = pneg %p303
        $region58: #{tpu_custom_call.1} parent=11 // pred_check_branch
          %379 = sbr.rel (%p377) target = $region60
        $region59: #{tpu_custom_call.1} parent=11 // pred_region
          _
        $region60: #{tpu_custom_call.1} parent=11 // pred_fallthru
          _
      $region12: #{tpu_custom_call.1} parent=5 // pred_fallthru
        _
      %p380 = scmp.lt.s32.totalorder %s25, 4
      // Predicated region
      $region61: #{tpu_custom_call.1} parent=5 // pred_check
        %p381 = pneg %p380
      $region62: #{tpu_custom_call.1} parent=5 // pred_check_branch
        %383 = sbr.rel (%p381) target = $region64
      $region63: #{tpu_custom_call.1} parent=5 // pred_region
        // Predicated region
        $region65: #{tpu_custom_call.1} parent=63 // pred_check
          %p384 = pneg %p45
        $region66: #{tpu_custom_call.1} parent=63 // pred_check_branch
          %386 = sbr.rel (%p384) target = $region68
        $region67: #{tpu_custom_call.1} parent=63 // pred_region
          %s387 = sand.u32 %s35, 1
          %s388 = scalar_lea.sflag [#allocation4], %s387
          %s389 = sand.u32 %s35, 1
          %s390 = smul.addr %s389, 128
          %s391 = scalar_lea.vmem [#allocation3], %s390
          %s392 = smul.u32 2, %s25
          %s394 = ssub.s32 2048, 2048
          %395 = vsyncadd %s388, %s394
          %s396 = smul.addr %s392, 8
          %s397 = smul.addr %s396, 128
          %s398 = scalar_lea.hbm %s0, %s397
          %s399 = sshll.u32 %s391, 4
          %s400 = int_to_ptr.vmem [resolvable:$true] %s399
          %405 = dma.hbm_to_vmem [thread:$0]  %s398, 2048, %s400, %s388, 128, 128, 8
        $region68: #{tpu_custom_call.1} parent=63 // pred_fallthru
          _
      $region64: #{tpu_custom_call.1} parent=5 // pred_fallthru
        _
      %p406 = scmp.le.s32.totalorder 1, %s25
      %p407 = scmp.lt.s32.totalorder %s25, 5
      %p408 = pnand %p406, %p407
      %p409 = pneg %p408
      // Predicated region
      $region69: #{tpu_custom_call.1} parent=5 // pred_check
        _
      $region70: #{tpu_custom_call.1} parent=5 // pred_check_branch
        %411 = sbr.rel (%p408) target = $region72
      $region71: #{tpu_custom_call.1} parent=5 // pred_region
        %s412 = ssub.s32 %s25, 1
        %s413 = sand.u32 %s38, 1
        %s414 = scalar_lea.sflag [#allocation4], %s413
        %s415 = sand.u32 %s38, 1
        %s416 = smul.addr %s415, 128
        %s417 = scalar_lea.vmem [#allocation3], %s416
        // Predicated region
        $region73: #{tpu_custom_call.1} parent=71 // pred_check
          %p418 = pneg %p51
        $region74: #{tpu_custom_call.1} parent=71 // pred_check_branch
          %420 = sbr.rel (%p418) target = $region76
        $region75: #{tpu_custom_call.1} parent=71 // pred_region
          %421 = dma.done %s414, 2048
        $region76: #{tpu_custom_call.1} parent=71 // pred_fallthru
          _
        %s422 = sand.u32 %s38, 1
        %s423 = scalar_lea.sflag [#allocation4], %s422
        %s424 = sand.u32 %s38, 1
        %s425 = smul.addr %s424, 128
        %s426 = scalar_lea.vmem [#allocation3], %s425
        %p427 = pneg %p51
        %p428 = pneg %p48
        %p429 = pneg %p72
        %p430 = pneg %p69
        %p431 = pneg %p93
        %p432 = pneg %p90
        %p433 = pneg %p114
        %p434 = pneg %p111
        %p435 = pneg %p135
        %p436 = pneg %p132
        %p437 = pneg %p156
        %p438 = pneg %p153
        %p439 = pneg %p177
        %p440 = pneg %p174
        %p441 = pneg %p198
        %p442 = pneg %p195
        %p443 = pneg %p219
        %p444 = pneg %p216
        %p445 = pneg %p240
        %p446 = pneg %p237
        %p447 = pneg %p261
        %p448 = pneg %p258
        %p449 = pneg %p282
        %p450 = pneg %p279
        %p451 = pneg %p303
        %p452 = pneg %p300
        %p453 = pneg %p329
        %p454 = pneg %p326
        %s455 = sand.u32 %s316, 1
        %s456 = scalar_lea.sflag [#allocation5], %s455
        %s457 = sand.u32 %s316, 1
        %s458 = smul.addr %s457, 128
        %s459 = scalar_lea.vmem [#allocation6], %s458
        %s460 = smul.u32 2, %s30
        %s461 = smul.u32 2, %s30
        %v463 = vld [vmem:[%s417] sm:$0xff]
        %v464 = vld [vmem:[%s417 + $0x8] sm:$0xff]
        %v465 = vld [vmem:[%s417 + $0x10] sm:$0xff]
        %v466 = vld [vmem:[%s417 + $0x18] sm:$0xff]
        %v467 = vld [vmem:[%s417 + $0x20] sm:$0xff]
        %v468 = vld [vmem:[%s417 + $0x28] sm:$0xff]
        %v469 = vld [vmem:[%s417 + $0x30] sm:$0xff]
        %v470 = vld [vmem:[%s417 + $0x38] sm:$0xff]
        %v471 = vld [vmem:[%s417 + $0x40] sm:$0xff]
        %v472 = vld [vmem:[%s417 + $0x48] sm:$0xff]
        %v473 = vld [vmem:[%s417 + $0x50] sm:$0xff]
        %v474 = vld [vmem:[%s417 + $0x58] sm:$0xff]
        %v475 = vld [vmem:[%s417 + $0x60] sm:$0xff]
        %v476 = vld [vmem:[%s417 + $0x68] sm:$0xff]
        %v477 = vld [vmem:[%s417 + $0x70] sm:$0xff]
        %v478 = vld [vmem:[%s417 + $0x78] sm:$0xff]
        %v479 = vpack.c.bf16 %v464, %v463
        %v480 = vpack.c.bf16 %v466, %v465
        %v481 = vpack.c.bf16 %v468, %v467
        %v482 = vpack.c.bf16 %v470, %v469
        %v483 = vpack.c.bf16 %v472, %v471
        %v484 = vpack.c.bf16 %v474, %v473
        %v485 = vpack.c.bf16 %v476, %v475
        %v486 = vpack.c.bf16 %v478, %v477
        %v487 = vld [vmem:[%s1] sm:$0xf]
        %v488 = vld [vmem:[%s1 + $0x4] sm:$0xf]
        %v491 = vunpack.c.l.b16 %v487
        %v492 = vunpack.c.l.b16 %v488
        %v493 = vpack.c.b16 %v492, %v491
        %vm495 = vcmask 130048
        %v497 = vsel %vm495, %v479, 0
        %v500 = vsel %vm495, %v480, 0
        %v503 = vsel %vm495, %v481, 0
        %v506 = vsel %vm495, %v482, 0
        %v509 = vsel %vm495, %v483, 0
        %v512 = vsel %vm495, %v484, 0
        %v515 = vsel %vm495, %v485, 0
        %v518 = vsel %vm495, %v486, 0
        %520 = vmatprep.subr.bf16.mxu0 0
        %521 = vmatpush1.bf16.msra.mxu0 %v493
        %522 = vmatprep.subr.bf16.mxu0 0
        %523 = vmatpush1.bf16.msra.mxu0 0
        %524 = vmatprep.subr.bf16.mxu0 0
        %525 = vmatpush1.bf16.msra.mxu0 0
        %526 = vmatprep.subr.bf16.mxu0 0
        %527 = vmatpush1.bf16.msra.mxu0 0
        %528 = vmatprep.subr.bf16.mxu0 0
        %529 = vmatpush1.bf16.msra.mxu0 0
        %530 = vmatprep.subr.bf16.mxu0 0
        %531 = vmatpush1.bf16.msra.mxu0 0
        %532 = vmatprep.subr.bf16.mxu0 0
        %533 = vmatpush1.bf16.msra.mxu0 0
        %534 = vmatprep.subr.bf16.mxu0 0
        %535 = vmatpush1.bf16.msra.mxu0 0
        %536 = vmatprep.subr.bf16.mxu0 0
        %537 = vmatpush1.bf16.msra.mxu0 0
        %538 = vmatprep.subr.bf16.mxu0 0
        %539 = vmatpush1.bf16.msra.mxu0 0
        %540 = vmatprep.subr.bf16.mxu0 0
        %541 = vmatpush1.bf16.msra.mxu0 0
        %542 = vmatprep.subr.bf16.mxu0 0
        %543 = vmatpush1.bf16.msra.mxu0 0
        %544 = vmatprep.subr.bf16.mxu0 0
        %545 = vmatpush1.bf16.msra.mxu0 0
        %546 = vmatprep.subr.bf16.mxu0 0
        %547 = vmatpush1.bf16.msra.mxu0 0
        %548 = vmatprep.subr.bf16.mxu0 0
        %549 = vmatpush1.bf16.msra.mxu0 0
        %550 = vmatprep.subr.bf16.mxu0 0
        %551 = vmatpush1.bf16.msra.mxu0 0
        %552 = vmatprep.mubr.bf16.mxu0 0
        %553 = vmatmul.mubr.bf16.gmra.mrb[0].mxu0 %v497
        %v554 = vpop.f32.mrb[0].mxu0
        %v555 = vadd.f32 0.0, %v554
        %v556 = vpop.f32.mrb[0].mxu0
        %v557 = vpop.f32.mrb[0].mxu0
        %v558 = vadd.f32 0.0, %v557
        %v559 = vpop.f32.mrb[0].mxu0
        %560 = vmatprep.mubr.bf16.mxu0 0
        %561 = vmatmul.mubr.bf16.gmra.mrb[0].mxu0 %v500
        %v562 = vpop.f32.mrb[0].mxu0
        %v563 = vadd.f32 0.0, %v562
        %v564 = vpop.f32.mrb[0].mxu0
        %v565 = vpop.f32.mrb[0].mxu0
        %v566 = vadd.f32 0.0, %v565
        %v567 = vpop.f32.mrb[0].mxu0
        %568 = vmatprep.mubr.bf16.mxu0 0
        %569 = vmatmul.mubr.bf16.gmra.mrb[0].mxu0 %v503
        %v570 = vpop.f32.mrb[0].mxu0
        %v571 = vadd.f32 0.0, %v570
        %v572 = vpop.f32.mrb[0].mxu0
        %v573 = vpop.f32.mrb[0].mxu0
        %v574 = vadd.f32 0.0, %v573
        %v575 = vpop.f32.mrb[0].mxu0
        %576 = vmatprep.mubr.bf16.mxu0 0
        %577 = vmatmul.mubr.bf16.gmra.mrb[0].mxu0 %v506
        %v578 = vpop.f32.mrb[0].mxu0
        %v579 = vadd.f32 0.0, %v578
        %v580 = vpop.f32.mrb[0].mxu0
        %v581 = vpop.f32.mrb[0].mxu0
        %v582 = vadd.f32 0.0, %v581
        %v583 = vpop.f32.mrb[0].mxu0
        %584 = vmatprep.mubr.bf16.mxu0 0
        %585 = vmatmul.mubr.bf16.gmra.mrb[0].mxu0 %v509
        %v586 = vpop.f32.mrb[0].mxu0
        %v587 = vadd.f32 0.0, %v586
        %v588 = vpop.f32.mrb[0].mxu0
        %v589 = vpop.f32.mrb[0].mxu0
        %v590 = vadd.f32 0.0, %v589
        %v591 = vpop.f32.mrb[0].mxu0
        %592 = vmatprep.mubr.bf16.mxu0 0
        %593 = vmatmul.mubr.bf16.gmra.mrb[0].mxu0 %v512
        %v594 = vpop.f32.mrb[0].mxu0
        %v595 = vadd.f32 0.0, %v594
        %v596 = vpop.f32.mrb[0].mxu0
        %v597 = vpop.f32.mrb[0].mxu0
        %v598 = vadd.f32 0.0, %v597
        %v599 = vpop.f32.mrb[0].mxu0
        %600 = vmatprep.mubr.bf16.mxu0 0
        %601 = vmatmul.mubr.bf16.gmra.mrb[0].mxu0 %v515
        %v602 = vpop.f32.mrb[0].mxu0
        %v603 = vadd.f32 0.0, %v602
        %v604 = vpop.f32.mrb[0].mxu0
        %v605 = vpop.f32.mrb[0].mxu0
        %v606 = vadd.f32 0.0, %v605
        %v607 = vpop.f32.mrb[0].mxu0
        %608 = vmatprep.mubr.bf16.mxu0 0
        %609 = vmatmul.mubr.bf16.gmra.mrb[0].mxu0 %v518
        %v610 = vpop.f32.mrb[0].mxu0
        %v611 = vadd.f32 0.0, %v610
        %v612 = vpop.f32.mrb[0].mxu0
        %v613 = vpop.f32.mrb[0].mxu0
        %v614 = vadd.f32 0.0, %v613
        %v615 = vpop.f32.mrb[0].mxu0
        %616 = vdwg.mxu0
        %v617 = vld [vmem:[%s2] sm:$0x1]
        %v619 = vlaneseq
        %v620 = vshrl.u32 %v619, 7
        %v621 = vsub.s32 0, %v620
        %v622 = vrot.slane %v617, %v621
        %v624 = vmul.f32 %v555, %v622
        %v625 = vmul.f32 %v558, %v622
        %v626 = vmul.f32 %v563, %v622
        %v627 = vmul.f32 %v566, %v622
        %v628 = vmul.f32 %v571, %v622
        %v629 = vmul.f32 %v574, %v622
        %v630 = vmul.f32 %v579, %v622
        %v631 = vmul.f32 %v582, %v622
        %v632 = vmul.f32 %v587, %v622
        %v633 = vmul.f32 %v590, %v622
        %v634 = vmul.f32 %v595, %v622
        %v635 = vmul.f32 %v598, %v622
        %v636 = vmul.f32 %v603, %v622
        %v637 = vmul.f32 %v606, %v622
        %v638 = vmul.f32 %v611, %v622
        %v639 = vmul.f32 %v614, %v622
        %v640 = vld [vmem:[%s3] sm:$0x1]
        %v642 = vlaneseq
        %v643 = vshrl.u32 %v642, 7
        %v644 = vsub.s32 0, %v643
        %v645 = vrot.slane %v640, %v644
        %v647 = vadd.f32 %v624, %v645
        %v648 = vadd.f32 %v625, %v645
        %v649 = vadd.f32 %v626, %v645
        %v650 = vadd.f32 %v627, %v645
        %v651 = vadd.f32 %v628, %v645
        %v652 = vadd.f32 %v629, %v645
        %v653 = vadd.f32 %v630, %v645
        %v654 = vadd.f32 %v631, %v645
        %v655 = vadd.f32 %v632, %v645
        %v656 = vadd.f32 %v633, %v645
        %v657 = vadd.f32 %v634, %v645
        %v658 = vadd.f32 %v635, %v645
        %v659 = vadd.f32 %v636, %v645
        %v660 = vadd.f32 %v637, %v645
        %v661 = vadd.f32 %v638, %v645
        %v662 = vadd.f32 %v639, %v645
        %v663 = vmax.f32 %v647, 0.0
        %v664 = vmax.f32 %v648, 0.0
        %v665 = vmax.f32 %v649, 0.0
        %v666 = vmax.f32 %v650, 0.0
        %v667 = vmax.f32 %v651, 0.0
        %v668 = vmax.f32 %v652, 0.0
        %v669 = vmax.f32 %v653, 0.0
        %v670 = vmax.f32 %v654, 0.0
        %v671 = vmax.f32 %v655, 0.0
        %v672 = vmax.f32 %v656, 0.0
        %v673 = vmax.f32 %v657, 0.0
        %v674 = vmax.f32 %v658, 0.0
        %v675 = vmax.f32 %v659, 0.0
        %v676 = vmax.f32 %v660, 0.0
        %v677 = vmax.f32 %v661, 0.0
        %v678 = vmax.f32 %v662, 0.0
        %vm679 = vcmask 261120
        %680 = vst.msk [vmem:[#allocation2] sm:$0xff] %vm679, 0.0
        %vm681 = vcmask 254976
        %682 = vst.msk [vmem:[#allocation2 + $0x8] sm:$0x3] %vm681, 0.0
        %683 = vst.msk [vmem:[#allocation2 + $0x10] sm:$0xff] %vm679, 0.0
        %684 = vst.msk [vmem:[#allocation2 + $0x18] sm:$0x3] %vm681, 0.0
        %685 = vst.msk [vmem:[#allocation2 + $0x20] sm:$0xff] %vm679, 0.0
        %686 = vst.msk [vmem:[#allocation2 + $0x28] sm:$0x3] %vm681, 0.0
        %687 = vst.msk [vmem:[#allocation2 + $0x30] sm:$0xff] %vm679, 0.0
        %688 = vst.msk [vmem:[#allocation2 + $0x38] sm:$0x3] %vm681, 0.0
        %689 = vst.msk [vmem:[#allocation2 + $0x40] sm:$0xff] %vm679, 0.0
        %690 = vst.msk [vmem:[#allocation2 + $0x48] sm:$0x3] %vm681, 0.0
        %691 = vst.msk [vmem:[#allocation2 + $0x50] sm:$0xff] %vm679, 0.0
        %692 = vst.msk [vmem:[#allocation2 + $0x58] sm:$0x3] %vm681, 0.0
        %693 = vst.msk [vmem:[#allocation2 + $0x60] sm:$0xff] %vm679, 0.0
        %694 = vst.msk [vmem:[#allocation2 + $0x68] sm:$0x3] %vm681, 0.0
        %695 = vst.msk [vmem:[#allocation2 + $0x70] sm:$0xff] %vm679, 0.0
        %696 = vst.msk [vmem:[#allocation2 + $0x78] sm:$0x3] %vm681, 0.0
        %697 = vst.msk [vmem:[#allocation2 + $0x80] sm:$0xff] %vm679, 0.0
        %698 = vst.msk [vmem:[#allocation2 + $0x88] sm:$0x3] %vm681, 0.0
        %699 = vst.msk [vmem:[#allocation2 + $0x90] sm:$0xff] %vm679, 0.0
        %700 = vst.msk [vmem:[#allocation2 + $0x98] sm:$0x3] %vm681, 0.0
        %701 = vst.msk [vmem:[#allocation2 + $0xa0] sm:$0xff] %vm679, 0.0
        %702 = vst.msk [vmem:[#allocation2 + $0xa8] sm:$0x3] %vm681, 0.0
        %703 = vst.msk [vmem:[#allocation2 + $0xb0] sm:$0xff] %vm679, 0.0
        %704 = vst.msk [vmem:[#allocation2 + $0xb8] sm:$0x3] %vm681, 0.0
        %705 = vst.msk [vmem:[#allocation2 + $0xc0] sm:$0xff] %vm679, 0.0
        %706 = vst.msk [vmem:[#allocation2 + $0xc8] sm:$0x3] %vm681, 0.0
        %707 = vst.msk [vmem:[#allocation2 + $0xd0] sm:$0xff] %vm679, 0.0
        %708 = vst.msk [vmem:[#allocation2 + $0xd8] sm:$0x3] %vm681, 0.0
        %709 = vst.msk [vmem:[#allocation2 + $0xe0] sm:$0xff] %vm679, 0.0
        %710 = vst.msk [vmem:[#allocation2 + $0xe8] sm:$0x3] %vm681, 0.0
        %711 = vst.msk [vmem:[#allocation2 + $0xf0] sm:$0xff] %vm679, 0.0
        %712 = vst.msk [vmem:[#allocation2 + $0xf8] sm:$0x3] %vm681, 0.0
        %713 = vst.msk [vmem:[#allocation2 + $0x100] sm:$0xff] %vm679, 0.0
        %714 = vst.msk [vmem:[#allocation2 + $0x108] sm:$0x3] %vm681, 0.0
        %715 = vst.msk [vmem:[#allocation2 + $0x110] sm:$0xff] %vm679, 0.0
        %716 = vst.msk [vmem:[#allocation2 + $0x118] sm:$0x3] %vm681, 0.0
        %717 = vst.msk [vmem:[#allocation2 + $0x120] sm:$0xff] %vm679, 0.0
        %718 = vst.msk [vmem:[#allocation2 + $0x128] sm:$0x3] %vm681, 0.0
        %719 = vst.msk [vmem:[#allocation2 + $0x130] sm:$0xff] %vm679, 0.0
        %720 = vst.msk [vmem:[#allocation2 + $0x138] sm:$0x3] %vm681, 0.0
        %s721 = scalar_lea.vmem [#allocation2], 16
        %722 = vst.msk [vmem:[%s721 + $0x1] sm:$0xff] %vm679, %v663
        %723 = vst.msk [vmem:[%s721 + $0x11] sm:$0xff] %vm679, %v664
        %724 = vst.msk [vmem:[%s721 + $0x21] sm:$0xff] %vm679, %v665
        %725 = vst.msk [vmem:[%s721 + $0x31] sm:$0xff] %vm679, %v666
        %726 = vst.msk [vmem:[%s721 + $0x41] sm:$0xff] %vm679, %v667
        %727 = vst.msk [vmem:[%s721 + $0x51] sm:$0xff] %vm679, %v668
        %728 = vst.msk [vmem:[%s721 + $0x61] sm:$0xff] %vm679, %v669
        %729 = vst.msk [vmem:[%s721 + $0x71] sm:$0xff] %vm679, %v670
        %730 = vst.msk [vmem:[%s721 + $0xa1] sm:$0xff] %vm679, %v671
        %731 = vst.msk [vmem:[%s721 + $0xb1] sm:$0xff] %vm679, %v672
        %732 = vst.msk [vmem:[%s721 + $0xc1] sm:$0xff] %vm679, %v673
        %733 = vst.msk [vmem:[%s721 + $0xd1] sm:$0xff] %vm679, %v674
        %734 = vst.msk [vmem:[%s721 + $0xe1] sm:$0xff] %vm679, %v675
        %735 = vst.msk [vmem:[%s721 + $0xf1] sm:$0xff] %vm679, %v676
        %736 = vst.msk [vmem:[%s721 + $0x101] sm:$0xff] %vm679, %v677
        %737 = vst.msk [vmem:[%s721 + $0x111] sm:$0xff] %vm679, %v678
        %v738 = vld [vmem:[#allocation2] sm:$0xff]
        %v739 = vld [vmem:[#allocation2 + $0x10] sm:$0xff]
        %v740 = vld [vmem:[#allocation2 + $0x20] sm:$0xff]
        %v741 = vld [vmem:[#allocation2 + $0x30] sm:$0xff]
        %v742 = vld [vmem:[#allocation2 + $0x40] sm:$0xff]
        %v743 = vld [vmem:[#allocation2 + $0x50] sm:$0xff]
        %v744 = vld [vmem:[#allocation2 + $0x60] sm:$0xff]
        %v745 = vld [vmem:[#allocation2 + $0x70] sm:$0xff]
        %v746 = vld [vmem:[#allocation2 + $0xa0] sm:$0xff]
        %v747 = vld [vmem:[#allocation2 + $0xb0] sm:$0xff]
        %v748 = vld [vmem:[#allocation2 + $0xc0] sm:$0xff]
        %v749 = vld [vmem:[#allocation2 + $0xd0] sm:$0xff]
        %v750 = vld [vmem:[#allocation2 + $0xe0] sm:$0xff]
        %v751 = vld [vmem:[#allocation2 + $0xf0] sm:$0xff]
        %v752 = vld [vmem:[#allocation2 + $0x100] sm:$0xff]
        %v753 = vld [vmem:[#allocation2 + $0x110] sm:$0xff]
        %v754 = vld [vmem:[%s4] sm:$0xf]
        %v755 = vld [vmem:[%s4 + $0x4] sm:$0xf]
        %v756 = vld [vmem:[%s4 + $0x8] sm:$0xf]
        %v757 = vld [vmem:[%s4 + $0xc] sm:$0xf]
        %v758 = vpack.c.bf16 %v739, %v738
        %v759 = vpack.c.bf16 %v741, %v740
        %v760 = vpack.c.bf16 %v743, %v742
        %v761 = vpack.c.bf16 %v745, %v744
        %v762 = vpack.c.bf16 %v747, %v746
        %v763 = vpack.c.bf16 %v749, %v748
        %v764 = vpack.c.bf16 %v751, %v750
        %v765 = vpack.c.bf16 %v753, %v752
        %v766 = vld [vmem:[#allocation2 + $0x1] sm:$0xff]
        %v767 = vld [vmem:[#allocation2 + $0x11] sm:$0xff]
        %v768 = vld [vmem:[#allocation2 + $0x21] sm:$0xff]
        %v769 = vld [vmem:[#allocation2 + $0x31] sm:$0xff]
        %v770 = vld [vmem:[#allocation2 + $0x41] sm:$0xff]
        %v771 = vld [vmem:[#allocation2 + $0x51] sm:$0xff]
        %v772 = vld [vmem:[#allocation2 + $0x61] sm:$0xff]
        %v773 = vld [vmem:[#allocation2 + $0x71] sm:$0xff]
        %v774 = vld [vmem:[#allocation2 + $0xa1] sm:$0xff]
        %v775 = vld [vmem:[#allocation2 + $0xb1] sm:$0xff]
        %v776 = vld [vmem:[#allocation2 + $0xc1] sm:$0xff]
        %v777 = vld [vmem:[#allocation2 + $0xd1] sm:$0xff]
        %v778 = vld [vmem:[#allocation2 + $0xe1] sm:$0xff]
        %v779 = vld [vmem:[#allocation2 + $0xf1] sm:$0xff]
        %v780 = vld [vmem:[#allocation2 + $0x101] sm:$0xff]
        %v781 = vld [vmem:[#allocation2 + $0x111] sm:$0xff]
        %v782 = vld [vmem:[%s4 + $0x10] sm:$0xf]
        %v783 = vld [vmem:[%s4 + $0x14] sm:$0xf]
        %v784 = vld [vmem:[%s4 + $0x18] sm:$0xf]
        %v785 = vld [vmem:[%s4 + $0x1c] sm:$0xf]
        %v786 = vpack.c.bf16 %v767, %v766
        %v787 = vpack.c.bf16 %v769, %v768
        %v788 = vpack.c.bf16 %v771, %v770
        %v789 = vpack.c.bf16 %v773, %v772
        %v790 = vpack.c.bf16 %v775, %v774
        %v791 = vpack.c.bf16 %v777, %v776
        %v792 = vpack.c.bf16 %v779, %v778
        %v793 = vpack.c.bf16 %v781, %v780
        %v798 = vunpack.c.l.b16 %v782
        %v799 = vunpack.c.l.b16 %v783
        %v800 = vunpack.c.l.b16 %v784
        %v801 = vunpack.c.l.b16 %v785
        %v802 = vpack.c.b16 %v799, %v798
        %v803 = vpack.c.b16 %v801, %v800
        %v807 = vsel %vm679, %v786, 0
        %v810 = vsel %vm679, %v787, 0
        %v813 = vsel %vm679, %v788, 0
        %v816 = vsel %vm679, %v789, 0
        %v819 = vsel %vm679, %v790, 0
        %v822 = vsel %vm679, %v791, 0
        %v825 = vsel %vm679, %v792, 0
        %v828 = vsel %vm679, %v793, 0
        %830 = vmatprep.subr.bf16.mxu0 0
        %831 = vmatpush1.bf16.msra.mxu0 %v802
        %832 = vmatprep.subr.bf16.mxu0 0
        %833 = vmatpush1.bf16.msra.mxu0 %v803
        %834 = vmatprep.subr.bf16.mxu0 0
        %835 = vmatpush1.bf16.msra.mxu0 0
        %836 = vmatprep.subr.bf16.mxu0 0
        %837 = vmatpush1.bf16.msra.mxu0 0
        %838 = vmatprep.subr.bf16.mxu0 0
        %839 = vmatpush1.bf16.msra.mxu0 0
        %840 = vmatprep.subr.bf16.mxu0 0
        %841 = vmatpush1.bf16.msra.mxu0 0
        %842 = vmatprep.subr.bf16.mxu0 0
        %843 = vmatpush1.bf16.msra.mxu0 0
        %844 = vmatprep.subr.bf16.mxu0 0
        %845 = vmatpush1.bf16.msra.mxu0 0
        %846 = vmatprep.subr.bf16.mxu0 0
        %847 = vmatpush1.bf16.msra.mxu0 0
        %848 = vmatprep.subr.bf16.mxu0 0
        %849 = vmatpush1.bf16.msra.mxu0 0
        %850 = vmatprep.subr.bf16.mxu0 0
        %851 = vmatpush1.bf16.msra.mxu0 0
        %852 = vmatprep.subr.bf16.mxu0 0
        %853 = vmatpush1.bf16.msra.mxu0 0
        %854 = vmatprep.subr.bf16.mxu0 0
        %855 = vmatpush1.bf16.msra.mxu0 0
        %856 = vmatprep.subr.bf16.mxu0 0
        %857 = vmatpush1.bf16.msra.mxu0 0
        %858 = vmatprep.subr.bf16.mxu0 0
        %859 = vmatpush1.bf16.msra.mxu0 0
        %860 = vmatprep.subr.bf16.mxu0 0
        %861 = vmatpush1.bf16.msra.mxu0 0
        %862 = vmatprep.mubr.bf16.mxu0 0
        %863 = vmatmul.mubr.bf16.gmra.mrb[0].mxu0 %v807
        %v864 = vpop.f32.mrb[0].mxu0
        %v865 = vadd.f32 0.0, %v864
        %v866 = vpop.f32.mrb[0].mxu0
        %v867 = vpop.f32.mrb[0].mxu0
        %v868 = vadd.f32 0.0, %v867
        %v869 = vpop.f32.mrb[0].mxu0
        %870 = vmatprep.mubr.bf16.mxu0 0
        %871 = vmatmul.mubr.bf16.gmra.mrb[0].mxu0 %v810
        %v872 = vpop.f32.mrb[0].mxu0
        %v873 = vadd.f32 0.0, %v872
        %v874 = vpop.f32.mrb[0].mxu0
        %v875 = vpop.f32.mrb[0].mxu0
        %v876 = vadd.f32 0.0, %v875
        %v877 = vpop.f32.mrb[0].mxu0
        %878 = vmatprep.mubr.bf16.mxu0 0
        %879 = vmatmul.mubr.bf16.gmra.mrb[0].mxu0 %v813
        %v880 = vpop.f32.mrb[0].mxu0
        %v881 = vadd.f32 0.0, %v880
        %v882 = vpop.f32.mrb[0].mxu0
        %v883 = vpop.f32.mrb[0].mxu0
        %v884 = vadd.f32 0.0, %v883
        %v885 = vpop.f32.mrb[0].mxu0
        %886 = vmatprep.mubr.bf16.mxu0 0
        %887 = vmatmul.mubr.bf16.gmra.mrb[0].mxu0 %v816
        %v888 = vpop.f32.mrb[0].mxu0
        %v889 = vadd.f32 0.0, %v888
        %v890 = vpop.f32.mrb[0].mxu0
        %v891 = vpop.f32.mrb[0].mxu0
        %v892 = vadd.f32 0.0, %v891
        %v893 = vpop.f32.mrb[0].mxu0
        %894 = vmatprep.mubr.bf16.mxu0 0
        %895 = vmatmul.mubr.bf16.gmra.mrb[0].mxu0 %v819
        %v896 = vpop.f32.mrb[0].mxu0
        %v897 = vadd.f32 0.0, %v896
        %v898 = vpop.f32.mrb[0].mxu0
        %v899 = vpop.f32.mrb[0].mxu0
        %v900 = vadd.f32 0.0, %v899
        %v901 = vpop.f32.mrb[0].mxu0
        %902 = vmatprep.mubr.bf16.mxu0 0
        %903 = vmatmul.mubr.bf16.gmra.mrb[0].mxu0 %v822
        %v904 = vpop.f32.mrb[0].mxu0
        %v905 = vadd.f32 0.0, %v904
        %v906 = vpop.f32.mrb[0].mxu0
        %v907 = vpop.f32.mrb[0].mxu0
        %v908 = vadd.f32 0.0, %v907
        %v909 = vpop.f32.mrb[0].mxu0
        %910 = vmatprep.mubr.bf16.mxu0 0
        %911 = vmatmul.mubr.bf16.gmra.mrb[0].mxu0 %v825
        %v912 = vpop.f32.mrb[0].mxu0
        %v913 = vadd.f32 0.0, %v912
        %v914 = vpop.f32.mrb[0].mxu0
        %v915 = vpop.f32.mrb[0].mxu0
        %v916 = vadd.f32 0.0, %v915
        %v917 = vpop.f32.mrb[0].mxu0
        %918 = vmatprep.mubr.bf16.mxu0 0
        %919 = vmatmul.mubr.bf16.gmra.mrb[0].mxu0 %v828
        %v920 = vpop.f32.mrb[0].mxu0
        %v921 = vadd.f32 0.0, %v920
        %v922 = vpop.f32.mrb[0].mxu0
        %v923 = vpop.f32.mrb[0].mxu0
        %v924 = vadd.f32 0.0, %v923
        %v925 = vpop.f32.mrb[0].mxu0
        %926 = vdwg.mxu0
        %v931 = vunpack.c.l.b16 %v754
        %v932 = vunpack.c.l.b16 %v755
        %v933 = vunpack.c.l.b16 %v756
        %v934 = vunpack.c.l.b16 %v757
        %v935 = vpack.c.b16 %v932, %v931
        %v936 = vpack.c.b16 %v934, %v933
        %v940 = vsel %vm679, %v758, 0
        %v943 = vsel %vm679, %v759, 0
        %v946 = vsel %vm679, %v760, 0
        %v949 = vsel %vm679, %v761, 0
        %v952 = vsel %vm679, %v762, 0
        %v955 = vsel %vm679, %v763, 0
        %v958 = vsel %vm679, %v764, 0
        %v961 = vsel %vm679, %v765, 0
        %963 = vmatprep.subr.bf16.mxu0 0
        %964 = vmatpush1.bf16.msra.mxu0 %v935
        %965 = vmatprep.subr.bf16.mxu0 0
        %966 = vmatpush1.bf16.msra.mxu0 %v936
        %967 = vmatprep.subr.bf16.mxu0 0
        %968 = vmatpush1.bf16.msra.mxu0 0
        %969 = vmatprep.subr.bf16.mxu0 0
        %970 = vmatpush1.bf16.msra.mxu0 0
        %971 = vmatprep.subr.bf16.mxu0 0
        %972 = vmatpush1.bf16.msra.mxu0 0
        %973 = vmatprep.subr.bf16.mxu0 0
        %974 = vmatpush1.bf16.msra.mxu0 0
        %975 = vmatprep.subr.bf16.mxu0 0
        %976 = vmatpush1.bf16.msra.mxu0 0
        %977 = vmatprep.subr.bf16.mxu0 0
        %978 = vmatpush1.bf16.msra.mxu0 0
        %979 = vmatprep.subr.bf16.mxu0 0
        %980 = vmatpush1.bf16.msra.mxu0 0
        %981 = vmatprep.subr.bf16.mxu0 0
        %982 = vmatpush1.bf16.msra.mxu0 0
        %983 = vmatprep.subr.bf16.mxu0 0
        %984 = vmatpush1.bf16.msra.mxu0 0
        %985 = vmatprep.subr.bf16.mxu0 0
        %986 = vmatpush1.bf16.msra.mxu0 0
        %987 = vmatprep.subr.bf16.mxu0 0
        %988 = vmatpush1.bf16.msra.mxu0 0
        %989 = vmatprep.subr.bf16.mxu0 0
        %990 = vmatpush1.bf16.msra.mxu0 0
        %991 = vmatprep.subr.bf16.mxu0 0
        %992 = vmatpush1.bf16.msra.mxu0 0
        %993 = vmatprep.subr.bf16.mxu0 0
        %994 = vmatpush1.bf16.msra.mxu0 0
        %995 = vmatprep.mubr.bf16.mxu0 0
        %996 = vmatmul.mubr.bf16.gmra.mrb[0].mxu0 %v940
        %v997 = vpop.f32.mrb[0].mxu0
        %v998 = vadd.f32 %v865, %v997
        %v999 = vpop.f32.mrb[0].mxu0
        %v1000 = vpop.f32.mrb[0].mxu0
        %v1001 = vadd.f32 %v868, %v1000
        %v1002 = vpop.f32.mrb[0].mxu0
        %1003 = vmatprep.mubr.bf16.mxu0 0
        %1004 = vmatmul.mubr.bf16.gmra.mrb[0].mxu0 %v943
        %v1005 = vpop.f32.mrb[0].mxu0
        %v1006 = vadd.f32 %v873, %v1005
        %v1007 = vpop.f32.mrb[0].mxu0
        %v1008 = vpop.f32.mrb[0].mxu0
        %v1009 = vadd.f32 %v876, %v1008
        %v1010 = vpop.f32.mrb[0].mxu0
        %1011 = vmatprep.mubr.bf16.mxu0 0
        %1012 = vmatmul.mubr.bf16.gmra.mrb[0].mxu0 %v946
        %v1013 = vpop.f32.mrb[0].mxu0
        %v1014 = vadd.f32 %v881, %v1013
        %v1015 = vpop.f32.mrb[0].mxu0
        %v1016 = vpop.f32.mrb[0].mxu0
        %v1017 = vadd.f32 %v884, %v1016
        %v1018 = vpop.f32.mrb[0].mxu0
        %1019 = vmatprep.mubr.bf16.mxu0 0
        %1020 = vmatmul.mubr.bf16.gmra.mrb[0].mxu0 %v949
        %v1021 = vpop.f32.mrb[0].mxu0
        %v1022 = vadd.f32 %v889, %v1021
        %v1023 = vpop.f32.mrb[0].mxu0
        %v1024 = vpop.f32.mrb[0].mxu0
        %v1025 = vadd.f32 %v892, %v1024
        %v1026 = vpop.f32.mrb[0].mxu0
        %1027 = vmatprep.mubr.bf16.mxu0 0
        %1028 = vmatmul.mubr.bf16.gmra.mrb[0].mxu0 %v952
        %v1029 = vpop.f32.mrb[0].mxu0
        %v1030 = vadd.f32 %v897, %v1029
        %v1031 = vpop.f32.mrb[0].mxu0
        %v1032 = vpop.f32.mrb[0].mxu0
        %v1033 = vadd.f32 %v900, %v1032
        %v1034 = vpop.f32.mrb[0].mxu0
        %1035 = vmatprep.mubr.bf16.mxu0 0
        %1036 = vmatmul.mubr.bf16.gmra.mrb[0].mxu0 %v955
        %v1037 = vpop.f32.mrb[0].mxu0
        %v1038 = vadd.f32 %v905, %v1037
        %v1039 = vpop.f32.mrb[0].mxu0
        %v1040 = vpop.f32.mrb[0].mxu0
        %v1041 = vadd.f32 %v908, %v1040
        %v1042 = vpop.f32.mrb[0].mxu0
        %1043 = vmatprep.mubr.bf16.mxu0 0
        %1044 = vmatmul.mubr.bf16.gmra.mrb[0].mxu0 %v958
        %v1045 = vpop.f32.mrb[0].mxu0
        %v1046 = vadd.f32 %v913, %v1045
        %v1047 = vpop.f32.mrb[0].mxu0
        %v1048 = vpop.f32.mrb[0].mxu0
        %v1049 = vadd.f32 %v916, %v1048
        %v1050 = vpop.f32.mrb[0].mxu0
        %1051 = vmatprep.mubr.bf16.mxu0 0
        %1052 = vmatmul.mubr.bf16.gmra.mrb[0].mxu0 %v961
        %v1053 = vpop.f32.mrb[0].mxu0
        %v1054 = vadd.f32 %v921, %v1053
        %v1055 = vpop.f32.mrb[0].mxu0
        %v1056 = vpop.f32.mrb[0].mxu0
        %v1057 = vadd.f32 %v924, %v1056
        %v1058 = vpop.f32.mrb[0].mxu0
        %1059 = vdwg.mxu0
        %v1060 = vld [vmem:[#allocation2 + $0x2] sm:$0xff]
        %v1061 = vld [vmem:[#allocation2 + $0x12] sm:$0xff]
        %v1062 = vld [vmem:[#allocation2 + $0x22] sm:$0xff]
        %v1063 = vld [vmem:[#allocation2 + $0x32] sm:$0xff]
        %v1064 = vld [vmem:[#allocation2 + $0x42] sm:$0xff]
        %v1065 = vld [vmem:[#allocation2 + $0x52] sm:$0xff]
        %v1066 = vld [vmem:[#allocation2 + $0x62] sm:$0xff]
        %v1067 = vld [vmem:[#allocation2 + $0x72] sm:$0xff]
        %v1068 = vld [vmem:[#allocation2 + $0xa2] sm:$0xff]
        %v1069 = vld [vmem:[#allocation2 + $0xb2] sm:$0xff]
        %v1070 = vld [vmem:[#allocation2 + $0xc2] sm:$0xff]
        %v1071 = vld [vmem:[#allocation2 + $0xd2] sm:$0xff]
        %v1072 = vld [vmem:[#allocation2 + $0xe2] sm:$0xff]
        %v1073 = vld [vmem:[#allocation2 + $0xf2] sm:$0xff]
        %v1074 = vld [vmem:[#allocation2 + $0x102] sm:$0xff]
        %v1075 = vld [vmem:[#allocation2 + $0x112] sm:$0xff]
        %v1076 = vld [vmem:[%s4 + $0x20] sm:$0xf]
        %v1077 = vld [vmem:[%s4 + $0x24] sm:$0xf]
        %v1078 = vld [vmem:[%s4 + $0x28] sm:$0xf]
        %v1079 = vld [vmem:[%s4 + $0x2c] sm:$0xf]
        %v1080 = vpack.c.bf16 %v1061, %v1060
        %v1081 = vpack.c.bf16 %v1063, %v1062
        %v1082 = vpack.c.bf16 %v1065, %v1064
        %v1083 = vpack.c.bf16 %v1067, %v1066
        %v1084 = vpack.c.bf16 %v1069, %v1068
        %v1085 = vpack.c.bf16 %v1071, %v1070
        %v1086 = vpack.c.bf16 %v1073, %v1072
        %v1087 = vpack.c.bf16 %v1075, %v1074
        %v1092 = vunpack.c.l.b16 %v1076
        %v1093 = vunpack.c.l.b16 %v1077
        %v1094 = vunpack.c.l.b16 %v1078
        %v1095 = vunpack.c.l.b16 %v1079
        %v1096 = vpack.c.b16 %v1093, %v1092
        %v1097 = vpack.c.b16 %v1095, %v1094
        %v1101 = vsel %vm679, %v1080, 0
        %v1104 = vsel %vm679, %v1081, 0
        %v1107 = vsel %vm679, %v1082, 0
        %v1110 = vsel %vm679, %v1083, 0
        %v1113 = vsel %vm679, %v1084, 0
        %v1116 = vsel %vm679, %v1085, 0
        %v1119 = vsel %vm679, %v1086, 0
        %v1122 = vsel %vm679, %v1087, 0
        %1124 = vmatprep.subr.bf16.mxu0 0
        %1125 = vmatpush1.bf16.msra.mxu0 %v1096
        %1126 = vmatprep.subr.bf16.mxu0 0
        %1127 = vmatpush1.bf16.msra.mxu0 %v1097
        %1128 = vmatprep.subr.bf16.mxu0 0
        %1129 = vmatpush1.bf16.msra.mxu0 0
        %1130 = vmatprep.subr.bf16.mxu0 0
        %1131 = vmatpush1.bf16.msra.mxu0 0
        %1132 = vmatprep.subr.bf16.mxu0 0
        %1133 = vmatpush1.bf16.msra.mxu0 0
        %1134 = vmatprep.subr.bf16.mxu0 0
        %1135 = vmatpush1.bf16.msra.mxu0 0
        %1136 = vmatprep.subr.bf16.mxu0 0
        %1137 = vmatpush1.bf16.msra.mxu0 0
        %1138 = vmatprep.subr.bf16.mxu0 0
        %1139 = vmatpush1.bf16.msra.mxu0 0
        %1140 = vmatprep.subr.bf16.mxu0 0
        %1141 = vmatpush1.bf16.msra.mxu0 0
        %1142 = vmatprep.subr.bf16.mxu0 0
        %1143 = vmatpush1.bf16.msra.mxu0 0
        %1144 = vmatprep.subr.bf16.mxu0 0
        %1145 = vmatpush1.bf16.msra.mxu0 0
        %1146 = vmatprep.subr.bf16.mxu0 0
        %1147 = vmatpush1.bf16.msra.mxu0 0
        %1148 = vmatprep.subr.bf16.mxu0 0
        %1149 = vmatpush1.bf16.msra.mxu0 0
        %1150 = vmatprep.subr.bf16.mxu0 0
        %1151 = vmatpush1.bf16.msra.mxu0 0
        %1152 = vmatprep.subr.bf16.mxu0 0
        %1153 = vmatpush1.bf16.msra.mxu0 0
        %1154 = vmatprep.subr.bf16.mxu0 0
        %1155 = vmatpush1.bf16.msra.mxu0 0
        %1156 = vmatprep.mubr.bf16.mxu0 0
        %1157 = vmatmul.mubr.bf16.gmra.mrb[0].mxu0 %v1101
        %v1158 = vpop.f32.mrb[0].mxu0
        %v1159 = vadd.f32 0.0, %v1158
        %v1160 = vpop.f32.mrb[0].mxu0
        %v1161 = vpop.f32.mrb[0].mxu0
        %v1162 = vadd.f32 0.0, %v1161
        %v1163 = vpop.f32.mrb[0].mxu0
        %1164 = vmatprep.mubr.bf16.mxu0 0
        %1165 = vmatmul.mubr.bf16.gmra.mrb[0].mxu0 %v1104
        %v1166 = vpop.f32.mrb[0].mxu0
        %v1167 = vadd.f32 0.0, %v1166
        %v1168 = vpop.f32.mrb[0].mxu0
        %v1169 = vpop.f32.mrb[0].mxu0
        %v1170 = vadd.f32 0.0, %v1169
        %v1171 = vpop.f32.mrb[0].mxu0
        %1172 = vmatprep.mubr.bf16.mxu0 0
        %1173 = vmatmul.mubr.bf16.gmra.mrb[0].mxu0 %v1107
        %v1174 = vpop.f32.mrb[0].mxu0
        %v1175 = vadd.f32 0.0, %v1174
        %v1176 = vpop.f32.mrb[0].mxu0
        %v1177 = vpop.f32.mrb[0].mxu0
        %v1178 = vadd.f32 0.0, %v1177
        %v1179 = vpop.f32.mrb[0].mxu0
        %1180 = vmatprep.mubr.bf16.mxu0 0
        %1181 = vmatmul.mubr.bf16.gmra.mrb[0].mxu0 %v1110
        %v1182 = vpop.f32.mrb[0].mxu0
        %v1183 = vadd.f32 0.0, %v1182
        %v1184 = vpop.f32.mrb[0].mxu0
        %v1185 = vpop.f32.mrb[0].mxu0
        %v1186 = vadd.f32 0.0, %v1185
        %v1187 = vpop.f32.mrb[0].mxu0
        %1188 = vmatprep.mubr.bf16.mxu0 0
        %1189 = vmatmul.mubr.bf16.gmra.mrb[0].mxu0 %v1113
        %v1190 = vpop.f32.mrb[0].mxu0
        %v1191 = vadd.f32 0.0, %v1190
        %v1192 = vpop.f32.mrb[0].mxu0
        %v1193 = vpop.f32.mrb[0].mxu0
        %v1194 = vadd.f32 0.0, %v1193
        %v1195 = vpop.f32.mrb[0].mxu0
        %1196 = vmatprep.mubr.bf16.mxu0 0
        %1197 = vmatmul.mubr.bf16.gmra.mrb[0].mxu0 %v1116
        %v1198 = vpop.f32.mrb[0].mxu0
        %v1199 = vadd.f32 0.0, %v1198
        %v1200 = vpop.f32.mrb[0].mxu0
        %v1201 = vpop.f32.mrb[0].mxu0
        %v1202 = vadd.f32 0.0, %v1201
        %v1203 = vpop.f32.mrb[0].mxu0
        %1204 = vmatprep.mubr.bf16.mxu0 0
        %1205 = vmatmul.mubr.bf16.gmra.mrb[0].mxu0 %v1119
        %v1206 = vpop.f32.mrb[0].mxu0
        %v1207 = vadd.f32 0.0, %v1206
        %v1208 = vpop.f32.mrb[0].mxu0
        %v1209 = vpop.f32.mrb[0].mxu0
        %v1210 = vadd.f32 0.0, %v1209
        %v1211 = vpop.f32.mrb[0].mxu0
        %1212 = vmatprep.mubr.bf16.mxu0 0
        %1213 = vmatmul.mubr.bf16.gmra.mrb[0].mxu0 %v1122
        %v1214 = vpop.f32.mrb[0].mxu0
        %v1215 = vadd.f32 0.0, %v1214
        %v1216 = vpop.f32.mrb[0].mxu0
        %v1217 = vpop.f32.mrb[0].mxu0
        %v1218 = vadd.f32 0.0, %v1217
        %v1219 = vpop.f32.mrb[0].mxu0
        %1220 = vdwg.mxu0
        %v1221 = vadd.f32 %v998, %v1159
        %v1222 = vadd.f32 %v1001, %v1162
        %v1223 = vadd.f32 %v1006, %v1167
        %v1224 = vadd.f32 %v1009, %v1170
        %v1225 = vadd.f32 %v1014, %v1175
        %v1226 = vadd.f32 %v1017, %v1178
        %v1227 = vadd.f32 %v1022, %v1183
        %v1228 = vadd.f32 %v1025, %v1186
        %v1229 = vadd.f32 %v1030, %v1191
        %v1230 = vadd.f32 %v1033, %v1194
        %v1231 = vadd.f32 %v1038, %v1199
        %v1232 = vadd.f32 %v1041, %v1202
        %v1233 = vadd.f32 %v1046, %v1207
        %v1234 = vadd.f32 %v1049, %v1210
        %v1235 = vadd.f32 %v1054, %v1215
        %v1236 = vadd.f32 %v1057, %v1218
        %v1237 = vld [vmem:[%s721] sm:$0xff]
        %v1238 = vld [vmem:[%s721 + $0x10] sm:$0xff]
        %v1239 = vld [vmem:[%s721 + $0x20] sm:$0xff]
        %v1240 = vld [vmem:[%s721 + $0x30] sm:$0xff]
        %v1241 = vld [vmem:[%s721 + $0x40] sm:$0xff]
        %v1242 = vld [vmem:[%s721 + $0x50] sm:$0xff]
        %v1243 = vld [vmem:[%s721 + $0x60] sm:$0xff]
        %v1244 = vld [vmem:[%s721 + $0x70] sm:$0xff]
        %v1245 = vld [vmem:[%s721 + $0xa0] sm:$0xff]
        %v1246 = vld [vmem:[%s721 + $0xb0] sm:$0xff]
        %v1247 = vld [vmem:[%s721 + $0xc0] sm:$0xff]
        %v1248 = vld [vmem:[%s721 + $0xd0] sm:$0xff]
        %v1249 = vld [vmem:[%s721 + $0xe0] sm:$0xff]
        %v1250 = vld [vmem:[%s721 + $0xf0] sm:$0xff]
        %v1251 = vld [vmem:[%s721 + $0x100] sm:$0xff]
        %v1252 = vld [vmem:[%s721 + $0x110] sm:$0xff]
        %v1253 = vld [vmem:[%s4 + $0x30] sm:$0xf]
        %v1254 = vld [vmem:[%s4 + $0x34] sm:$0xf]
        %v1255 = vld [vmem:[%s4 + $0x38] sm:$0xf]
        %v1256 = vld [vmem:[%s4 + $0x3c] sm:$0xf]
        %v1257 = vpack.c.bf16 %v1238, %v1237
        %v1258 = vpack.c.bf16 %v1240, %v1239
        %v1259 = vpack.c.bf16 %v1242, %v1241
        %v1260 = vpack.c.bf16 %v1244, %v1243
        %v1261 = vpack.c.bf16 %v1246, %v1245
        %v1262 = vpack.c.bf16 %v1248, %v1247
        %v1263 = vpack.c.bf16 %v1250, %v1249
        %v1264 = vpack.c.bf16 %v1252, %v1251
        %v1269 = vunpack.c.l.b16 %v1253
        %v1270 = vunpack.c.l.b16 %v1254
        %v1271 = vunpack.c.l.b16 %v1255
        %v1272 = vunpack.c.l.b16 %v1256
        %v1273 = vpack.c.b16 %v1270, %v1269
        %v1274 = vpack.c.b16 %v1272, %v1271
        %v1278 = vsel %vm679, %v1257, 0
        %v1281 = vsel %vm679, %v1258, 0
        %v1284 = vsel %vm679, %v1259, 0
        %v1287 = vsel %vm679, %v1260, 0
        %v1290 = vsel %vm679, %v1261, 0
        %v1293 = vsel %vm679, %v1262, 0
        %v1296 = vsel %vm679, %v1263, 0
        %v1299 = vsel %vm679, %v1264, 0
        %1301 = vmatprep.subr.bf16.mxu0 0
        %1302 = vmatpush1.bf16.msra.mxu0 %v1273
        %1303 = vmatprep.subr.bf16.mxu0 0
        %1304 = vmatpush1.bf16.msra.mxu0 %v1274
        %1305 = vmatprep.subr.bf16.mxu0 0
        %1306 = vmatpush1.bf16.msra.mxu0 0
        %1307 = vmatprep.subr.bf16.mxu0 0
        %1308 = vmatpush1.bf16.msra.mxu0 0
        %1309 = vmatprep.subr.bf16.mxu0 0
        %1310 = vmatpush1.bf16.msra.mxu0 0
        %1311 = vmatprep.subr.bf16.mxu0 0
        %1312 = vmatpush1.bf16.msra.mxu0 0
        %1313 = vmatprep.subr.bf16.mxu0 0
        %1314 = vmatpush1.bf16.msra.mxu0 0
        %1315 = vmatprep.subr.bf16.mxu0 0
        %1316 = vmatpush1.bf16.msra.mxu0 0
        %1317 = vmatprep.subr.bf16.mxu0 0
        %1318 = vmatpush1.bf16.msra.mxu0 0
        %1319 = vmatprep.subr.bf16.mxu0 0
        %1320 = vmatpush1.bf16.msra.mxu0 0
        %1321 = vmatprep.subr.bf16.mxu0 0
        %1322 = vmatpush1.bf16.msra.mxu0 0
        %1323 = vmatprep.subr.bf16.mxu0 0
        %1324 = vmatpush1.bf16.msra.mxu0 0
        %1325 = vmatprep.subr.bf16.mxu0 0
        %1326 = vmatpush1.bf16.msra.mxu0 0
        %1327 = vmatprep.subr.bf16.mxu0 0
        %1328 = vmatpush1.bf16.msra.mxu0 0
        %1329 = vmatprep.subr.bf16.mxu0 0
        %1330 = vmatpush1.bf16.msra.mxu0 0
        %1331 = vmatprep.subr.bf16.mxu0 0
        %1332 = vmatpush1.bf16.msra.mxu0 0
        %1333 = vmatprep.mubr.bf16.mxu0 0
        %1334 = vmatmul.mubr.bf16.gmra.mrb[0].mxu0 %v1278
        %v1335 = vpop.f32.mrb[0].mxu0
        %v1336 = vadd.f32 0.0, %v1335
        %v1337 = vpop.f32.mrb[0].mxu0
        %v1338 = vpop.f32.mrb[0].mxu0
        %v1339 = vadd.f32 0.0, %v1338
        %v1340 = vpop.f32.mrb[0].mxu0
        %1341 = vmatprep.mubr.bf16.mxu0 0
        %1342 = vmatmul.mubr.bf16.gmra.mrb[0].mxu0 %v1281
        %v1343 = vpop.f32.mrb[0].mxu0
        %v1344 = vadd.f32 0.0, %v1343
        %v1345 = vpop.f32.mrb[0].mxu0
        %v1346 = vpop.f32.mrb[0].mxu0
        %v1347 = vadd.f32 0.0, %v1346
        %v1348 = vpop.f32.mrb[0].mxu0
        %1349 = vmatprep.mubr.bf16.mxu0 0
        %1350 = vmatmul.mubr.bf16.gmra.mrb[0].mxu0 %v1284
        %v1351 = vpop.f32.mrb[0].mxu0
        %v1352 = vadd.f32 0.0, %v1351
        %v1353 = vpop.f32.mrb[0].mxu0
        %v1354 = vpop.f32.mrb[0].mxu0
        %v1355 = vadd.f32 0.0, %v1354
        %v1356 = vpop.f32.mrb[0].mxu0
        %1357 = vmatprep.mubr.bf16.mxu0 0
        %1358 = vmatmul.mubr.bf16.gmra.mrb[0].mxu0 %v1287
        %v1359 = vpop.f32.mrb[0].mxu0
        %v1360 = vadd.f32 0.0, %v1359
        %v1361 = vpop.f32.mrb[0].mxu0
        %v1362 = vpop.f32.mrb[0].mxu0
        %v1363 = vadd.f32 0.0, %v1362
        %v1364 = vpop.f32.mrb[0].mxu0
        %1365 = vmatprep.mubr.bf16.mxu0 0
        %1366 = vmatmul.mubr.bf16.gmra.mrb[0].mxu0 %v1290
        %v1367 = vpop.f32.mrb[0].mxu0
        %v1368 = vadd.f32 0.0, %v1367
        %v1369 = vpop.f32.mrb[0].mxu0
        %v1370 = vpop.f32.mrb[0].mxu0
        %v1371 = vadd.f32 0.0, %v1370
        %v1372 = vpop.f32.mrb[0].mxu0
        %1373 = vmatprep.mubr.bf16.mxu0 0
        %1374 = vmatmul.mubr.bf16.gmra.mrb[0].mxu0 %v1293
        %v1375 = vpop.f32.mrb[0].mxu0
        %v1376 = vadd.f32 0.0, %v1375
        %v1377 = vpop.f32.mrb[0].mxu0
        %v1378 = vpop.f32.mrb[0].mxu0
        %v1379 = vadd.f32 0.0, %v1378
        %v1380 = vpop.f32.mrb[0].mxu0
        %1381 = vmatprep.mubr.bf16.mxu0 0
        %1382 = vmatmul.mubr.bf16.gmra.mrb[0].mxu0 %v1296
        %v1383 = vpop.f32.mrb[0].mxu0
        %v1384 = vadd.f32 0.0, %v1383
        %v1385 = vpop.f32.mrb[0].mxu0
        %v1386 = vpop.f32.mrb[0].mxu0
        %v1387 = vadd.f32 0.0, %v1386
        %v1388 = vpop.f32.mrb[0].mxu0
        %1389 = vmatprep.mubr.bf16.mxu0 0
        %1390 = vmatmul.mubr.bf16.gmra.mrb[0].mxu0 %v1299
        %v1391 = vpop.f32.mrb[0].mxu0
        %v1392 = vadd.f32 0.0, %v1391
        %v1393 = vpop.f32.mrb[0].mxu0
        %v1394 = vpop.f32.mrb[0].mxu0
        %v1395 = vadd.f32 0.0, %v1394
        %v1396 = vpop.f32.mrb[0].mxu0
        %1397 = vdwg.mxu0
        %v1398 = vadd.f32 %v1221, %v1336
        %v1399 = vadd.f32 %v1222, %v1339
        %v1400 = vadd.f32 %v1223, %v1344
        %v1401 = vadd.f32 %v1224, %v1347
        %v1402 = vadd.f32 %v1225, %v1352
        %v1403 = vadd.f32 %v1226, %v1355
        %v1404 = vadd.f32 %v1227, %v1360
        %v1405 = vadd.f32 %v1228, %v1363
        %v1406 = vadd.f32 %v1229, %v1368
        %v1407 = vadd.f32 %v1230, %v1371
        %v1408 = vadd.f32 %v1231, %v1376
        %v1409 = vadd.f32 %v1232, %v1379
        %v1410 = vadd.f32 %v1233, %v1384
        %v1411 = vadd.f32 %v1234, %v1387
        %v1412 = vadd.f32 %v1235, %v1392
        %v1413 = vadd.f32 %v1236, %v1395
        %v1414 = vld [vmem:[%s721 + $0x1] sm:$0xff]
        %v1415 = vld [vmem:[%s721 + $0x11] sm:$0xff]
        %v1416 = vld [vmem:[%s721 + $0x21] sm:$0xff]
        %v1417 = vld [vmem:[%s721 + $0x31] sm:$0xff]
        %v1418 = vld [vmem:[%s721 + $0x41] sm:$0xff]
        %v1419 = vld [vmem:[%s721 + $0x51] sm:$0xff]
        %v1420 = vld [vmem:[%s721 + $0x61] sm:$0xff]
        %v1421 = vld [vmem:[%s721 + $0x71] sm:$0xff]
        %v1422 = vld [vmem:[%s721 + $0xa1] sm:$0xff]
        %v1423 = vld [vmem:[%s721 + $0xb1] sm:$0xff]
        %v1424 = vld [vmem:[%s721 + $0xc1] sm:$0xff]
        %v1425 = vld [vmem:[%s721 + $0xd1] sm:$0xff]
        %v1426 = vld [vmem:[%s721 + $0xe1] sm:$0xff]
        %v1427 = vld [vmem:[%s721 + $0xf1] sm:$0xff]
        %v1428 = vld [vmem:[%s721 + $0x101] sm:$0xff]
        %v1429 = vld [vmem:[%s721 + $0x111] sm:$0xff]
        %v1430 = vld [vmem:[%s4 + $0x40] sm:$0xf]
        %v1431 = vld [vmem:[%s4 + $0x44] sm:$0xf]
        %v1432 = vld [vmem:[%s4 + $0x48] sm:$0xf]
        %v1433 = vld [vmem:[%s4 + $0x4c] sm:$0xf]
        %v1434 = vpack.c.bf16 %v1415, %v1414
        %v1435 = vpack.c.bf16 %v1417, %v1416
        %v1436 = vpack.c.bf16 %v1419, %v1418
        %v1437 = vpack.c.bf16 %v1421, %v1420
        %v1438 = vpack.c.bf16 %v1423, %v1422
        %v1439 = vpack.c.bf16 %v1425, %v1424
        %v1440 = vpack.c.bf16 %v1427, %v1426
        %v1441 = vpack.c.bf16 %v1429, %v1428
        %v1446 = vunpack.c.l.b16 %v1430
        %v1447 = vunpack.c.l.b16 %v1431
        %v1448 = vunpack.c.l.b16 %v1432
        %v1449 = vunpack.c.l.b16 %v1433
        %v1450 = vpack.c.b16 %v1447, %v1446
        %v1451 = vpack.c.b16 %v1449, %v1448
        %v1455 = vsel %vm679, %v1434, 0
        %v1458 = vsel %vm679, %v1435, 0
        %v1461 = vsel %vm679, %v1436, 0
        %v1464 = vsel %vm679, %v1437, 0
        %v1467 = vsel %vm679, %v1438, 0
        %v1470 = vsel %vm679, %v1439, 0
        %v1473 = vsel %vm679, %v1440, 0
        %v1476 = vsel %vm679, %v1441, 0
        %1478 = vmatprep.subr.bf16.mxu0 0
        %1479 = vmatpush1.bf16.msra.mxu0 %v1450
        %1480 = vmatprep.subr.bf16.mxu0 0
        %1481 = vmatpush1.bf16.msra.mxu0 %v1451
        %1482 = vmatprep.subr.bf16.mxu0 0
        %1483 = vmatpush1.bf16.msra.mxu0 0
        %1484 = vmatprep.subr.bf16.mxu0 0
        %1485 = vmatpush1.bf16.msra.mxu0 0
        %1486 = vmatprep.subr.bf16.mxu0 0
        %1487 = vmatpush1.bf16.msra.mxu0 0
        %1488 = vmatprep.subr.bf16.mxu0 0
        %1489 = vmatpush1.bf16.msra.mxu0 0
        %1490 = vmatprep.subr.bf16.mxu0 0
        %1491 = vmatpush1.bf16.msra.mxu0 0
        %1492 = vmatprep.subr.bf16.mxu0 0
        %1493 = vmatpush1.bf16.msra.mxu0 0
        %1494 = vmatprep.subr.bf16.mxu0 0
        %1495 = vmatpush1.bf16.msra.mxu0 0
        %1496 = vmatprep.subr.bf16.mxu0 0
        %1497 = vmatpush1.bf16.msra.mxu0 0
        %1498 = vmatprep.subr.bf16.mxu0 0
        %1499 = vmatpush1.bf16.msra.mxu0 0
        %1500 = vmatprep.subr.bf16.mxu0 0
        %1501 = vmatpush1.bf16.msra.mxu0 0
        %1502 = vmatprep.subr.bf16.mxu0 0
        %1503 = vmatpush1.bf16.msra.mxu0 0
        %1504 = vmatprep.subr.bf16.mxu0 0
        %1505 = vmatpush1.bf16.msra.mxu0 0
        %1506 = vmatprep.subr.bf16.mxu0 0
        %1507 = vmatpush1.bf16.msra.mxu0 0
        %1508 = vmatprep.subr.bf16.mxu0 0
        %1509 = vmatpush1.bf16.msra.mxu0 0
        %1510 = vmatprep.mubr.bf16.mxu0 0
        %1511 = vmatmul.mubr.bf16.gmra.mrb[0].mxu0 %v1455
        %v1512 = vpop.f32.mrb[0].mxu0
        %v1513 = vadd.f32 0.0, %v1512
        %v1514 = vpop.f32.mrb[0].mxu0
        %v1515 = vpop.f32.mrb[0].mxu0
        %v1516 = vadd.f32 0.0, %v1515
        %v1517 = vpop.f32.mrb[0].mxu0
        %1518 = vmatprep.mubr.bf16.mxu0 0
        %1519 = vmatmul.mubr.bf16.gmra.mrb[0].mxu0 %v1458
        %v1520 = vpop.f32.mrb[0].mxu0
        %v1521 = vadd.f32 0.0, %v1520
        %v1522 = vpop.f32.mrb[0].mxu0
        %v1523 = vpop.f32.mrb[0].mxu0
        %v1524 = vadd.f32 0.0, %v1523
        %v1525 = vpop.f32.mrb[0].mxu0
        %1526 = vmatprep.mubr.bf16.mxu0 0
        %1527 = vmatmul.mubr.bf16.gmra.mrb[0].mxu0 %v1461
        %v1528 = vpop.f32.mrb[0].mxu0
        %v1529 = vadd.f32 0.0, %v1528
        %v1530 = vpop.f32.mrb[0].mxu0
        %v1531 = vpop.f32.mrb[0].mxu0
        %v1532 = vadd.f32 0.0, %v1531
        %v1533 = vpop.f32.mrb[0].mxu0
        %1534 = vmatprep.mubr.bf16.mxu0 0
        %1535 = vmatmul.mubr.bf16.gmra.mrb[0].mxu0 %v1464
        %v1536 = vpop.f32.mrb[0].mxu0
        %v1537 = vadd.f32 0.0, %v1536
        %v1538 = vpop.f32.mrb[0].mxu0
        %v1539 = vpop.f32.mrb[0].mxu0
        %v1540 = vadd.f32 0.0, %v1539
        %v1541 = vpop.f32.mrb[0].mxu0
        %1542 = vmatprep.mubr.bf16.mxu0 0
        %1543 = vmatmul.mubr.bf16.gmra.mrb[0].mxu0 %v1467
        %v1544 = vpop.f32.mrb[0].mxu0
        %v1545 = vadd.f32 0.0, %v1544
        %v1546 = vpop.f32.mrb[0].mxu0
        %v1547 = vpop.f32.mrb[0].mxu0
        %v1548 = vadd.f32 0.0, %v1547
        %v1549 = vpop.f32.mrb[0].mxu0
        %1550 = vmatprep.mubr.bf16.mxu0 0
        %1551 = vmatmul.mubr.bf16.gmra.mrb[0].mxu0 %v1470
        %v1552 = vpop.f32.mrb[0].mxu0
        %v1553 = vadd.f32 0.0, %v1552
        %v1554 = vpop.f32.mrb[0].mxu0
        %v1555 = vpop.f32.mrb[0].mxu0
        %v1556 = vadd.f32 0.0, %v1555
        %v1557 = vpop.f32.mrb[0].mxu0
        %1558 = vmatprep.mubr.bf16.mxu0 0
        %1559 = vmatmul.mubr.bf16.gmra.mrb[0].mxu0 %v1473
        %v1560 = vpop.f32.mrb[0].mxu0
        %v1561 = vadd.f32 0.0, %v1560
        %v1562 = vpop.f32.mrb[0].mxu0
        %v1563 = vpop.f32.mrb[0].mxu0
        %v1564 = vadd.f32 0.0, %v1563
        %v1565 = vpop.f32.mrb[0].mxu0
        %1566 = vmatprep.mubr.bf16.mxu0 0
        %1567 = vmatmul.mubr.bf16.gmra.mrb[0].mxu0 %v1476
        %v1568 = vpop.f32.mrb[0].mxu0
        %v1569 = vadd.f32 0.0, %v1568
        %v1570 = vpop.f32.mrb[0].mxu0
        %v1571 = vpop.f32.mrb[0].mxu0
        %v1572 = vadd.f32 0.0, %v1571
        %v1573 = vpop.f32.mrb[0].mxu0
        %1574 = vdwg.mxu0
        %v1575 = vadd.f32 %v1398, %v1513
        %v1576 = vadd.f32 %v1399, %v1516
        %v1577 = vadd.f32 %v1400, %v1521
        %v1578 = vadd.f32 %v1401, %v1524
        %v1579 = vadd.f32 %v1402, %v1529
        %v1580 = vadd.f32 %v1403, %v1532
        %v1581 = vadd.f32 %v1404, %v1537
        %v1582 = vadd.f32 %v1405, %v1540
        %v1583 = vadd.f32 %v1406, %v1545
        %v1584 = vadd.f32 %v1407, %v1548
        %v1585 = vadd.f32 %v1408, %v1553
        %v1586 = vadd.f32 %v1409, %v1556
        %v1587 = vadd.f32 %v1410, %v1561
        %v1588 = vadd.f32 %v1411, %v1564
        %v1589 = vadd.f32 %v1412, %v1569
        %v1590 = vadd.f32 %v1413, %v1572
        %v1591 = vld [vmem:[%s721 + $0x2] sm:$0xff]
        %v1592 = vld [vmem:[%s721 + $0x12] sm:$0xff]
        %v1593 = vld [vmem:[%s721 + $0x22] sm:$0xff]
        %v1594 = vld [vmem:[%s721 + $0x32] sm:$0xff]
        %v1595 = vld [vmem:[%s721 + $0x42] sm:$0xff]
        %v1596 = vld [vmem:[%s721 + $0x52] sm:$0xff]
        %v1597 = vld [vmem:[%s721 + $0x62] sm:$0xff]
        %v1598 = vld [vmem:[%s721 + $0x72] sm:$0xff]
        %v1599 = vld [vmem:[%s721 + $0xa2] sm:$0xff]
        %v1600 = vld [vmem:[%s721 + $0xb2] sm:$0xff]
        %v1601 = vld [vmem:[%s721 + $0xc2] sm:$0xff]
        %v1602 = vld [vmem:[%s721 + $0xd2] sm:$0xff]
        %v1603 = vld [vmem:[%s721 + $0xe2] sm:$0xff]
        %v1604 = vld [vmem:[%s721 + $0xf2] sm:$0xff]
        %v1605 = vld [vmem:[%s721 + $0x102] sm:$0xff]
        %v1606 = vld [vmem:[%s721 + $0x112] sm:$0xff]
        %v1607 = vld [vmem:[%s4 + $0x50] sm:$0xf]
        %v1608 = vld [vmem:[%s4 + $0x54] sm:$0xf]
        %v1609 = vld [vmem:[%s4 + $0x58] sm:$0xf]
        %v1610 = vld [vmem:[%s4 + $0x5c] sm:$0xf]
        %v1611 = vpack.c.bf16 %v1592, %v1591
        %v1612 = vpack.c.bf16 %v1594, %v1593
        %v1613 = vpack.c.bf16 %v1596, %v1595
        %v1614 = vpack.c.bf16 %v1598, %v1597
        %v1615 = vpack.c.bf16 %v1600, %v1599
        %v1616 = vpack.c.bf16 %v1602, %v1601
        %v1617 = vpack.c.bf16 %v1604, %v1603
        %v1618 = vpack.c.bf16 %v1606, %v1605
        %v1623 = vunpack.c.l.b16 %v1607
        %v1624 = vunpack.c.l.b16 %v1608
        %v1625 = vunpack.c.l.b16 %v1609
        %v1626 = vunpack.c.l.b16 %v1610
        %v1627 = vpack.c.b16 %v1624, %v1623
        %v1628 = vpack.c.b16 %v1626, %v1625
        %v1632 = vsel %vm679, %v1611, 0
        %v1635 = vsel %vm679, %v1612, 0
        %v1638 = vsel %vm679, %v1613, 0
        %v1641 = vsel %vm679, %v1614, 0
        %v1644 = vsel %vm679, %v1615, 0
        %v1647 = vsel %vm679, %v1616, 0
        %v1650 = vsel %vm679, %v1617, 0
        %v1653 = vsel %vm679, %v1618, 0
        %1655 = vmatprep.subr.bf16.mxu0 0
        %1656 = vmatpush1.bf16.msra.mxu0 %v1627
        %1657 = vmatprep.subr.bf16.mxu0 0
        %1658 = vmatpush1.bf16.msra.mxu0 %v1628
        %1659 = vmatprep.subr.bf16.mxu0 0
        %1660 = vmatpush1.bf16.msra.mxu0 0
        %1661 = vmatprep.subr.bf16.mxu0 0
        %1662 = vmatpush1.bf16.msra.mxu0 0
        %1663 = vmatprep.subr.bf16.mxu0 0
        %1664 = vmatpush1.bf16.msra.mxu0 0
        %1665 = vmatprep.subr.bf16.mxu0 0
        %1666 = vmatpush1.bf16.msra.mxu0 0
        %1667 = vmatprep.subr.bf16.mxu0 0
        %1668 = vmatpush1.bf16.msra.mxu0 0
        %1669 = vmatprep.subr.bf16.mxu0 0
        %1670 = vmatpush1.bf16.msra.mxu0 0
        %1671 = vmatprep.subr.bf16.mxu0 0
        %1672 = vmatpush1.bf16.msra.mxu0 0
        %1673 = vmatprep.subr.bf16.mxu0 0
        %1674 = vmatpush1.bf16.msra.mxu0 0
        %1675 = vmatprep.subr.bf16.mxu0 0
        %1676 = vmatpush1.bf16.msra.mxu0 0
        %1677 = vmatprep.subr.bf16.mxu0 0
        %1678 = vmatpush1.bf16.msra.mxu0 0
        %1679 = vmatprep.subr.bf16.mxu0 0
        %1680 = vmatpush1.bf16.msra.mxu0 0
        %1681 = vmatprep.subr.bf16.mxu0 0
        %1682 = vmatpush1.bf16.msra.mxu0 0
        %1683 = vmatprep.subr.bf16.mxu0 0
        %1684 = vmatpush1.bf16.msra.mxu0 0
        %1685 = vmatprep.subr.bf16.mxu0 0
        %1686 = vmatpush1.bf16.msra.mxu0 0
        %1687 = vmatprep.mubr.bf16.mxu0 0
        %1688 = vmatmul.mubr.bf16.gmra.mrb[0].mxu0 %v1632
        %v1689 = vpop.f32.mrb[0].mxu0
        %v1690 = vadd.f32 0.0, %v1689
        %v1691 = vpop.f32.mrb[0].mxu0
        %v1692 = vpop.f32.mrb[0].mxu0
        %v1693 = vadd.f32 0.0, %v1692
        %v1694 = vpop.f32.mrb[0].mxu0
        %1695 = vmatprep.mubr.bf16.mxu0 0
        %1696 = vmatmul.mubr.bf16.gmra.mrb[0].mxu0 %v1635
        %v1697 = vpop.f32.mrb[0].mxu0
        %v1698 = vadd.f32 0.0, %v1697
        %v1699 = vpop.f32.mrb[0].mxu0
        %v1700 = vpop.f32.mrb[0].mxu0
        %v1701 = vadd.f32 0.0, %v1700
        %v1702 = vpop.f32.mrb[0].mxu0
        %1703 = vmatprep.mubr.bf16.mxu0 0
        %1704 = vmatmul.mubr.bf16.gmra.mrb[0].mxu0 %v1638
        %v1705 = vpop.f32.mrb[0].mxu0
        %v1706 = vadd.f32 0.0, %v1705
        %v1707 = vpop.f32.mrb[0].mxu0
        %v1708 = vpop.f32.mrb[0].mxu0
        %v1709 = vadd.f32 0.0, %v1708
        %v1710 = vpop.f32.mrb[0].mxu0
        %1711 = vmatprep.mubr.bf16.mxu0 0
        %1712 = vmatmul.mubr.bf16.gmra.mrb[0].mxu0 %v1641
        %v1713 = vpop.f32.mrb[0].mxu0
        %v1714 = vadd.f32 0.0, %v1713
        %v1715 = vpop.f32.mrb[0].mxu0
        %v1716 = vpop.f32.mrb[0].mxu0
        %v1717 = vadd.f32 0.0, %v1716
        %v1718 = vpop.f32.mrb[0].mxu0
        %1719 = vmatprep.mubr.bf16.mxu0 0
        %1720 = vmatmul.mubr.bf16.gmra.mrb[0].mxu0 %v1644
        %v1721 = vpop.f32.mrb[0].mxu0
        %v1722 = vadd.f32 0.0, %v1721
        %v1723 = vpop.f32.mrb[0].mxu0
        %v1724 = vpop.f32.mrb[0].mxu0
        %v1725 = vadd.f32 0.0, %v1724
        %v1726 = vpop.f32.mrb[0].mxu0
        %1727 = vmatprep.mubr.bf16.mxu0 0
        %1728 = vmatmul.mubr.bf16.gmra.mrb[0].mxu0 %v1647
        %v1729 = vpop.f32.mrb[0].mxu0
        %v1730 = vadd.f32 0.0, %v1729
        %v1731 = vpop.f32.mrb[0].mxu0
        %v1732 = vpop.f32.mrb[0].mxu0
        %v1733 = vadd.f32 0.0, %v1732
        %v1734 = vpop.f32.mrb[0].mxu0
        %1735 = vmatprep.mubr.bf16.mxu0 0
        %1736 = vmatmul.mubr.bf16.gmra.mrb[0].mxu0 %v1650
        %v1737 = vpop.f32.mrb[0].mxu0
        %v1738 = vadd.f32 0.0, %v1737
        %v1739 = vpop.f32.mrb[0].mxu0
        %v1740 = vpop.f32.mrb[0].mxu0
        %v1741 = vadd.f32 0.0, %v1740
        %v1742 = vpop.f32.mrb[0].mxu0
        %1743 = vmatprep.mubr.bf16.mxu0 0
        %1744 = vmatmul.mubr.bf16.gmra.mrb[0].mxu0 %v1653
        %v1745 = vpop.f32.mrb[0].mxu0
        %v1746 = vadd.f32 0.0, %v1745
        %v1747 = vpop.f32.mrb[0].mxu0
        %v1748 = vpop.f32.mrb[0].mxu0
        %v1749 = vadd.f32 0.0, %v1748
        %v1750 = vpop.f32.mrb[0].mxu0
        %1751 = vdwg.mxu0
        %v1752 = vadd.f32 %v1575, %v1690
        %v1753 = vadd.f32 %v1576, %v1693
        %v1754 = vadd.f32 %v1577, %v1698
        %v1755 = vadd.f32 %v1578, %v1701
        %v1756 = vadd.f32 %v1579, %v1706
        %v1757 = vadd.f32 %v1580, %v1709
        %v1758 = vadd.f32 %v1581, %v1714
        %v1759 = vadd.f32 %v1582, %v1717
        %v1760 = vadd.f32 %v1583, %v1722
        %v1761 = vadd.f32 %v1584, %v1725
        %v1762 = vadd.f32 %v1585, %v1730
        %v1763 = vadd.f32 %v1586, %v1733
        %v1764 = vadd.f32 %v1587, %v1738
        %v1765 = vadd.f32 %v1588, %v1741
        %v1766 = vadd.f32 %v1589, %v1746
        %v1767 = vadd.f32 %v1590, %v1749
        %s1768 = scalar_lea.vmem [#allocation2], 32
        %v1769 = vld [vmem:[%s1768] sm:$0xff]
        %v1770 = vld [vmem:[%s1768 + $0x10] sm:$0xff]
        %v1771 = vld [vmem:[%s1768 + $0x20] sm:$0xff]
        %v1772 = vld [vmem:[%s1768 + $0x30] sm:$0xff]
        %v1773 = vld [vmem:[%s1768 + $0x40] sm:$0xff]
        %v1774 = vld [vmem:[%s1768 + $0x50] sm:$0xff]
        %v1775 = vld [vmem:[%s1768 + $0x60] sm:$0xff]
        %v1776 = vld [vmem:[%s1768 + $0x70] sm:$0xff]
        %v1777 = vld [vmem:[%s1768 + $0xa0] sm:$0xff]
        %v1778 = vld [vmem:[%s1768 + $0xb0] sm:$0xff]
        %v1779 = vld [vmem:[%s1768 + $0xc0] sm:$0xff]
        %v1780 = vld [vmem:[%s1768 + $0xd0] sm:$0xff]
        %v1781 = vld [vmem:[%s1768 + $0xe0] sm:$0xff]
        %v1782 = vld [vmem:[%s1768 + $0xf0] sm:$0xff]
        %v1783 = vld [vmem:[%s1768 + $0x100] sm:$0xff]
        %v1784 = vld [vmem:[%s1768 + $0x110] sm:$0xff]
        %v1785 = vld [vmem:[%s4 + $0x60] sm:$0xf]
        %v1786 = vld [vmem:[%s4 + $0x64] sm:$0xf]
        %v1787 = vld [vmem:[%s4 + $0x68] sm:$0xf]
        %v1788 = vld [vmem:[%s4 + $0x6c] sm:$0xf]
        %v1789 = vpack.c.bf16 %v1770, %v1769
        %v1790 = vpack.c.bf16 %v1772, %v1771
        %v1791 = vpack.c.bf16 %v1774, %v1773
        %v1792 = vpack.c.bf16 %v1776, %v1775
        %v1793 = vpack.c.bf16 %v1778, %v1777
        %v1794 = vpack.c.bf16 %v1780, %v1779
        %v1795 = vpack.c.bf16 %v1782, %v1781
        %v1796 = vpack.c.bf16 %v1784, %v1783
        %v1801 = vunpack.c.l.b16 %v1785
        %v1802 = vunpack.c.l.b16 %v1786
        %v1803 = vunpack.c.l.b16 %v1787
        %v1804 = vunpack.c.l.b16 %v1788
        %v1805 = vpack.c.b16 %v1802, %v1801
        %v1806 = vpack.c.b16 %v1804, %v1803
        %v1810 = vsel %vm679, %v1789, 0
        %v1813 = vsel %vm679, %v1790, 0
        %v1816 = vsel %vm679, %v1791, 0
        %v1819 = vsel %vm679, %v1792, 0
        %v1822 = vsel %vm679, %v1793, 0
        %v1825 = vsel %vm679, %v1794, 0
        %v1828 = vsel %vm679, %v1795, 0
        %v1831 = vsel %vm679, %v1796, 0
        %1833 = vmatprep.subr.bf16.mxu0 0
        %1834 = vmatpush1.bf16.msra.mxu0 %v1805
        %1835 = vmatprep.subr.bf16.mxu0 0
        %1836 = vmatpush1.bf16.msra.mxu0 %v1806
        %1837 = vmatprep.subr.bf16.mxu0 0
        %1838 = vmatpush1.bf16.msra.mxu0 0
        %1839 = vmatprep.subr.bf16.mxu0 0
        %1840 = vmatpush1.bf16.msra.mxu0 0
        %1841 = vmatprep.subr.bf16.mxu0 0
        %1842 = vmatpush1.bf16.msra.mxu0 0
        %1843 = vmatprep.subr.bf16.mxu0 0
        %1844 = vmatpush1.bf16.msra.mxu0 0
        %1845 = vmatprep.subr.bf16.mxu0 0
        %1846 = vmatpush1.bf16.msra.mxu0 0
        %1847 = vmatprep.subr.bf16.mxu0 0
        %1848 = vmatpush1.bf16.msra.mxu0 0
        %1849 = vmatprep.subr.bf16.mxu0 0
        %1850 = vmatpush1.bf16.msra.mxu0 0
        %1851 = vmatprep.subr.bf16.mxu0 0
        %1852 = vmatpush1.bf16.msra.mxu0 0
        %1853 = vmatprep.subr.bf16.mxu0 0
        %1854 = vmatpush1.bf16.msra.mxu0 0
        %1855 = vmatprep.subr.bf16.mxu0 0
        %1856 = vmatpush1.bf16.msra.mxu0 0
        %1857 = vmatprep.subr.bf16.mxu0 0
        %1858 = vmatpush1.bf16.msra.mxu0 0
        %1859 = vmatprep.subr.bf16.mxu0 0
        %1860 = vmatpush1.bf16.msra.mxu0 0
        %1861 = vmatprep.subr.bf16.mxu0 0
        %1862 = vmatpush1.bf16.msra.mxu0 0
        %1863 = vmatprep.subr.bf16.mxu0 0
        %1864 = vmatpush1.bf16.msra.mxu0 0
        %1865 = vmatprep.mubr.bf16.mxu0 0
        %1866 = vmatmul.mubr.bf16.gmra.mrb[0].mxu0 %v1810
        %v1867 = vpop.f32.mrb[0].mxu0
        %v1868 = vadd.f32 0.0, %v1867
        %v1869 = vpop.f32.mrb[0].mxu0
        %v1870 = vpop.f32.mrb[0].mxu0
        %v1871 = vadd.f32 0.0, %v1870
        %v1872 = vpop.f32.mrb[0].mxu0
        %1873 = vmatprep.mubr.bf16.mxu0 0
        %1874 = vmatmul.mubr.bf16.gmra.mrb[0].mxu0 %v1813
        %v1875 = vpop.f32.mrb[0].mxu0
        %v1876 = vadd.f32 0.0, %v1875
        %v1877 = vpop.f32.mrb[0].mxu0
        %v1878 = vpop.f32.mrb[0].mxu0
        %v1879 = vadd.f32 0.0, %v1878
        %v1880 = vpop.f32.mrb[0].mxu0
        %1881 = vmatprep.mubr.bf16.mxu0 0
        %1882 = vmatmul.mubr.bf16.gmra.mrb[0].mxu0 %v1816
        %v1883 = vpop.f32.mrb[0].mxu0
        %v1884 = vadd.f32 0.0, %v1883
        %v1885 = vpop.f32.mrb[0].mxu0
        %v1886 = vpop.f32.mrb[0].mxu0
        %v1887 = vadd.f32 0.0, %v1886
        %v1888 = vpop.f32.mrb[0].mxu0
        %1889 = vmatprep.mubr.bf16.mxu0 0
        %1890 = vmatmul.mubr.bf16.gmra.mrb[0].mxu0 %v1819
        %v1891 = vpop.f32.mrb[0].mxu0
        %v1892 = vadd.f32 0.0, %v1891
        %v1893 = vpop.f32.mrb[0].mxu0
        %v1894 = vpop.f32.mrb[0].mxu0
        %v1895 = vadd.f32 0.0, %v1894
        %v1896 = vpop.f32.mrb[0].mxu0
        %1897 = vmatprep.mubr.bf16.mxu0 0
        %1898 = vmatmul.mubr.bf16.gmra.mrb[0].mxu0 %v1822
        %v1899 = vpop.f32.mrb[0].mxu0
        %v1900 = vadd.f32 0.0, %v1899
        %v1901 = vpop.f32.mrb[0].mxu0
        %v1902 = vpop.f32.mrb[0].mxu0
        %v1903 = vadd.f32 0.0, %v1902
        %v1904 = vpop.f32.mrb[0].mxu0
        %1905 = vmatprep.mubr.bf16.mxu0 0
        %1906 = vmatmul.mubr.bf16.gmra.mrb[0].mxu0 %v1825
        %v1907 = vpop.f32.mrb[0].mxu0
        %v1908 = vadd.f32 0.0, %v1907
        %v1909 = vpop.f32.mrb[0].mxu0
        %v1910 = vpop.f32.mrb[0].mxu0
        %v1911 = vadd.f32 0.0, %v1910
        %v1912 = vpop.f32.mrb[0].mxu0
        %1913 = vmatprep.mubr.bf16.mxu0 0
        %1914 = vmatmul.mubr.bf16.gmra.mrb[0].mxu0 %v1828
        %v1915 = vpop.f32.mrb[0].mxu0
        %v1916 = vadd.f32 0.0, %v1915
        %v1917 = vpop.f32.mrb[0].mxu0
        %v1918 = vpop.f32.mrb[0].mxu0
        %v1919 = vadd.f32 0.0, %v1918
        %v1920 = vpop.f32.mrb[0].mxu0
        %1921 = vmatprep.mubr.bf16.mxu0 0
        %1922 = vmatmul.mubr.bf16.gmra.mrb[0].mxu0 %v1831
        %v1923 = vpop.f32.mrb[0].mxu0
        %v1924 = vadd.f32 0.0, %v1923
        %v1925 = vpop.f32.mrb[0].mxu0
        %v1926 = vpop.f32.mrb[0].mxu0
        %v1927 = vadd.f32 0.0, %v1926
        %v1928 = vpop.f32.mrb[0].mxu0
        %1929 = vdwg.mxu0
        %v1930 = vadd.f32 %v1752, %v1868
        %v1931 = vadd.f32 %v1753, %v1871
        %v1932 = vadd.f32 %v1754, %v1876
        %v1933 = vadd.f32 %v1755, %v1879
        %v1934 = vadd.f32 %v1756, %v1884
        %v1935 = vadd.f32 %v1757, %v1887
        %v1936 = vadd.f32 %v1758, %v1892
        %v1937 = vadd.f32 %v1759, %v1895
        %v1938 = vadd.f32 %v1760, %v1900
        %v1939 = vadd.f32 %v1761, %v1903
        %v1940 = vadd.f32 %v1762, %v1908
        %v1941 = vadd.f32 %v1763, %v1911
        %v1942 = vadd.f32 %v1764, %v1916
        %v1943 = vadd.f32 %v1765, %v1919
        %v1944 = vadd.f32 %v1766, %v1924
        %v1945 = vadd.f32 %v1767, %v1927
        %v1946 = vld [vmem:[%s1768 + $0x1] sm:$0xff]
        %v1947 = vld [vmem:[%s1768 + $0x11] sm:$0xff]
        %v1948 = vld [vmem:[%s1768 + $0x21] sm:$0xff]
        %v1949 = vld [vmem:[%s1768 + $0x31] sm:$0xff]
        %v1950 = vld [vmem:[%s1768 + $0x41] sm:$0xff]
        %v1951 = vld [vmem:[%s1768 + $0x51] sm:$0xff]
        %v1952 = vld [vmem:[%s1768 + $0x61] sm:$0xff]
        %v1953 = vld [vmem:[%s1768 + $0x71] sm:$0xff]
        %v1954 = vld [vmem:[%s1768 + $0xa1] sm:$0xff]
        %v1955 = vld [vmem:[%s1768 + $0xb1] sm:$0xff]
        %v1956 = vld [vmem:[%s1768 + $0xc1] sm:$0xff]
        %v1957 = vld [vmem:[%s1768 + $0xd1] sm:$0xff]
        %v1958 = vld [vmem:[%s1768 + $0xe1] sm:$0xff]
        %v1959 = vld [vmem:[%s1768 + $0xf1] sm:$0xff]
        %v1960 = vld [vmem:[%s1768 + $0x101] sm:$0xff]
        %v1961 = vld [vmem:[%s1768 + $0x111] sm:$0xff]
        %v1962 = vld [vmem:[%s4 + $0x70] sm:$0xf]
        %v1963 = vld [vmem:[%s4 + $0x74] sm:$0xf]
        %v1964 = vld [vmem:[%s4 + $0x78] sm:$0xf]
        %v1965 = vld [vmem:[%s4 + $0x7c] sm:$0xf]
        %v1966 = vpack.c.bf16 %v1947, %v1946
        %v1967 = vpack.c.bf16 %v1949, %v1948
        %v1968 = vpack.c.bf16 %v1951, %v1950
        %v1969 = vpack.c.bf16 %v1953, %v1952
        %v1970 = vpack.c.bf16 %v1955, %v1954
        %v1971 = vpack.c.bf16 %v1957, %v1956
        %v1972 = vpack.c.bf16 %v1959, %v1958
        %v1973 = vpack.c.bf16 %v1961, %v1960
        %v1978 = vunpack.c.l.b16 %v1962
        %v1979 = vunpack.c.l.b16 %v1963
        %v1980 = vunpack.c.l.b16 %v1964
        %v1981 = vunpack.c.l.b16 %v1965
        %v1982 = vpack.c.b16 %v1979, %v1978
        %v1983 = vpack.c.b16 %v1981, %v1980
        %v1987 = vsel %vm679, %v1966, 0
        %v1990 = vsel %vm679, %v1967, 0
        %v1993 = vsel %vm679, %v1968, 0
        %v1996 = vsel %vm679, %v1969, 0
        %v1999 = vsel %vm679, %v1970, 0
        %v2002 = vsel %vm679, %v1971, 0
        %v2005 = vsel %vm679, %v1972, 0
        %v2008 = vsel %vm679, %v1973, 0
        %2010 = vmatprep.subr.bf16.mxu0 0
        %2011 = vmatpush1.bf16.msra.mxu0 %v1982
        %2012 = vmatprep.subr.bf16.mxu0 0
        %2013 = vmatpush1.bf16.msra.mxu0 %v1983
        %2014 = vmatprep.subr.bf16.mxu0 0
        %2015 = vmatpush1.bf16.msra.mxu0 0
        %2016 = vmatprep.subr.bf16.mxu0 0
        %2017 = vmatpush1.bf16.msra.mxu0 0
        %2018 = vmatprep.subr.bf16.mxu0 0
        %2019 = vmatpush1.bf16.msra.mxu0 0
        %2020 = vmatprep.subr.bf16.mxu0 0
        %2021 = vmatpush1.bf16.msra.mxu0 0
        %2022 = vmatprep.subr.bf16.mxu0 0
        %2023 = vmatpush1.bf16.msra.mxu0 0
        %2024 = vmatprep.subr.bf16.mxu0 0
        %2025 = vmatpush1.bf16.msra.mxu0 0
        %2026 = vmatprep.subr.bf16.mxu0 0
        %2027 = vmatpush1.bf16.msra.mxu0 0
        %2028 = vmatprep.subr.bf16.mxu0 0
        %2029 = vmatpush1.bf16.msra.mxu0 0
        %2030 = vmatprep.subr.bf16.mxu0 0
        %2031 = vmatpush1.bf16.msra.mxu0 0
        %2032 = vmatprep.subr.bf16.mxu0 0
        %2033 = vmatpush1.bf16.msra.mxu0 0
        %2034 = vmatprep.subr.bf16.mxu0 0
        %2035 = vmatpush1.bf16.msra.mxu0 0
        %2036 = vmatprep.subr.bf16.mxu0 0
        %2037 = vmatpush1.bf16.msra.mxu0 0
        %2038 = vmatprep.subr.bf16.mxu0 0
        %2039 = vmatpush1.bf16.msra.mxu0 0
        %2040 = vmatprep.subr.bf16.mxu0 0
        %2041 = vmatpush1.bf16.msra.mxu0 0
        %2042 = vmatprep.mubr.bf16.mxu0 0
        %2043 = vmatmul.mubr.bf16.gmra.mrb[0].mxu0 %v1987
        %v2044 = vpop.f32.mrb[0].mxu0
        %v2045 = vadd.f32 0.0, %v2044
        %v2046 = vpop.f32.mrb[0].mxu0
        %v2047 = vpop.f32.mrb[0].mxu0
        %v2048 = vadd.f32 0.0, %v2047
        %v2049 = vpop.f32.mrb[0].mxu0
        %2050 = vmatprep.mubr.bf16.mxu0 0
        %2051 = vmatmul.mubr.bf16.gmra.mrb[0].mxu0 %v1990
        %v2052 = vpop.f32.mrb[0].mxu0
        %v2053 = vadd.f32 0.0, %v2052
        %v2054 = vpop.f32.mrb[0].mxu0
        %v2055 = vpop.f32.mrb[0].mxu0
        %v2056 = vadd.f32 0.0, %v2055
        %v2057 = vpop.f32.mrb[0].mxu0
        %2058 = vmatprep.mubr.bf16.mxu0 0
        %2059 = vmatmul.mubr.bf16.gmra.mrb[0].mxu0 %v1993
        %v2060 = vpop.f32.mrb[0].mxu0
        %v2061 = vadd.f32 0.0, %v2060
        %v2062 = vpop.f32.mrb[0].mxu0
        %v2063 = vpop.f32.mrb[0].mxu0
        %v2064 = vadd.f32 0.0, %v2063
        %v2065 = vpop.f32.mrb[0].mxu0
        %2066 = vmatprep.mubr.bf16.mxu0 0
        %2067 = vmatmul.mubr.bf16.gmra.mrb[0].mxu0 %v1996
        %v2068 = vpop.f32.mrb[0].mxu0
        %v2069 = vadd.f32 0.0, %v2068
        %v2070 = vpop.f32.mrb[0].mxu0
        %v2071 = vpop.f32.mrb[0].mxu0
        %v2072 = vadd.f32 0.0, %v2071
        %v2073 = vpop.f32.mrb[0].mxu0
        %2074 = vmatprep.mubr.bf16.mxu0 0
        %2075 = vmatmul.mubr.bf16.gmra.mrb[0].mxu0 %v1999
        %v2076 = vpop.f32.mrb[0].mxu0
        %v2077 = vadd.f32 0.0, %v2076
        %v2078 = vpop.f32.mrb[0].mxu0
        %v2079 = vpop.f32.mrb[0].mxu0
        %v2080 = vadd.f32 0.0, %v2079
        %v2081 = vpop.f32.mrb[0].mxu0
        %2082 = vmatprep.mubr.bf16.mxu0 0
        %2083 = vmatmul.mubr.bf16.gmra.mrb[0].mxu0 %v2002
        %v2084 = vpop.f32.mrb[0].mxu0
        %v2085 = vadd.f32 0.0, %v2084
        %v2086 = vpop.f32.mrb[0].mxu0
        %v2087 = vpop.f32.mrb[0].mxu0
        %v2088 = vadd.f32 0.0, %v2087
        %v2089 = vpop.f32.mrb[0].mxu0
        %2090 = vmatprep.mubr.bf16.mxu0 0
        %2091 = vmatmul.mubr.bf16.gmra.mrb[0].mxu0 %v2005
        %v2092 = vpop.f32.mrb[0].mxu0
        %v2093 = vadd.f32 0.0, %v2092
        %v2094 = vpop.f32.mrb[0].mxu0
        %v2095 = vpop.f32.mrb[0].mxu0
        %v2096 = vadd.f32 0.0, %v2095
        %v2097 = vpop.f32.mrb[0].mxu0
        %2098 = vmatprep.mubr.bf16.mxu0 0
        %2099 = vmatmul.mubr.bf16.gmra.mrb[0].mxu0 %v2008
        %v2100 = vpop.f32.mrb[0].mxu0
        %v2101 = vadd.f32 0.0, %v2100
        %v2102 = vpop.f32.mrb[0].mxu0
        %v2103 = vpop.f32.mrb[0].mxu0
        %v2104 = vadd.f32 0.0, %v2103
        %v2105 = vpop.f32.mrb[0].mxu0
        %2106 = vdwg.mxu0
        %v2107 = vadd.f32 %v1930, %v2045
        %v2108 = vadd.f32 %v1931, %v2048
        %v2109 = vadd.f32 %v1932, %v2053
        %v2110 = vadd.f32 %v1933, %v2056
        %v2111 = vadd.f32 %v1934, %v2061
        %v2112 = vadd.f32 %v1935, %v2064
        %v2113 = vadd.f32 %v1936, %v2069
        %v2114 = vadd.f32 %v1937, %v2072
        %v2115 = vadd.f32 %v1938, %v2077
        %v2116 = vadd.f32 %v1939, %v2080
        %v2117 = vadd.f32 %v1940, %v2085
        %v2118 = vadd.f32 %v1941, %v2088
        %v2119 = vadd.f32 %v1942, %v2093
        %v2120 = vadd.f32 %v1943, %v2096
        %v2121 = vadd.f32 %v1944, %v2101
        %v2122 = vadd.f32 %v1945, %v2104
        %v2123 = vld [vmem:[%s1768 + $0x2] sm:$0xff]
        %v2124 = vld [vmem:[%s1768 + $0x12] sm:$0xff]
        %v2125 = vld [vmem:[%s1768 + $0x22] sm:$0xff]
        %v2126 = vld [vmem:[%s1768 + $0x32] sm:$0xff]
        %v2127 = vld [vmem:[%s1768 + $0x42] sm:$0xff]
        %v2128 = vld [vmem:[%s1768 + $0x52] sm:$0xff]
        %v2129 = vld [vmem:[%s1768 + $0x62] sm:$0xff]
        %v2130 = vld [vmem:[%s1768 + $0x72] sm:$0xff]
        %v2131 = vld [vmem:[%s1768 + $0xa2] sm:$0xff]
        %v2132 = vld [vmem:[%s1768 + $0xb2] sm:$0xff]
        %v2133 = vld [vmem:[%s1768 + $0xc2] sm:$0xff]
        %v2134 = vld [vmem:[%s1768 + $0xd2] sm:$0xff]
        %v2135 = vld [vmem:[%s1768 + $0xe2] sm:$0xff]
        %v2136 = vld [vmem:[%s1768 + $0xf2] sm:$0xff]
        %v2137 = vld [vmem:[%s1768 + $0x102] sm:$0xff]
        %v2138 = vld [vmem:[%s1768 + $0x112] sm:$0xff]
        %v2139 = vld [vmem:[%s4 + $0x80] sm:$0xf]
        %v2140 = vld [vmem:[%s4 + $0x84] sm:$0xf]
        %v2141 = vld [vmem:[%s4 + $0x88] sm:$0xf]
        %v2142 = vld [vmem:[%s4 + $0x8c] sm:$0xf]
        %v2143 = vpack.c.bf16 %v2124, %v2123
        %v2144 = vpack.c.bf16 %v2126, %v2125
        %v2145 = vpack.c.bf16 %v2128, %v2127
        %v2146 = vpack.c.bf16 %v2130, %v2129
        %v2147 = vpack.c.bf16 %v2132, %v2131
        %v2148 = vpack.c.bf16 %v2134, %v2133
        %v2149 = vpack.c.bf16 %v2136, %v2135
        %v2150 = vpack.c.bf16 %v2138, %v2137
        %v2155 = vunpack.c.l.b16 %v2139
        %v2156 = vunpack.c.l.b16 %v2140
        %v2157 = vunpack.c.l.b16 %v2141
        %v2158 = vunpack.c.l.b16 %v2142
        %v2159 = vpack.c.b16 %v2156, %v2155
        %v2160 = vpack.c.b16 %v2158, %v2157
        %v2164 = vsel %vm679, %v2143, 0
        %v2167 = vsel %vm679, %v2144, 0
        %v2170 = vsel %vm679, %v2145, 0
        %v2173 = vsel %vm679, %v2146, 0
        %v2176 = vsel %vm679, %v2147, 0
        %v2179 = vsel %vm679, %v2148, 0
        %v2182 = vsel %vm679, %v2149, 0
        %v2185 = vsel %vm679, %v2150, 0
        %2187 = vmatprep.subr.bf16.mxu0 0
        %2188 = vmatpush1.bf16.msra.mxu0 %v2159
        %2189 = vmatprep.subr.bf16.mxu0 0
        %2190 = vmatpush1.bf16.msra.mxu0 %v2160
        %2191 = vmatprep.subr.bf16.mxu0 0
        %2192 = vmatpush1.bf16.msra.mxu0 0
        %2193 = vmatprep.subr.bf16.mxu0 0
        %2194 = vmatpush1.bf16.msra.mxu0 0
        %2195 = vmatprep.subr.bf16.mxu0 0
        %2196 = vmatpush1.bf16.msra.mxu0 0
        %2197 = vmatprep.subr.bf16.mxu0 0
        %2198 = vmatpush1.bf16.msra.mxu0 0
        %2199 = vmatprep.subr.bf16.mxu0 0
        %2200 = vmatpush1.bf16.msra.mxu0 0
        %2201 = vmatprep.subr.bf16.mxu0 0
        %2202 = vmatpush1.bf16.msra.mxu0 0
        %2203 = vmatprep.subr.bf16.mxu0 0
        %2204 = vmatpush1.bf16.msra.mxu0 0
        %2205 = vmatprep.subr.bf16.mxu0 0
        %2206 = vmatpush1.bf16.msra.mxu0 0
        %2207 = vmatprep.subr.bf16.mxu0 0
        %2208 = vmatpush1.bf16.msra.mxu0 0
        %2209 = vmatprep.subr.bf16.mxu0 0
        %2210 = vmatpush1.bf16.msra.mxu0 0
        %2211 = vmatprep.subr.bf16.mxu0 0
        %2212 = vmatpush1.bf16.msra.mxu0 0
        %2213 = vmatprep.subr.bf16.mxu0 0
        %2214 = vmatpush1.bf16.msra.mxu0 0
        %2215 = vmatprep.subr.bf16.mxu0 0
        %2216 = vmatpush1.bf16.msra.mxu0 0
        %2217 = vmatprep.subr.bf16.mxu0 0
        %2218 = vmatpush1.bf16.msra.mxu0 0
        %2219 = vmatprep.mubr.bf16.mxu0 0
        %2220 = vmatmul.mubr.bf16.gmra.mrb[0].mxu0 %v2164
        %v2221 = vpop.f32.mrb[0].mxu0
        %v2222 = vadd.f32 0.0, %v2221
        %v2223 = vpop.f32.mrb[0].mxu0
        %v2224 = vpop.f32.mrb[0].mxu0
        %v2225 = vadd.f32 0.0, %v2224
        %v2226 = vpop.f32.mrb[0].mxu0
        %2227 = vmatprep.mubr.bf16.mxu0 0
        %2228 = vmatmul.mubr.bf16.gmra.mrb[0].mxu0 %v2167
        %v2229 = vpop.f32.mrb[0].mxu0
        %v2230 = vadd.f32 0.0, %v2229
        %v2231 = vpop.f32.mrb[0].mxu0
        %v2232 = vpop.f32.mrb[0].mxu0
        %v2233 = vadd.f32 0.0, %v2232
        %v2234 = vpop.f32.mrb[0].mxu0
        %2235 = vmatprep.mubr.bf16.mxu0 0
        %2236 = vmatmul.mubr.bf16.gmra.mrb[0].mxu0 %v2170
        %v2237 = vpop.f32.mrb[0].mxu0
        %v2238 = vadd.f32 0.0, %v2237
        %v2239 = vpop.f32.mrb[0].mxu0
        %v2240 = vpop.f32.mrb[0].mxu0
        %v2241 = vadd.f32 0.0, %v2240
        %v2242 = vpop.f32.mrb[0].mxu0
        %2243 = vmatprep.mubr.bf16.mxu0 0
        %2244 = vmatmul.mubr.bf16.gmra.mrb[0].mxu0 %v2173
        %v2245 = vpop.f32.mrb[0].mxu0
        %v2246 = vadd.f32 0.0, %v2245
        %v2247 = vpop.f32.mrb[0].mxu0
        %v2248 = vpop.f32.mrb[0].mxu0
        %v2249 = vadd.f32 0.0, %v2248
        %v2250 = vpop.f32.mrb[0].mxu0
        %2251 = vmatprep.mubr.bf16.mxu0 0
        %2252 = vmatmul.mubr.bf16.gmra.mrb[0].mxu0 %v2176
        %v2253 = vpop.f32.mrb[0].mxu0
        %v2254 = vadd.f32 0.0, %v2253
        %v2255 = vpop.f32.mrb[0].mxu0
        %v2256 = vpop.f32.mrb[0].mxu0
        %v2257 = vadd.f32 0.0, %v2256
        %v2258 = vpop.f32.mrb[0].mxu0
        %2259 = vmatprep.mubr.bf16.mxu0 0
        %2260 = vmatmul.mubr.bf16.gmra.mrb[0].mxu0 %v2179
        %v2261 = vpop.f32.mrb[0].mxu0
        %v2262 = vadd.f32 0.0, %v2261
        %v2263 = vpop.f32.mrb[0].mxu0
        %v2264 = vpop.f32.mrb[0].mxu0
        %v2265 = vadd.f32 0.0, %v2264
        %v2266 = vpop.f32.mrb[0].mxu0
        %2267 = vmatprep.mubr.bf16.mxu0 0
        %2268 = vmatmul.mubr.bf16.gmra.mrb[0].mxu0 %v2182
        %v2269 = vpop.f32.mrb[0].mxu0
        %v2270 = vadd.f32 0.0, %v2269
        %v2271 = vpop.f32.mrb[0].mxu0
        %v2272 = vpop.f32.mrb[0].mxu0
        %v2273 = vadd.f32 0.0, %v2272
        %v2274 = vpop.f32.mrb[0].mxu0
        %2275 = vmatprep.mubr.bf16.mxu0 0
        %2276 = vmatmul.mubr.bf16.gmra.mrb[0].mxu0 %v2185
        %v2277 = vpop.f32.mrb[0].mxu0
        %v2278 = vadd.f32 0.0, %v2277
        %v2279 = vpop.f32.mrb[0].mxu0
        %v2280 = vpop.f32.mrb[0].mxu0
        %v2281 = vadd.f32 0.0, %v2280
        %v2282 = vpop.f32.mrb[0].mxu0
        %2283 = vdwg.mxu0
        %v2284 = vadd.f32 %v2107, %v2222
        %v2285 = vadd.f32 %v2108, %v2225
        %v2286 = vadd.f32 %v2109, %v2230
        %v2287 = vadd.f32 %v2110, %v2233
        %v2288 = vadd.f32 %v2111, %v2238
        %v2289 = vadd.f32 %v2112, %v2241
        %v2290 = vadd.f32 %v2113, %v2246
        %v2291 = vadd.f32 %v2114, %v2249
        %v2292 = vadd.f32 %v2115, %v2254
        %v2293 = vadd.f32 %v2116, %v2257
        %v2294 = vadd.f32 %v2117, %v2262
        %v2295 = vadd.f32 %v2118, %v2265
        %v2296 = vadd.f32 %v2119, %v2270
        %v2297 = vadd.f32 %v2120, %v2273
        %v2298 = vadd.f32 %v2121, %v2278
        %v2299 = vadd.f32 %v2122, %v2281
        %v2300 = vld [vmem:[%s5] sm:$0x1]
        %v2302 = vlaneseq
        %v2303 = vshrl.u32 %v2302, 7
        %v2304 = vsub.s32 0, %v2303
        %v2305 = vrot.slane %v2300, %v2304
        %v2307 = vmul.f32 %v2284, %v2305
        %v2308 = vmul.f32 %v2285, %v2305
        %v2309 = vmul.f32 %v2286, %v2305
        %v2310 = vmul.f32 %v2287, %v2305
        %v2311 = vmul.f32 %v2288, %v2305
        %v2312 = vmul.f32 %v2289, %v2305
        %v2313 = vmul.f32 %v2290, %v2305
        %v2314 = vmul.f32 %v2291, %v2305
        %v2315 = vmul.f32 %v2292, %v2305
        %v2316 = vmul.f32 %v2293, %v2305
        %v2317 = vmul.f32 %v2294, %v2305
        %v2318 = vmul.f32 %v2295, %v2305
        %v2319 = vmul.f32 %v2296, %v2305
        %v2320 = vmul.f32 %v2297, %v2305
        %v2321 = vmul.f32 %v2298, %v2305
        %v2322 = vmul.f32 %v2299, %v2305
        %v2323 = vld [vmem:[%s6] sm:$0x1]
        %v2325 = vlaneseq
        %v2326 = vshrl.u32 %v2325, 7
        %v2327 = vsub.s32 0, %v2326
        %v2328 = vrot.slane %v2323, %v2327
        %v2330 = vadd.f32 %v2307, %v2328
        %v2331 = vadd.f32 %v2308, %v2328
        %v2332 = vadd.f32 %v2309, %v2328
        %v2333 = vadd.f32 %v2310, %v2328
        %v2334 = vadd.f32 %v2311, %v2328
        %v2335 = vadd.f32 %v2312, %v2328
        %v2336 = vadd.f32 %v2313, %v2328
        %v2337 = vadd.f32 %v2314, %v2328
        %v2338 = vadd.f32 %v2315, %v2328
        %v2339 = vadd.f32 %v2316, %v2328
        %v2340 = vadd.f32 %v2317, %v2328
        %v2341 = vadd.f32 %v2318, %v2328
        %v2342 = vadd.f32 %v2319, %v2328
        %v2343 = vadd.f32 %v2320, %v2328
        %v2344 = vadd.f32 %v2321, %v2328
        %v2345 = vadd.f32 %v2322, %v2328
        %v2346 = vmax.f32 %v2330, 0.0
        %v2347 = vmax.f32 %v2331, 0.0
        %v2348 = vmax.f32 %v2332, 0.0
        %v2349 = vmax.f32 %v2333, 0.0
        %v2350 = vmax.f32 %v2334, 0.0
        %v2351 = vmax.f32 %v2335, 0.0
        %v2352 = vmax.f32 %v2336, 0.0
        %v2353 = vmax.f32 %v2337, 0.0
        %v2354 = vmax.f32 %v2338, 0.0
        %v2355 = vmax.f32 %v2339, 0.0
        %v2356 = vmax.f32 %v2340, 0.0
        %v2357 = vmax.f32 %v2341, 0.0
        %v2358 = vmax.f32 %v2342, 0.0
        %v2359 = vmax.f32 %v2343, 0.0
        %v2360 = vmax.f32 %v2344, 0.0
        %v2361 = vmax.f32 %v2345, 0.0
        %v2362 = vpack.c.bf16 %v2347, %v2346
        %v2363 = vpack.c.bf16 %v2349, %v2348
        %v2364 = vpack.c.bf16 %v2351, %v2350
        %v2365 = vpack.c.bf16 %v2353, %v2352
        %v2366 = vpack.c.bf16 %v2355, %v2354
        %v2367 = vpack.c.bf16 %v2357, %v2356
        %v2368 = vpack.c.bf16 %v2359, %v2358
        %v2369 = vpack.c.bf16 %v2361, %v2360
        %v2370 = vld [vmem:[%s7] sm:$0xf]
        %v2371 = vld [vmem:[%s7 + $0x4] sm:$0xf]
        %v2372 = vld [vmem:[%s7 + $0x8] sm:$0xf]
        %v2373 = vld [vmem:[%s7 + $0xc] sm:$0xf]
        %v2378 = vunpack.c.l.b16 %v2370
        %v2379 = vunpack.c.l.b16 %v2371
        %v2380 = vunpack.c.l.b16 %v2372
        %v2381 = vunpack.c.l.b16 %v2373
        %v2382 = vpack.c.b16 %v2379, %v2378
        %v2383 = vpack.c.b16 %v2381, %v2380
        %v2387 = vsel %vm679, %v2362, 0
        %v2390 = vsel %vm679, %v2363, 0
        %v2393 = vsel %vm679, %v2364, 0
        %v2396 = vsel %vm679, %v2365, 0
        %v2399 = vsel %vm679, %v2366, 0
        %v2402 = vsel %vm679, %v2367, 0
        %v2405 = vsel %vm679, %v2368, 0
        %v2408 = vsel %vm679, %v2369, 0
        %2410 = vmatprep.subr.bf16.mxu0 0
        %2411 = vmatpush1.bf16.msra.mxu0 %v2382
        %2412 = vmatprep.subr.bf16.mxu0 0
        %2413 = vmatpush1.bf16.msra.mxu0 %v2383
        %2414 = vmatprep.subr.bf16.mxu0 0
        %2415 = vmatpush1.bf16.msra.mxu0 0
        %2416 = vmatprep.subr.bf16.mxu0 0
        %2417 = vmatpush1.bf16.msra.mxu0 0
        %2418 = vmatprep.subr.bf16.mxu0 0
        %2419 = vmatpush1.bf16.msra.mxu0 0
        %2420 = vmatprep.subr.bf16.mxu0 0
        %2421 = vmatpush1.bf16.msra.mxu0 0
        %2422 = vmatprep.subr.bf16.mxu0 0
        %2423 = vmatpush1.bf16.msra.mxu0 0
        %2424 = vmatprep.subr.bf16.mxu0 0
        %2425 = vmatpush1.bf16.msra.mxu0 0
        %2426 = vmatprep.subr.bf16.mxu0 0
        %2427 = vmatpush1.bf16.msra.mxu0 0
        %2428 = vmatprep.subr.bf16.mxu0 0
        %2429 = vmatpush1.bf16.msra.mxu0 0
        %2430 = vmatprep.subr.bf16.mxu0 0
        %2431 = vmatpush1.bf16.msra.mxu0 0
        %2432 = vmatprep.subr.bf16.mxu0 0
        %2433 = vmatpush1.bf16.msra.mxu0 0
        %2434 = vmatprep.subr.bf16.mxu0 0
        %2435 = vmatpush1.bf16.msra.mxu0 0
        %2436 = vmatprep.subr.bf16.mxu0 0
        %2437 = vmatpush1.bf16.msra.mxu0 0
        %2438 = vmatprep.subr.bf16.mxu0 0
        %2439 = vmatpush1.bf16.msra.mxu0 0
        %2440 = vmatprep.subr.bf16.mxu0 0
        %2441 = vmatpush1.bf16.msra.mxu0 0
        %2442 = vmatprep.mubr.bf16.mxu0 0
        %2443 = vmatmul.mubr.bf16.gmra.mrb[0].mxu0 %v2387
        %v2444 = vpop.f32.mrb[0].mxu0
        %v2445 = vadd.f32 0.0, %v2444
        %v2446 = vpop.f32.mrb[0].mxu0
        %v2447 = vpop.f32.mrb[0].mxu0
        %v2448 = vadd.f32 0.0, %v2447
        %v2449 = vpop.f32.mrb[0].mxu0
        %2450 = vmatprep.mubr.bf16.mxu0 0
        %2451 = vmatmul.mubr.bf16.gmra.mrb[0].mxu0 %v2390
        %v2452 = vpop.f32.mrb[0].mxu0
        %v2453 = vadd.f32 0.0, %v2452
        %v2454 = vpop.f32.mrb[0].mxu0
        %v2455 = vpop.f32.mrb[0].mxu0
        %v2456 = vadd.f32 0.0, %v2455
        %v2457 = vpop.f32.mrb[0].mxu0
        %2458 = vmatprep.mubr.bf16.mxu0 0
        %2459 = vmatmul.mubr.bf16.gmra.mrb[0].mxu0 %v2393
        %v2460 = vpop.f32.mrb[0].mxu0
        %v2461 = vadd.f32 0.0, %v2460
        %v2462 = vpop.f32.mrb[0].mxu0
        %v2463 = vpop.f32.mrb[0].mxu0
        %v2464 = vadd.f32 0.0, %v2463
        %v2465 = vpop.f32.mrb[0].mxu0
        %2466 = vmatprep.mubr.bf16.mxu0 0
        %2467 = vmatmul.mubr.bf16.gmra.mrb[0].mxu0 %v2396
        %v2468 = vpop.f32.mrb[0].mxu0
        %v2469 = vadd.f32 0.0, %v2468
        %v2470 = vpop.f32.mrb[0].mxu0
        %v2471 = vpop.f32.mrb[0].mxu0
        %v2472 = vadd.f32 0.0, %v2471
        %v2473 = vpop.f32.mrb[0].mxu0
        %2474 = vmatprep.mubr.bf16.mxu0 0
        %2475 = vmatmul.mubr.bf16.gmra.mrb[0].mxu0 %v2399
        %v2476 = vpop.f32.mrb[0].mxu0
        %v2477 = vadd.f32 0.0, %v2476
        %v2478 = vpop.f32.mrb[0].mxu0
        %v2479 = vpop.f32.mrb[0].mxu0
        %v2480 = vadd.f32 0.0, %v2479
        %v2481 = vpop.f32.mrb[0].mxu0
        %2482 = vmatprep.mubr.bf16.mxu0 0
        %2483 = vmatmul.mubr.bf16.gmra.mrb[0].mxu0 %v2402
        %v2484 = vpop.f32.mrb[0].mxu0
        %v2485 = vadd.f32 0.0, %v2484
        %v2486 = vpop.f32.mrb[0].mxu0
        %v2487 = vpop.f32.mrb[0].mxu0
        %v2488 = vadd.f32 0.0, %v2487
        %v2489 = vpop.f32.mrb[0].mxu0
        %2490 = vmatprep.mubr.bf16.mxu0 0
        %2491 = vmatmul.mubr.bf16.gmra.mrb[0].mxu0 %v2405
        %v2492 = vpop.f32.mrb[0].mxu0
        %v2493 = vadd.f32 0.0, %v2492
        %v2494 = vpop.f32.mrb[0].mxu0
        %v2495 = vpop.f32.mrb[0].mxu0
        %v2496 = vadd.f32 0.0, %v2495
        %v2497 = vpop.f32.mrb[0].mxu0
        %2498 = vmatprep.mubr.bf16.mxu0 0
        %2499 = vmatmul.mubr.bf16.gmra.mrb[0].mxu0 %v2408
        %v2500 = vpop.f32.mrb[0].mxu0
        %v2501 = vadd.f32 0.0, %v2500
        %v2502 = vpop.f32.mrb[0].mxu0
        %v2503 = vpop.f32.mrb[0].mxu0
        %v2504 = vadd.f32 0.0, %v2503
        %v2505 = vpop.f32.mrb[0].mxu0
        %2506 = vdwg.mxu0
        %v2507 = vld [vmem:[%s8] sm:$0x1]
        %v2509 = vlaneseq
        %v2510 = vshrl.u32 %v2509, 7
        %v2511 = vsub.s32 0, %v2510
        %v2512 = vrot.slane %v2507, %v2511
        %v2514 = vmul.f32 %v2445, %v2512
        %v2515 = vmul.f32 %v2448, %v2512
        %v2516 = vmul.f32 %v2453, %v2512
        %v2517 = vmul.f32 %v2456, %v2512
        %v2518 = vmul.f32 %v2461, %v2512
        %v2519 = vmul.f32 %v2464, %v2512
        %v2520 = vmul.f32 %v2469, %v2512
        %v2521 = vmul.f32 %v2472, %v2512
        %v2522 = vmul.f32 %v2477, %v2512
        %v2523 = vmul.f32 %v2480, %v2512
        %v2524 = vmul.f32 %v2485, %v2512
        %v2525 = vmul.f32 %v2488, %v2512
        %v2526 = vmul.f32 %v2493, %v2512
        %v2527 = vmul.f32 %v2496, %v2512
        %v2528 = vmul.f32 %v2501, %v2512
        %v2529 = vmul.f32 %v2504, %v2512
        %v2530 = vld [vmem:[%s9] sm:$0x1]
        %v2532 = vlaneseq
        %v2533 = vshrl.u32 %v2532, 7
        %v2534 = vsub.s32 0, %v2533
        %v2535 = vrot.slane %v2530, %v2534
        %v2537 = vadd.f32 %v2514, %v2535
        %v2538 = vadd.f32 %v2515, %v2535
        %v2539 = vadd.f32 %v2516, %v2535
        %v2540 = vadd.f32 %v2517, %v2535
        %v2541 = vadd.f32 %v2518, %v2535
        %v2542 = vadd.f32 %v2519, %v2535
        %v2543 = vadd.f32 %v2520, %v2535
        %v2544 = vadd.f32 %v2521, %v2535
        %v2545 = vadd.f32 %v2522, %v2535
        %v2546 = vadd.f32 %v2523, %v2535
        %v2547 = vadd.f32 %v2524, %v2535
        %v2548 = vadd.f32 %v2525, %v2535
        %v2549 = vadd.f32 %v2526, %v2535
        %v2550 = vadd.f32 %v2527, %v2535
        %v2551 = vadd.f32 %v2528, %v2535
        %v2552 = vadd.f32 %v2529, %v2535
        %v2553 = vld [vmem:[%s10] sm:$0xf]
        %v2554 = vld [vmem:[%s10 + $0x4] sm:$0xf]
        %v2557 = vunpack.c.l.b16 %v2553
        %v2558 = vunpack.c.l.b16 %v2554
        %v2559 = vpack.c.b16 %v2558, %v2557
        %2561 = vmatprep.subr.bf16.mxu0 0
        %2562 = vmatpush1.bf16.msra.mxu0 %v2559
        %2563 = vmatprep.subr.bf16.mxu0 0
        %2564 = vmatpush1.bf16.msra.mxu0 0
        %2565 = vmatprep.subr.bf16.mxu0 0
        %2566 = vmatpush1.bf16.msra.mxu0 0
        %2567 = vmatprep.subr.bf16.mxu0 0
        %2568 = vmatpush1.bf16.msra.mxu0 0
        %2569 = vmatprep.subr.bf16.mxu0 0
        %2570 = vmatpush1.bf16.msra.mxu0 0
        %2571 = vmatprep.subr.bf16.mxu0 0
        %2572 = vmatpush1.bf16.msra.mxu0 0
        %2573 = vmatprep.subr.bf16.mxu0 0
        %2574 = vmatpush1.bf16.msra.mxu0 0
        %2575 = vmatprep.subr.bf16.mxu0 0
        %2576 = vmatpush1.bf16.msra.mxu0 0
        %2577 = vmatprep.subr.bf16.mxu0 0
        %2578 = vmatpush1.bf16.msra.mxu0 0
        %2579 = vmatprep.subr.bf16.mxu0 0
        %2580 = vmatpush1.bf16.msra.mxu0 0
        %2581 = vmatprep.subr.bf16.mxu0 0
        %2582 = vmatpush1.bf16.msra.mxu0 0
        %2583 = vmatprep.subr.bf16.mxu0 0
        %2584 = vmatpush1.bf16.msra.mxu0 0
        %2585 = vmatprep.subr.bf16.mxu0 0
        %2586 = vmatpush1.bf16.msra.mxu0 0
        %2587 = vmatprep.subr.bf16.mxu0 0
        %2588 = vmatpush1.bf16.msra.mxu0 0
        %2589 = vmatprep.subr.bf16.mxu0 0
        %2590 = vmatpush1.bf16.msra.mxu0 0
        %2591 = vmatprep.subr.bf16.mxu0 0
        %2592 = vmatpush1.bf16.msra.mxu0 0
        %2593 = vmatprep.mubr.bf16.mxu0 0
        %2594 = vmatmul.mubr.bf16.gmra.mrb[0].mxu0 %v497
        %v2595 = vpop.f32.mrb[0].mxu0
        %v2596 = vadd.f32 0.0, %v2595
        %v2597 = vpop.f32.mrb[0].mxu0
        %v2598 = vpop.f32.mrb[0].mxu0
        %v2599 = vadd.f32 0.0, %v2598
        %v2600 = vpop.f32.mrb[0].mxu0
        %2601 = vmatprep.mubr.bf16.mxu0 0
        %2602 = vmatmul.mubr.bf16.gmra.mrb[0].mxu0 %v500
        %v2603 = vpop.f32.mrb[0].mxu0
        %v2604 = vadd.f32 0.0, %v2603
        %v2605 = vpop.f32.mrb[0].mxu0
        %v2606 = vpop.f32.mrb[0].mxu0
        %v2607 = vadd.f32 0.0, %v2606
        %v2608 = vpop.f32.mrb[0].mxu0
        %2609 = vmatprep.mubr.bf16.mxu0 0
        %2610 = vmatmul.mubr.bf16.gmra.mrb[0].mxu0 %v503
        %v2611 = vpop.f32.mrb[0].mxu0
        %v2612 = vadd.f32 0.0, %v2611
        %v2613 = vpop.f32.mrb[0].mxu0
        %v2614 = vpop.f32.mrb[0].mxu0
        %v2615 = vadd.f32 0.0, %v2614
        %v2616 = vpop.f32.mrb[0].mxu0
        %2617 = vmatprep.mubr.bf16.mxu0 0
        %2618 = vmatmul.mubr.bf16.gmra.mrb[0].mxu0 %v506
        %v2619 = vpop.f32.mrb[0].mxu0
        %v2620 = vadd.f32 0.0, %v2619
        %v2621 = vpop.f32.mrb[0].mxu0
        %v2622 = vpop.f32.mrb[0].mxu0
        %v2623 = vadd.f32 0.0, %v2622
        %v2624 = vpop.f32.mrb[0].mxu0
        %2625 = vmatprep.mubr.bf16.mxu0 0
        %2626 = vmatmul.mubr.bf16.gmra.mrb[0].mxu0 %v509
        %v2627 = vpop.f32.mrb[0].mxu0
        %v2628 = vadd.f32 0.0, %v2627
        %v2629 = vpop.f32.mrb[0].mxu0
        %v2630 = vpop.f32.mrb[0].mxu0
        %v2631 = vadd.f32 0.0, %v2630
        %v2632 = vpop.f32.mrb[0].mxu0
        %2633 = vmatprep.mubr.bf16.mxu0 0
        %2634 = vmatmul.mubr.bf16.gmra.mrb[0].mxu0 %v512
        %v2635 = vpop.f32.mrb[0].mxu0
        %v2636 = vadd.f32 0.0, %v2635
        %v2637 = vpop.f32.mrb[0].mxu0
        %v2638 = vpop.f32.mrb[0].mxu0
        %v2639 = vadd.f32 0.0, %v2638
        %v2640 = vpop.f32.mrb[0].mxu0
        %2641 = vmatprep.mubr.bf16.mxu0 0
        %2642 = vmatmul.mubr.bf16.gmra.mrb[0].mxu0 %v515
        %v2643 = vpop.f32.mrb[0].mxu0
        %v2644 = vadd.f32 0.0, %v2643
        %v2645 = vpop.f32.mrb[0].mxu0
        %v2646 = vpop.f32.mrb[0].mxu0
        %v2647 = vadd.f32 0.0, %v2646
        %v2648 = vpop.f32.mrb[0].mxu0
        %2649 = vmatprep.mubr.bf16.mxu0 0
        %2650 = vmatmul.mubr.bf16.gmra.mrb[0].mxu0 %v518
        %v2651 = vpop.f32.mrb[0].mxu0
        %v2652 = vadd.f32 0.0, %v2651
        %v2653 = vpop.f32.mrb[0].mxu0
        %v2654 = vpop.f32.mrb[0].mxu0
        %v2655 = vadd.f32 0.0, %v2654
        %v2656 = vpop.f32.mrb[0].mxu0
        %2657 = vdwg.mxu0
        %v2658 = vld [vmem:[%s11] sm:$0x1]
        %v2660 = vlaneseq
        %v2661 = vshrl.u32 %v2660, 7
        %v2662 = vsub.s32 0, %v2661
        %v2663 = vrot.slane %v2658, %v2662
        %v2665 = vmul.f32 %v2596, %v2663
        %v2666 = vmul.f32 %v2599, %v2663
        %v2667 = vmul.f32 %v2604, %v2663
        %v2668 = vmul.f32 %v2607, %v2663
        %v2669 = vmul.f32 %v2612, %v2663
        %v2670 = vmul.f32 %v2615, %v2663
        %v2671 = vmul.f32 %v2620, %v2663
        %v2672 = vmul.f32 %v2623, %v2663
        %v2673 = vmul.f32 %v2628, %v2663
        %v2674 = vmul.f32 %v2631, %v2663
        %v2675 = vmul.f32 %v2636, %v2663
        %v2676 = vmul.f32 %v2639, %v2663
        %v2677 = vmul.f32 %v2644, %v2663
        %v2678 = vmul.f32 %v2647, %v2663
        %v2679 = vmul.f32 %v2652, %v2663
        %v2680 = vmul.f32 %v2655, %v2663
        %v2681 = vld [vmem:[%s12] sm:$0x1]
        %v2683 = vlaneseq
        %v2684 = vshrl.u32 %v2683, 7
        %v2685 = vsub.s32 0, %v2684
        %v2686 = vrot.slane %v2681, %v2685
        %v2688 = vadd.f32 %v2665, %v2686
        %v2689 = vadd.f32 %v2666, %v2686
        %v2690 = vadd.f32 %v2667, %v2686
        %v2691 = vadd.f32 %v2668, %v2686
        %v2692 = vadd.f32 %v2669, %v2686
        %v2693 = vadd.f32 %v2670, %v2686
        %v2694 = vadd.f32 %v2671, %v2686
        %v2695 = vadd.f32 %v2672, %v2686
        %v2696 = vadd.f32 %v2673, %v2686
        %v2697 = vadd.f32 %v2674, %v2686
        %v2698 = vadd.f32 %v2675, %v2686
        %v2699 = vadd.f32 %v2676, %v2686
        %v2700 = vadd.f32 %v2677, %v2686
        %v2701 = vadd.f32 %v2678, %v2686
        %v2702 = vadd.f32 %v2679, %v2686
        %v2703 = vadd.f32 %v2680, %v2686
        %v2704 = vadd.f32 %v2537, %v2688
        %v2705 = vadd.f32 %v2538, %v2689
        %v2706 = vadd.f32 %v2539, %v2690
        %v2707 = vadd.f32 %v2540, %v2691
        %v2708 = vadd.f32 %v2541, %v2692
        %v2709 = vadd.f32 %v2542, %v2693
        %v2710 = vadd.f32 %v2543, %v2694
        %v2711 = vadd.f32 %v2544, %v2695
        %v2712 = vadd.f32 %v2545, %v2696
        %v2713 = vadd.f32 %v2546, %v2697
        %v2714 = vadd.f32 %v2547, %v2698
        %v2715 = vadd.f32 %v2548, %v2699
        %v2716 = vadd.f32 %v2549, %v2700
        %v2717 = vadd.f32 %v2550, %v2701
        %v2718 = vadd.f32 %v2551, %v2702
        %v2719 = vadd.f32 %v2552, %v2703
        %v2720 = vmax.f32 %v2704, 0.0
        %v2721 = vmax.f32 %v2705, 0.0
        %v2722 = vmax.f32 %v2706, 0.0
        %v2723 = vmax.f32 %v2707, 0.0
        %v2724 = vmax.f32 %v2708, 0.0
        %v2725 = vmax.f32 %v2709, 0.0
        %v2726 = vmax.f32 %v2710, 0.0
        %v2727 = vmax.f32 %v2711, 0.0
        %v2728 = vmax.f32 %v2712, 0.0
        %v2729 = vmax.f32 %v2713, 0.0
        %v2730 = vmax.f32 %v2714, 0.0
        %v2731 = vmax.f32 %v2715, 0.0
        %v2732 = vmax.f32 %v2716, 0.0
        %v2733 = vmax.f32 %v2717, 0.0
        %v2734 = vmax.f32 %v2718, 0.0
        %v2735 = vmax.f32 %v2719, 0.0
        %2736 = vst [vmem:[%s459] sm:$0xff] %v2720
        %2737 = vst [vmem:[%s459 + $0x8] sm:$0xff] %v2721
        %2738 = vst [vmem:[%s459 + $0x10] sm:$0xff] %v2722
        %2739 = vst [vmem:[%s459 + $0x18] sm:$0xff] %v2723
        %2740 = vst [vmem:[%s459 + $0x20] sm:$0xff] %v2724
        %2741 = vst [vmem:[%s459 + $0x28] sm:$0xff] %v2725
        %2742 = vst [vmem:[%s459 + $0x30] sm:$0xff] %v2726
        %2743 = vst [vmem:[%s459 + $0x38] sm:$0xff] %v2727
        %2744 = vst [vmem:[%s459 + $0x40] sm:$0xff] %v2728
        %2745 = vst [vmem:[%s459 + $0x48] sm:$0xff] %v2729
        %2746 = vst [vmem:[%s459 + $0x50] sm:$0xff] %v2730
        %2747 = vst [vmem:[%s459 + $0x58] sm:$0xff] %v2731
        %2748 = vst [vmem:[%s459 + $0x60] sm:$0xff] %v2732
        %2749 = vst [vmem:[%s459 + $0x68] sm:$0xff] %v2733
        %2750 = vst [vmem:[%s459 + $0x70] sm:$0xff] %v2734
        %2751 = vst [vmem:[%s459 + $0x78] sm:$0xff] %v2735
        %s2752 = sand.u32 %s316, 1
        %s2753 = scalar_lea.sflag [#allocation5], %s2752
        %s2754 = sand.u32 %s316, 1
        %s2755 = smul.addr %s2754, 128
        %s2756 = scalar_lea.vmem [#allocation6], %s2755
        // Predicated region
        $region77: #{tpu_custom_call.1} parent=71 // pred_check
          %p2757 = pneg %p326
        $region78: #{tpu_custom_call.1} parent=71 // pred_check_branch
          %2759 = sbr.rel (%p2757) target = $region80
        $region79: #{tpu_custom_call.1} parent=71 // pred_region
          %s2760 = smul.u32 2, %s30
          %s2762 = ssub.s32 2048, 2048
          %2763 = vsyncadd %s2753, %s2762
          %s2764 = smul.addr %s2760, 8
          %s2765 = smul.addr %s2764, 128
          %s2766 = scalar_lea.hbm %s13, %s2765
          %s2767 = sshll.u32 %s2756, 4
          %s2768 = int_to_ptr.vmem [resolvable:$true] %s2767
          %2773 = dma.vmem_to_hbm [thread:$0]  %s2768, 2048, %s2766, %s2753, 128, 128, 8
        $region80: #{tpu_custom_call.1} parent=71 // pred_fallthru
          _
      $region72: #{tpu_custom_call.1} parent=5 // pred_fallthru
        _
      %p2774 = scmp.le.s32.totalorder 2, %s25
      // Predicated region
      $region81: #{tpu_custom_call.1} parent=5 // pred_check
        %p2775 = pneg %p2774
      $region82: #{tpu_custom_call.1} parent=5 // pred_check_branch
        %2777 = sbr.rel (%p2775) target = $region84
      $region83: #{tpu_custom_call.1} parent=5 // pred_region
        %s2778 = ssub.s32 %s25, 2
        // Predicated region
        $region85: #{tpu_custom_call.1} parent=83 // pred_check
          %p2779 = pneg %p332
        $region86: #{tpu_custom_call.1} parent=83 // pred_check_branch
          %2781 = sbr.rel (%p2779) target = $region88
        $region87: #{tpu_custom_call.1} parent=83 // pred_region
          %s2782 = sand.u32 %s317, 1
          %s2783 = scalar_lea.sflag [#allocation5], %s2782
          %s2784 = sand.u32 %s317, 1
          %s2785 = smul.addr %s2784, 128
          %s2786 = scalar_lea.vmem [#allocation6], %s2785
          %2787 = dma.done %s2783, 2048
        $region88: #{tpu_custom_call.1} parent=83 // pred_fallthru
          _
      $region84: #{tpu_custom_call.1} parent=5 // pred_fallthru
        _
    $region6: #{tpu_custom_call.1} parent=1 // loop_footer
      %s29 = sadd.s32 1, %s25
    $region7: #{tpu_custom_call.1} parent=1 // loop_footer_branch
      %24 = sbr.rel target = $region3
    $region8: #{tpu_custom_call.1} parent=1 // loop_exit
      _
    %2788 = vsyncpa [#allocation4], 1
    %s2789 = scalar_lea.sflag [#allocation4], 1
    %2790 = vsyncpa %s2789, 1
    %2791 = vsyncpa [#allocation5], 1
    %s2792 = scalar_lea.sflag [#allocation5], 1
    %2793 = vsyncpa %s2792, 1

</llo_original>
